<compile_context>
chip_gen: v6e
topology: v6e:2x2x1
jax: 0.10.0
libtpu: 0.0.40
codegen_flags: <defaults>
</compile_context>

<pallas_src>
import functools

import jax
import jax.numpy as jnp
from jax.experimental import pallas as pl
from jax.experimental.pallas import tpu as pltpu

NEG_SLOPE = 0.01  # torch.nn.LeakyReLU default negative_slope


def _leaky_relu(x):
    return jnp.where(x >= 0, x, NEG_SLOPE * x)


def _round_up(x, m):
    return ((x + m - 1) // m) * m


# --------------------------- fused kernel ---------------------------
def _fused_stack_kernel(x_ref, w1_ref, b1_ref, w2_ref, b2_ref, wres_ref,
                        bres_ref, out_ref,
                        xpad_ref, hpad_ref, slab_ref, cx_ref, ch_ref,
                        *, cfgs, K, TL, Cp, PADMAX):
    """One (batch, time-tile) grid step of the whole CausalCNN stack.

    x_ref    : (TL, Cp)  bf16     current input tile (NLC layout, lane-dense)
    w1_ref   : (NL, K*Cp, Cp) bf16   im2col-flattened conv-1 weights
    b1_ref   : (NL, 1, Cp) f32
    w2_ref   : (NL, K*Cp, Cp) bf16   im2col-flattened conv-2 weights
    b2_ref   : (NL, 1, Cp) f32
    wres_ref : (NR, Cp, Cp) bf16     1x1 residual conv weights (only where needed)
    bres_ref : (NR, 1, Cp) f32
    out_ref  : (TL, Cp)  bf16
    xpad_ref : (PADMAX+TL, Cp) bf16  [layer-input halo ; current tile]
    hpad_ref : (PADMAX+TL, Cp) bf16  [conv1-output halo ; current tile]
    slab_ref : (TL, K*Cp) bf16       im2col slab (one matmul per conv)
    cx_ref   : (NL, PADMAX, Cp) bf16 per-layer carry of the layer input
    ch_ref   : (NL, PADMAX, Cp) bf16 per-layer carry of the conv1 output
    """
    tt = pl.program_id(1)
    num_layers = len(cfgs)

    # Fresh causal history at the first time-tile of every batch element.
    @pl.when(tt == 0)
    def _():
        cx_ref[...] = jnp.zeros(cx_ref.shape, cx_ref.dtype)
        ch_ref[...] = jnp.zeros(ch_ref.shape, ch_ref.dtype)

    # Stage this tile of the network (layer-0) input: a tile-sized bf16 copy.
    xpad_ref[pl.ds(PADMAX, TL), :] = x_ref[...]

    res_idx = 0
    for li, (dilation, use_res) in enumerate(cfgs):
        # ---- load causal halo for this layer's input, then refresh the carry.
        # xpad = [history ; current tile]; its last PADMAX rows are exactly the
        # history the NEXT tile needs (works for both TL >= PADMAX and <).
        xpad_ref[pl.ds(0, PADMAX), :] = cx_ref[li]
        cx_ref[li] = xpad_ref[pl.ds(TL, PADMAX), :]

        # ---- causal conv 1: K-tap im2col slab -> ONE (TL,K*Cp)@(K*Cp,Cp) dot.
        for k in range(K):
            shift = (K - 1 - k) * dilation          # causal left shift of tap k
            slab_ref[:, k * Cp:(k + 1) * Cp] = (
                xpad_ref[pl.ds(PADMAX - shift, TL), :])
        h = jnp.dot(slab_ref[...], w1_ref[li],
                    preferred_element_type=jnp.float32) + b1_ref[li]
        h = _leaky_relu(h)

        hpad_ref[pl.ds(0, PADMAX), :] = ch_ref[li]
        hpad_ref[pl.ds(PADMAX, TL), :] = h.astype(hpad_ref.dtype)
        ch_ref[li] = hpad_ref[pl.ds(TL, PADMAX), :]

        # ---- causal conv 2, same scheme.
        for k in range(K):
            shift = (K - 1 - k) * dilation
            slab_ref[:, k * Cp:(k + 1) * Cp] = (
                hpad_ref[pl.ds(PADMAX - shift, TL), :])
        y = jnp.dot(slab_ref[...], w2_ref[li],
                    preferred_element_type=jnp.float32) + b2_ref[li]
        y = _leaky_relu(y)

        # ---- residual branch (identity, or 1x1 conv when channels differ).
        x_cur = xpad_ref[pl.ds(PADMAX, TL), :]
        if use_res:
            res = jnp.dot(x_cur, wres_ref[res_idx],
                          preferred_element_type=jnp.float32) + bres_ref[res_idx]
            res_idx += 1
        else:
            res = x_cur.astype(jnp.float32)
        out_val = y + res  # final=False for every block in CausalCNN

        if li == num_layers - 1:
            out_ref[...] = out_val.astype(out_ref.dtype)        # lane-dense bf16
        else:
            xpad_ref[pl.ds(PADMAX, TL), :] = out_val.astype(xpad_ref.dtype)


# --------------------------- parameter packing ---------------------------
def pack_causal_cnn_params(params, kernel_size):
    """Zero-pad channels to a common lane width Cp (multiple of 128), flatten
    the K taps into an im2col weight (K*Cp, Cp), stack over layers, cast bf16."""
    K = kernel_size
    chans = []
    for p in params:
        chans += [p["w1"].shape[1], p["w1"].shape[2], p["w2"].shape[2]]
    Cp = max(128, _round_up(max(chans), 128))
    NL = len(params)

    w1 = jnp.zeros((NL, K, Cp, Cp), jnp.float32)
    b1 = jnp.zeros((NL, 1, Cp), jnp.float32)
    w2 = jnp.zeros((NL, K, Cp, Cp), jnp.float32)
    b2 = jnp.zeros((NL, 1, Cp), jnp.float32)
    wres_list, bres_list = [], []
    cfgs = []
    for i, p in enumerate(params):
        cin, cmid = p["w1"].shape[1], p["w1"].shape[2]
        cout = p["w2"].shape[2]
        w1 = w1.at[i, :, :cin, :cmid].set(p["w1"])
        b1 = b1.at[i, :, :cmid].set(p["b1"])
        w2 = w2.at[i, :, :cmid, :cout].set(p["w2"])
        b2 = b2.at[i, :, :cout].set(p["b2"])
        if p["use_res"]:
            wres_list.append(jnp.zeros((Cp, Cp), jnp.float32)
                             .at[:cin, :cout].set(p["wres"]))
            bres_list.append(jnp.zeros((1, Cp), jnp.float32)
                             .at[:, :cout].set(p["bres"]))
        cfgs.append((int(p["dilation"]), bool(p["use_res"])))

    if wres_list:
        wres = jnp.stack(wres_list)
        bres = jnp.stack(bres_list)
    else:  # dummy single entry; never indexed inside the kernel
        wres = jnp.zeros((1, Cp, Cp), jnp.float32)
        bres = jnp.zeros((1, 1, Cp), jnp.float32)

    packed = dict(
        w1=w1.reshape(NL, K * Cp, Cp).astype(jnp.bfloat16),   # im2col layout
        w2=w2.reshape(NL, K * Cp, Cp).astype(jnp.bfloat16),
        b1=b1, b2=b2,                     # biases stay f32 (tiny; added post-MXU)
        wres=wres.astype(jnp.bfloat16), bres=bres)
    meta = dict(cfgs=tuple(cfgs), K=K, Cp=Cp,
                cout=int(params[-1]["w2"].shape[2]))
    return packed, meta


# --------------------------- wrapper ---------------------------
def _vmem_limit_bytes(packed, TL, Cp, K, NL, PADMAX):
    bf = 2
    w_bytes = (packed["w1"].size + packed["w2"].size + packed["wres"].size) * bf
    b_bytes = (packed["b1"].size + packed["b2"].size + packed["bres"].size) * 4
    io_bytes = 2 * TL * Cp * bf * 2          # double-buffered input + output tile
    scratch = (2 * (PADMAX + TL) * Cp + TL * K * Cp + 2 * NL * PADMAX * Cp) * bf
    # Budget for double-buffered weights as the worst case (in case the
    # single-buffer hint is unavailable) plus head-room for f32 temporaries.
    need = 2 * (w_bytes + b_bytes) + io_bytes + scratch
    return min(int(need * 1.5) + (4 << 20), 100 << 20)


def fused_causal_cnn(x_ncl, packed, meta, *, tile_l=512):
    """x_ncl: (B, C_in, L) like PyTorch; returns (B, C_out, L) float32."""
    B, Cin, L = x_ncl.shape
    K, Cp, cfgs, Cout = meta["K"], meta["Cp"], meta["cfgs"], meta["cout"]
    NL = len(cfgs)
    KCp = K * Cp
    NR = packed["wres"].shape[0]

    max_pad = max((K - 1) * d for d, _ in cfgs)
    PADMAX = max(8, _round_up(max_pad, 8))

    TL = min(_round_up(tile_l, 8), _round_up(L, 8))   # time-tile length
    LP = _round_up(L, TL)
    NT = LP // TL

    # NCL -> NLC, bf16, pad time to NT*TL and channels to the lane width.
    # Trailing zero time rows never affect outputs at t < L (causal); padded
    # channels stay exactly zero through the stack (LeakyReLU(0)=0, zero
    # weights/biases), so numerics match the unpadded reference.
    x = jnp.transpose(x_ncl, (0, 2, 1)).astype(jnp.bfloat16)
    x = jnp.pad(x, ((0, 0), (0, LP - L), (0, Cp - Cin)))

    kern = functools.partial(_fused_stack_kernel, cfgs=cfgs, K=K, TL=TL,
                             Cp=Cp, PADMAX=PADMAX)

    def build(single_buffer_weights):
        wkw = ({"pipeline_mode": pl.Buffered(buffer_count=1)}
               if single_buffer_weights else {})

        def wspec(shape):  # grid-invariant weight/bias block (never re-fetched)
            return pl.BlockSpec(shape, lambda b, t, n=len(shape): (0,) * n, **wkw)

        return pl.pallas_call(
            kern,
            out_shape=jax.ShapeDtypeStruct((B, LP, Cp), jnp.bfloat16),
            grid=(B, NT),
            in_specs=[
                pl.BlockSpec((None, TL, Cp), lambda b, t: (b, t, 0)),
                wspec((NL, KCp, Cp)), wspec((NL, 1, Cp)),
                wspec((NL, KCp, Cp)), wspec((NL, 1, Cp)),
                wspec((NR, Cp, Cp)), wspec((NR, 1, Cp)),
            ],
            out_specs=pl.BlockSpec((None, TL, Cp), lambda b, t: (b, t, 0)),
            scratch_shapes=[
                pltpu.VMEM((PADMAX + TL, Cp), jnp.bfloat16),   # xpad work buffer
                pltpu.VMEM((PADMAX + TL, Cp), jnp.bfloat16),   # hpad work buffer
                pltpu.VMEM((TL, KCp), jnp.bfloat16),           # im2col slab
                pltpu.VMEM((NL, PADMAX, Cp), jnp.bfloat16),    # per-layer x halo
                pltpu.VMEM((NL, PADMAX, Cp), jnp.bfloat16),    # per-layer h halo
            ],
            compiler_params=pltpu.CompilerParams(
                dimension_semantics=("parallel", "arbitrary"),
                vmem_limit_bytes=_vmem_limit_bytes(packed, TL, Cp, K, NL,
                                                   PADMAX)),
        )

    args = (x, packed["w1"], packed["b1"], packed["w2"], packed["b2"],
            packed["wres"], packed["bres"])
    try:
        out = build(True)(*args)   # weights single-buffered in VMEM
    except Exception:              # pragma: no cover
        # Pallas version without BlockSpec pipeline_mode support: fall back to
        # default (double-buffered) weight blocks; everything else unchanged.
        out = build(False)(*args)

    out = out[:, :L, :Cout].astype(jnp.float32)
    return jnp.transpose(out, (0, 2, 1))  # -> (B, C_out, L)


def causal_cnn_forward(x_ncl, params, kernel_size, *, tile_l=512):
    packed, meta = pack_causal_cnn_params(params, kernel_size)
    return fused_causal_cnn(x_ncl, packed, meta, tile_l=tile_l)


# --------------------------- parameter init ---------------------------
def init_causal_cnn_params(key, in_channels, channels, depth, out_channels,
                           kernel_size, isdilated):
    """Deterministic synthetic parameters matching CausalCNN.__init__ shapes.
    torch weight_norm only reparameterizes the conv weight; the forward pass
    uses the effective weight, so a direct init is equivalent."""
    cfgs = []
    dilation = 1
    for i in range(depth):
        cin = in_channels if i == 0 else channels
        cfgs.append((cin, channels, dilation))
        if isdilated == "TRUE":
            dilation *= 2
        elif isdilated == "FALSE":
            dilation = 1
    cfgs.append((channels, out_channels, dilation))

    params = []
    for (cin, cout, d) in cfgs:
        key, k1, k2, k3, k4, k5, k6 = jax.random.split(key, 7)
        p = dict(
            w1=0.1 * jax.random.normal(k1, (kernel_size, cin, cout), jnp.float32),
            b1=0.1 * jax.random.normal(k2, (1, cout), jnp.float32),
            w2=0.1 * jax.random.normal(k3, (kernel_size, cout, cout), jnp.float32),
            b2=0.1 * jax.random.normal(k4, (1, cout), jnp.float32),
            dilation=d,
            use_res=(cin != cout),
        )
        if p["use_res"]:
            p["wres"] = 0.1 * jax.random.normal(k5, (cin, cout), jnp.float32)
            p["bres"] = 0.1 * jax.random.normal(k6, (1, cout), jnp.float32)
        else:  # dummies (never used)
            p["wres"] = jnp.zeros((cin, cout), jnp.float32)
            p["bres"] = jnp.zeros((1, cout), jnp.float32)
        params.append(p)
    return params


# ---------------- pure-JAX f32 reference for validation ----------------
def _ref_causal_conv(x, w, b, dilation, K):
    B, L, _ = x.shape
    pad = (K - 1) * dilation
    xp = jnp.pad(x, ((0, 0), (pad, 0), (0, 0)))
    acc = jnp.zeros((B, L, w.shape[-1]), jnp.float32) + b
    for k in range(K):
        acc = acc + jnp.einsum("blc,cd->bld",
                               xp[:, k * dilation:k * dilation + L, :], w[k])
    return acc


def ref_forward(x_ncl, params, K):
    x = jnp.transpose(x_ncl, (0, 2, 1)).astype(jnp.float32)
    for p in params:
        h = _leaky_relu(_ref_causal_conv(x, p["w1"], p["b1"], p["dilation"], K))
        y = _leaky_relu(_ref_causal_conv(h, p["w2"], p["b2"], p["dilation"], K))
        res = (jnp.einsum("blc,cd->bld", x, p["wres"]) + p["bres"]) \
            if p["use_res"] else x
        x = y + res
    return jnp.transpose(x, (0, 2, 1))


if __name__ == "__main__":
    B, in_channels, L = 2, 4, 16
    channels, depth, out_channels = 8, 2, 6
    kernel_size, isdilated = 3, "TRUE"

    key = jax.random.PRNGKey(0)
    key, xk = jax.random.split(key)
    x = jax.random.normal(xk, (B, in_channels, L), jnp.float32)  # NCL like torch

    params = init_causal_cnn_params(key, in_channels, channels, depth,
                                    out_channels, kernel_size, isdilated)
    packed, meta = pack_causal_cnn_params(params, kernel_size)

    ref = jax.block_until_ready(ref_forward(x, params, kernel_size))

    # Multi-tile run (tile_l=8 -> 2 time tiles): exercises the causal-halo carry.
    out_tiled = jax.block_until_ready(fused_causal_cnn(x, packed, meta, tile_l=8))
    # Single-tile run (whole sequence in one tile).
    out_full = jax.block_until_ready(fused_causal_cnn(x, packed, meta, tile_l=64))

    assert out_tiled.shape == (B, out_channels, L), out_tiled.shape
    assert out_full.shape == (B, out_channels, L), out_full.shape

    # bf16 data path vs. f32 reference: loosened tolerance.
    for out in (out_tiled, out_full):
        err = float(jnp.max(jnp.abs(out - ref)))
        assert jnp.allclose(out, ref, atol=5e-2, rtol=5e-2), err
    # Tiled and untiled kernels compute the same bf16 math; they must agree
    # tightly (validates the halo-carry logic independently of bf16 error).
    assert jnp.allclose(out_tiled, out_full, atol=5e-3, rtol=5e-3), \
        float(jnp.max(jnp.abs(out_tiled - out_full)))

    print("KERNEL_OK")
</pallas_src>

<mosaic_0001>
module attributes {stable_mosaic.version = 11 : i64} {
  func.func @_fused_stack_kernel(%arg0: i32, %arg1: i32, %arg2: memref<1x8x128xbf16, #tpu.memory_space<vmem>>, %arg3: memref<3x384x128xbf16, #tpu.memory_space<vmem>>, %arg4: memref<3x1x128xf32, #tpu.memory_space<vmem>>, %arg5: memref<3x384x128xbf16, #tpu.memory_space<vmem>>, %arg6: memref<3x1x128xf32, #tpu.memory_space<vmem>>, %arg7: memref<2x128x128xbf16, #tpu.memory_space<vmem>>, %arg8: memref<2x1x128xf32, #tpu.memory_space<vmem>>, %arg9: memref<1x8x128xbf16, #tpu.memory_space<vmem>>, %arg10: memref<16x128xbf16, #tpu.memory_space<vmem>>, %arg11: memref<16x128xbf16, #tpu.memory_space<vmem>>, %arg12: memref<8x384xbf16, #tpu.memory_space<vmem>>, %arg13: memref<3x8x128xbf16, #tpu.memory_space<vmem>>, %arg14: memref<3x8x128xbf16, #tpu.memory_space<vmem>>) attributes {dimension_semantics = [#tpu.dimension_semantics<parallel>, #tpu.dimension_semantics<arbitrary>], iteration_bounds = array<i64: 2, 2>, scalar_prefetch = 0 : i64, scratch_operands = 5 : i64, tpu.core_type = #tpu.core_type<tc>, window_params = [{transform_indices = @transform_0, window_bounds = array<i64: 1, 8, 128>}, {pipeline_mode = #tpu.pipeline_mode<synchronous>, transform_indices = @transform_1, window_bounds = array<i64: 3, 384, 128>}, {pipeline_mode = #tpu.pipeline_mode<synchronous>, transform_indices = @transform_2, window_bounds = array<i64: 3, 1, 128>}, {pipeline_mode = #tpu.pipeline_mode<synchronous>, transform_indices = @transform_3, window_bounds = array<i64: 3, 384, 128>}, {pipeline_mode = #tpu.pipeline_mode<synchronous>, transform_indices = @transform_4, window_bounds = array<i64: 3, 1, 128>}, {pipeline_mode = #tpu.pipeline_mode<synchronous>, transform_indices = @transform_5, window_bounds = array<i64: 2, 128, 128>}, {pipeline_mode = #tpu.pipeline_mode<synchronous>, transform_indices = @transform_6, window_bounds = array<i64: 2, 1, 128>}, {transform_indices = @transform_7, window_bounds = array<i64: 1, 8, 128>}]} {
    %c0_i32 = arith.constant 0 : i32
    %0 = arith.cmpi eq, %arg1, %c0_i32 : i32
    %1 = arith.extui %0 : i1 to i32
    %c0_i32_0 = arith.constant 0 : i32
    %2 = arith.cmpi ne, %1, %c0_i32_0 : i32
    scf.if %2 {
      %cst_227 = arith.constant 0.000000e+00 : bf16
      %197 = vector.broadcast %cst_227 : bf16 to vector<3x8x128xbf16>
      %c0_228 = arith.constant 0 : index
      %c0_229 = arith.constant 0 : index
      %c0_230 = arith.constant 0 : index
      %198 = vector.load %arg13[%c0_228, %c0_229, %c0_230] : memref<3x8x128xbf16, #tpu.memory_space<vmem>>, vector<3x8x128xbf16>
      tpu.vector_store %arg13[%c0_228, %c0_229, %c0_230], %197 {strides = array<i32>} : memref<3x8x128xbf16, #tpu.memory_space<vmem>>, vector<3x8x128xbf16>,
      %cst_231 = arith.constant 0.000000e+00 : bf16
      %199 = vector.broadcast %cst_231 : bf16 to vector<3x8x128xbf16>
      %c0_232 = arith.constant 0 : index
      %c0_233 = arith.constant 0 : index
      %c0_234 = arith.constant 0 : index
      %200 = vector.load %arg14[%c0_232, %c0_233, %c0_234] : memref<3x8x128xbf16, #tpu.memory_space<vmem>>, vector<3x8x128xbf16>
      tpu.vector_store %arg14[%c0_232, %c0_233, %c0_234], %199 {strides = array<i32>} : memref<3x8x128xbf16, #tpu.memory_space<vmem>>, vector<3x8x128xbf16>,
    } else {
    }
    %c0 = arith.constant 0 : index
    %c0_1 = arith.constant 0 : index
    %c0_2 = arith.constant 0 : index
    %3 = vector.load %arg2[%c0, %c0_1, %c0_2] : memref<1x8x128xbf16, #tpu.memory_space<vmem>>, vector<1x8x128xbf16>
    %4 = vector.shape_cast %3 : vector<1x8x128xbf16> to vector<8x128xbf16>
    %c8 = arith.constant 8 : index
    %c0_3 = arith.constant 0 : index
    %5 = vector.load %arg10[%c8, %c0_3] : memref<16x128xbf16, #tpu.memory_space<vmem>>, vector<8x128xbf16>
    tpu.vector_store %arg10[%c8, %c0_3], %4 {strides = array<i32>} : memref<16x128xbf16, #tpu.memory_space<vmem>>, vector<8x128xbf16>,
    %c0_4 = arith.constant 0 : index
    %c0_5 = arith.constant 0 : index
    %c0_6 = arith.constant 0 : index
    %6 = vector.load %arg13[%c0_4, %c0_5, %c0_6] : memref<3x8x128xbf16, #tpu.memory_space<vmem>>, vector<1x8x128xbf16>
    %7 = vector.shape_cast %6 : vector<1x8x128xbf16> to vector<8x128xbf16>
    %c0_7 = arith.constant 0 : index
    %c0_8 = arith.constant 0 : index
    %8 = vector.load %arg10[%c0_7, %c0_8] : memref<16x128xbf16, #tpu.memory_space<vmem>>, vector<8x128xbf16>
    tpu.vector_store %arg10[%c0_7, %c0_8], %7 {strides = array<i32>} : memref<16x128xbf16, #tpu.memory_space<vmem>>, vector<8x128xbf16>,
    %c8_9 = arith.constant 8 : index
    %c0_10 = arith.constant 0 : index
    %9 = vector.load %arg10[%c8_9, %c0_10] : memref<16x128xbf16, #tpu.memory_space<vmem>>, vector<8x128xbf16>
    %c0_11 = arith.constant 0 : index
    %c0_12 = arith.constant 0 : index
    %c0_13 = arith.constant 0 : index
    %10 = vector.load %arg13[%c0_11, %c0_12, %c0_13] : memref<3x8x128xbf16, #tpu.memory_space<vmem>>, vector<1x8x128xbf16>
    %11 = vector.shape_cast %10 : vector<1x8x128xbf16> to vector<8x128xbf16>
    %12 = vector.shape_cast %9 : vector<8x128xbf16> to vector<1x8x128xbf16>
    tpu.vector_store %arg13[%c0_11, %c0_12, %c0_13], %12 {strides = array<i32>} : memref<3x8x128xbf16, #tpu.memory_space<vmem>>, vector<1x8x128xbf16>,
    %c6 = arith.constant 6 : index
    %c0_14 = arith.constant 0 : index
    %13 = vector.load %arg10[%c6, %c0_14] : memref<16x128xbf16, #tpu.memory_space<vmem>>, vector<8x128xbf16>
    %c0_15 = arith.constant 0 : index
    %c0_16 = arith.constant 0 : index
    %14 = vector.load %arg12[%c0_15, %c0_16] : memref<8x384xbf16, #tpu.memory_space<vmem>>, vector<8x128xbf16>
    tpu.vector_store %arg12[%c0_15, %c0_16], %13 {strides = array<i32>} : memref<8x384xbf16, #tpu.memory_space<vmem>>, vector<8x128xbf16>,
    %c7 = arith.constant 7 : index
    %c0_17 = arith.constant 0 : index
    %15 = vector.load %arg10[%c7, %c0_17] : memref<16x128xbf16, #tpu.memory_space<vmem>>, vector<8x128xbf16>
    %c0_18 = arith.constant 0 : index
    %c128 = arith.constant 128 : index
    %16 = vector.load %arg12[%c0_18, %c128] : memref<8x384xbf16, #tpu.memory_space<vmem>>, vector<8x128xbf16>
    tpu.vector_store %arg12[%c0_18, %c128], %15 {strides = array<i32>} : memref<8x384xbf16, #tpu.memory_space<vmem>>, vector<8x128xbf16>,
    %c8_19 = arith.constant 8 : index
    %c0_20 = arith.constant 0 : index
    %17 = vector.load %arg10[%c8_19, %c0_20] : memref<16x128xbf16, #tpu.memory_space<vmem>>, vector<8x128xbf16>
    %c0_21 = arith.constant 0 : index
    %c256 = arith.constant 256 : index
    %18 = vector.load %arg12[%c0_21, %c256] : memref<8x384xbf16, #tpu.memory_space<vmem>>, vector<8x128xbf16>
    tpu.vector_store %arg12[%c0_21, %c256], %17 {strides = array<i32>} : memref<8x384xbf16, #tpu.memory_space<vmem>>, vector<8x128xbf16>,
    %c0_22 = arith.constant 0 : index
    %c0_23 = arith.constant 0 : index
    %19 = vector.load %arg12[%c0_22, %c0_23] : memref<8x384xbf16, #tpu.memory_space<vmem>>, vector<8x384xbf16>
    %c0_24 = arith.constant 0 : index
    %c0_25 = arith.constant 0 : index
    %c0_26 = arith.constant 0 : index
    %20 = vector.load %arg3[%c0_24, %c0_25, %c0_26] : memref<3x384x128xbf16, #tpu.memory_space<vmem>>, vector<1x384x128xbf16>
    %21 = vector.shape_cast %20 : vector<1x384x128xbf16> to vector<384x128xbf16>
    %cst = arith.constant dense<0.000000e+00> : vector<8x128xf32>
    %22 = tpu.matmul %19, %21, %cst {dimension_numbers = #tpu.dot_dimension_numbers<[1], [0], [0], [1], [0, 0, 1, 1], [], []>} : vector<8x384xbf16>, vector<384x128xbf16>, vector<8x128xf32> -> vector<8x128xf32>
    %c0_27 = arith.constant 0 : index
    %c0_28 = arith.constant 0 : index
    %c0_29 = arith.constant 0 : index
    %23 = vector.load %arg4[%c0_27, %c0_28, %c0_29] : memref<3x1x128xf32, #tpu.memory_space<vmem>>, vector<1x1x128xf32>
    %24 = vector.shape_cast %23 : vector<1x1x128xf32> to vector<1x128xf32>
    %25 = vector.broadcast %24 : vector<1x128xf32> to vector<8x128xf32>
    %26 = arith.addf %22, %25 : vector<8x128xf32>
    %cst_30 = arith.constant 0.000000e+00 : f32
    %27 = vector.broadcast %cst_30 : f32 to vector<8x128xf32>
    %28 = arith.cmpf oge, %26, %27 : vector<8x128xf32>
    %cst_31 = arith.constant 0.00999999977 : f32
    %29 = vector.broadcast %cst_31 : f32 to vector<8x128xf32>
    %30 = arith.mulf %29, %26 : vector<8x128xf32>
    %31 = arith.select %28, %26, %30 : vector<8x128xi1>, vector<8x128xf32>
    %c0_32 = arith.constant 0 : index
    %c0_33 = arith.constant 0 : index
    %c0_34 = arith.constant 0 : index
    %32 = vector.load %arg14[%c0_32, %c0_33, %c0_34] : memref<3x8x128xbf16, #tpu.memory_space<vmem>>, vector<1x8x128xbf16>
    %33 = vector.shape_cast %32 : vector<1x8x128xbf16> to vector<8x128xbf16>
    %c0_35 = arith.constant 0 : index
    %c0_36 = arith.constant 0 : index
    %34 = vector.load %arg11[%c0_35, %c0_36] : memref<16x128xbf16, #tpu.memory_space<vmem>>, vector<8x128xbf16>
    tpu.vector_store %arg11[%c0_35, %c0_36], %33 {strides = array<i32>} : memref<16x128xbf16, #tpu.memory_space<vmem>>, vector<8x128xbf16>,
    %35 = arith.truncf %31 : vector<8x128xf32> to vector<8x128xbf16>
    %c8_37 = arith.constant 8 : index
    %c0_38 = arith.constant 0 : index
    %36 = vector.load %arg11[%c8_37, %c0_38] : memref<16x128xbf16, #tpu.memory_space<vmem>>, vector<8x128xbf16>
    tpu.vector_store %arg11[%c8_37, %c0_38], %35 {strides = array<i32>} : memref<16x128xbf16, #tpu.memory_space<vmem>>, vector<8x128xbf16>,
    %c8_39 = arith.constant 8 : index
    %c0_40 = arith.constant 0 : index
    %37 = vector.load %arg11[%c8_39, %c0_40] : memref<16x128xbf16, #tpu.memory_space<vmem>>, vector<8x128xbf16>
    %c0_41 = arith.constant 0 : index
    %c0_42 = arith.constant 0 : index
    %c0_43 = arith.constant 0 : index
    %38 = vector.load %arg14[%c0_41, %c0_42, %c0_43] : memref<3x8x128xbf16, #tpu.memory_space<vmem>>, vector<1x8x128xbf16>
    %39 = vector.shape_cast %38 : vector<1x8x128xbf16> to vector<8x128xbf16>
    %40 = vector.shape_cast %37 : vector<8x128xbf16> to vector<1x8x128xbf16>
    tpu.vector_store %arg14[%c0_41, %c0_42, %c0_43], %40 {strides = array<i32>} : memref<3x8x128xbf16, #tpu.memory_space<vmem>>, vector<1x8x128xbf16>,
    %c6_44 = arith.constant 6 : index
    %c0_45 = arith.constant 0 : index
    %41 = vector.load %arg11[%c6_44, %c0_45] : memref<16x128xbf16, #tpu.memory_space<vmem>>, vector<8x128xbf16>
    %c0_46 = arith.constant 0 : index
    %c0_47 = arith.constant 0 : index
    %42 = vector.load %arg12[%c0_46, %c0_47] : memref<8x384xbf16, #tpu.memory_space<vmem>>, vector<8x128xbf16>
    tpu.vector_store %arg12[%c0_46, %c0_47], %41 {strides = array<i32>} : memref<8x384xbf16, #tpu.memory_space<vmem>>, vector<8x128xbf16>,
    %c7_48 = arith.constant 7 : index
    %c0_49 = arith.constant 0 : index
    %43 = vector.load %arg11[%c7_48, %c0_49] : memref<16x128xbf16, #tpu.memory_space<vmem>>, vector<8x128xbf16>
    %c0_50 = arith.constant 0 : index
    %c128_51 = arith.constant 128 : index
    %44 = vector.load %arg12[%c0_50, %c128_51] : memref<8x384xbf16, #tpu.memory_space<vmem>>, vector<8x128xbf16>
    tpu.vector_store %arg12[%c0_50, %c128_51], %43 {strides = array<i32>} : memref<8x384xbf16, #tpu.memory_space<vmem>>, vector<8x128xbf16>,
    %c8_52 = arith.constant 8 : index
    %c0_53 = arith.constant 0 : index
    %45 = vector.load %arg11[%c8_52, %c0_53] : memref<16x128xbf16, #tpu.memory_space<vmem>>, vector<8x128xbf16>
    %c0_54 = arith.constant 0 : index
    %c256_55 = arith.constant 256 : index
    %46 = vector.load %arg12[%c0_54, %c256_55] : memref<8x384xbf16, #tpu.memory_space<vmem>>, vector<8x128xbf16>
    tpu.vector_store %arg12[%c0_54, %c256_55], %45 {strides = array<i32>} : memref<8x384xbf16, #tpu.memory_space<vmem>>, vector<8x128xbf16>,
    %c0_56 = arith.constant 0 : index
    %c0_57 = arith.constant 0 : index
    %47 = vector.load %arg12[%c0_56, %c0_57] : memref<8x384xbf16, #tpu.memory_space<vmem>>, vector<8x384xbf16>
    %c0_58 = arith.constant 0 : index
    %c0_59 = arith.constant 0 : index
    %c0_60 = arith.constant 0 : index
    %48 = vector.load %arg5[%c0_58, %c0_59, %c0_60] : memref<3x384x128xbf16, #tpu.memory_space<vmem>>, vector<1x384x128xbf16>
    %49 = vector.shape_cast %48 : vector<1x384x128xbf16> to vector<384x128xbf16>
    %cst_61 = arith.constant dense<0.000000e+00> : vector<8x128xf32>
    %50 = tpu.matmul %47, %49, %cst_61 {dimension_numbers = #tpu.dot_dimension_numbers<[1], [0], [0], [1], [0, 0, 1, 1], [], []>} : vector<8x384xbf16>, vector<384x128xbf16>, vector<8x128xf32> -> vector<8x128xf32>
    %c0_62 = arith.constant 0 : index
    %c0_63 = arith.constant 0 : index
    %c0_64 = arith.constant 0 : index
    %51 = vector.load %arg6[%c0_62, %c0_63, %c0_64] : memref<3x1x128xf32, #tpu.memory_space<vmem>>, vector<1x1x128xf32>
    %52 = vector.shape_cast %51 : vector<1x1x128xf32> to vector<1x128xf32>
    %53 = vector.broadcast %52 : vector<1x128xf32> to vector<8x128xf32>
    %54 = arith.addf %50, %53 : vector<8x128xf32>
    %cst_65 = arith.constant 0.000000e+00 : f32
    %55 = vector.broadcast %cst_65 : f32 to vector<8x128xf32>
    %56 = arith.cmpf oge, %54, %55 : vector<8x128xf32>
    %cst_66 = arith.constant 0.00999999977 : f32
    %57 = vector.broadcast %cst_66 : f32 to vector<8x128xf32>
    %58 = arith.mulf %57, %54 : vector<8x128xf32>
    %59 = arith.select %56, %54, %58 : vector<8x128xi1>, vector<8x128xf32>
    %c8_67 = arith.constant 8 : index
    %c0_68 = arith.constant 0 : index
    %60 = vector.load %arg10[%c8_67, %c0_68] : memref<16x128xbf16, #tpu.memory_space<vmem>>, vector<8x128xbf16>
    %c0_69 = arith.constant 0 : index
    %c0_70 = arith.constant 0 : index
    %c0_71 = arith.constant 0 : index
    %61 = vector.load %arg7[%c0_69, %c0_70, %c0_71] : memref<2x128x128xbf16, #tpu.memory_space<vmem>>, vector<1x128x128xbf16>
    %62 = vector.shape_cast %61 : vector<1x128x128xbf16> to vector<128x128xbf16>
    %cst_72 = arith.constant dense<0.000000e+00> : vector<8x128xf32>
    %63 = tpu.matmul %60, %62, %cst_72 {dimension_numbers = #tpu.dot_dimension_numbers<[1], [0], [0], [1], [0, 0, 1, 1], [], []>} : vector<8x128xbf16>, vector<128x128xbf16>, vector<8x128xf32> -> vector<8x128xf32>
    %c0_73 = arith.constant 0 : index
    %c0_74 = arith.constant 0 : index
    %c0_75 = arith.constant 0 : index
    %64 = vector.load %arg8[%c0_73, %c0_74, %c0_75] : memref<2x1x128xf32, #tpu.memory_space<vmem>>, vector<1x1x128xf32>
    %65 = vector.shape_cast %64 : vector<1x1x128xf32> to vector<1x128xf32>
    %66 = vector.broadcast %65 : vector<1x128xf32> to vector<8x128xf32>
    %67 = arith.addf %63, %66 : vector<8x128xf32>
    %68 = arith.addf %59, %67 : vector<8x128xf32>
    %69 = arith.truncf %68 : vector<8x128xf32> to vector<8x128xbf16>
    %c8_76 = arith.constant 8 : index
    %c0_77 = arith.constant 0 : index
    %70 = vector.load %arg10[%c8_76, %c0_77] : memref<16x128xbf16, #tpu.memory_space<vmem>>, vector<8x128xbf16>
    tpu.vector_store %arg10[%c8_76, %c0_77], %69 {strides = array<i32>} : memref<16x128xbf16, #tpu.memory_space<vmem>>, vector<8x128xbf16>,
    %c1 = arith.constant 1 : index
    %c0_78 = arith.constant 0 : index
    %c0_79 = arith.constant 0 : index
    %71 = vector.load %arg13[%c1, %c0_78, %c0_79] : memref<3x8x128xbf16, #tpu.memory_space<vmem>>, vector<1x8x128xbf16>
    %72 = vector.shape_cast %71 : vector<1x8x128xbf16> to vector<8x128xbf16>
    %c0_80 = arith.constant 0 : index
    %c0_81 = arith.constant 0 : index
    %73 = vector.load %arg10[%c0_80, %c0_81] : memref<16x128xbf16, #tpu.memory_space<vmem>>, vector<8x128xbf16>
    tpu.vector_store %arg10[%c0_80, %c0_81], %72 {strides = array<i32>} : memref<16x128xbf16, #tpu.memory_space<vmem>>, vector<8x128xbf16>,
    %c8_82 = arith.constant 8 : index
    %c0_83 = arith.constant 0 : index
    %74 = vector.load %arg10[%c8_82, %c0_83] : memref<16x128xbf16, #tpu.memory_space<vmem>>, vector<8x128xbf16>
    %c1_84 = arith.constant 1 : index
    %c0_85 = arith.constant 0 : index
    %c0_86 = arith.constant 0 : index
    %75 = vector.load %arg13[%c1_84, %c0_85, %c0_86] : memref<3x8x128xbf16, #tpu.memory_space<vmem>>, vector<1x8x128xbf16>
    %76 = vector.shape_cast %75 : vector<1x8x128xbf16> to vector<8x128xbf16>
    %77 = vector.shape_cast %74 : vector<8x128xbf16> to vector<1x8x128xbf16>
    tpu.vector_store %arg13[%c1_84, %c0_85, %c0_86], %77 {strides = array<i32>} : memref<3x8x128xbf16, #tpu.memory_space<vmem>>, vector<1x8x128xbf16>,
    %c4 = arith.constant 4 : index
    %c0_87 = arith.constant 0 : index
    %78 = vector.load %arg10[%c4, %c0_87] : memref<16x128xbf16, #tpu.memory_space<vmem>>, vector<8x128xbf16>
    %c0_88 = arith.constant 0 : index
    %c0_89 = arith.constant 0 : index
    %79 = vector.load %arg12[%c0_88, %c0_89] : memref<8x384xbf16, #tpu.memory_space<vmem>>, vector<8x128xbf16>
    tpu.vector_store %arg12[%c0_88, %c0_89], %78 {strides = array<i32>} : memref<8x384xbf16, #tpu.memory_space<vmem>>, vector<8x128xbf16>,
    %c6_90 = arith.constant 6 : index
    %c0_91 = arith.constant 0 : index
    %80 = vector.load %arg10[%c6_90, %c0_91] : memref<16x128xbf16, #tpu.memory_space<vmem>>, vector<8x128xbf16>
    %c0_92 = arith.constant 0 : index
    %c128_93 = arith.constant 128 : index
    %81 = vector.load %arg12[%c0_92, %c128_93] : memref<8x384xbf16, #tpu.memory_space<vmem>>, vector<8x128xbf16>
    tpu.vector_store %arg12[%c0_92, %c128_93], %80 {strides = array<i32>} : memref<8x384xbf16, #tpu.memory_space<vmem>>, vector<8x128xbf16>,
    %c8_94 = arith.constant 8 : index
    %c0_95 = arith.constant 0 : index
    %82 = vector.load %arg10[%c8_94, %c0_95] : memref<16x128xbf16, #tpu.memory_space<vmem>>, vector<8x128xbf16>
    %c0_96 = arith.constant 0 : index
    %c256_97 = arith.constant 256 : index
    %83 = vector.load %arg12[%c0_96, %c256_97] : memref<8x384xbf16, #tpu.memory_space<vmem>>, vector<8x128xbf16>
    tpu.vector_store %arg12[%c0_96, %c256_97], %82 {strides = array<i32>} : memref<8x384xbf16, #tpu.memory_space<vmem>>, vector<8x128xbf16>,
    %c0_98 = arith.constant 0 : index
    %c0_99 = arith.constant 0 : index
    %84 = vector.load %arg12[%c0_98, %c0_99] : memref<8x384xbf16, #tpu.memory_space<vmem>>, vector<8x384xbf16>
    %c1_100 = arith.constant 1 : index
    %c0_101 = arith.constant 0 : index
    %c0_102 = arith.constant 0 : index
    %85 = vector.load %arg3[%c1_100, %c0_101, %c0_102] : memref<3x384x128xbf16, #tpu.memory_space<vmem>>, vector<1x384x128xbf16>
    %86 = vector.shape_cast %85 : vector<1x384x128xbf16> to vector<384x128xbf16>
    %cst_103 = arith.constant dense<0.000000e+00> : vector<8x128xf32>
    %87 = tpu.matmul %84, %86, %cst_103 {dimension_numbers = #tpu.dot_dimension_numbers<[1], [0], [0], [1], [0, 0, 1, 1], [], []>} : vector<8x384xbf16>, vector<384x128xbf16>, vector<8x128xf32> -> vector<8x128xf32>
    %c1_104 = arith.constant 1 : index
    %c0_105 = arith.constant 0 : index
    %c0_106 = arith.constant 0 : index
    %88 = vector.load %arg4[%c1_104, %c0_105, %c0_106] : memref<3x1x128xf32, #tpu.memory_space<vmem>>, vector<1x1x128xf32>
    %89 = vector.shape_cast %88 : vector<1x1x128xf32> to vector<1x128xf32>
    %90 = vector.broadcast %89 : vector<1x128xf32> to vector<8x128xf32>
    %91 = arith.addf %87, %90 : vector<8x128xf32>
    %cst_107 = arith.constant 0.000000e+00 : f32
    %92 = vector.broadcast %cst_107 : f32 to vector<8x128xf32>
    %93 = arith.cmpf oge, %91, %92 : vector<8x128xf32>
    %cst_108 = arith.constant 0.00999999977 : f32
    %94 = vector.broadcast %cst_108 : f32 to vector<8x128xf32>
    %95 = arith.mulf %94, %91 : vector<8x128xf32>
    %96 = arith.select %93, %91, %95 : vector<8x128xi1>, vector<8x128xf32>
    %c1_109 = arith.constant 1 : index
    %c0_110 = arith.constant 0 : index
    %c0_111 = arith.constant 0 : index
    %97 = vector.load %arg14[%c1_109, %c0_110, %c0_111] : memref<3x8x128xbf16, #tpu.memory_space<vmem>>, vector<1x8x128xbf16>
    %98 = vector.shape_cast %97 : vector<1x8x128xbf16> to vector<8x128xbf16>
    %c0_112 = arith.constant 0 : index
    %c0_113 = arith.constant 0 : index
    %99 = vector.load %arg11[%c0_112, %c0_113] : memref<16x128xbf16, #tpu.memory_space<vmem>>, vector<8x128xbf16>
    tpu.vector_store %arg11[%c0_112, %c0_113], %98 {strides = array<i32>} : memref<16x128xbf16, #tpu.memory_space<vmem>>, vector<8x128xbf16>,
    %100 = arith.truncf %96 : vector<8x128xf32> to vector<8x128xbf16>
    %c8_114 = arith.constant 8 : index
    %c0_115 = arith.constant 0 : index
    %101 = vector.load %arg11[%c8_114, %c0_115] : memref<16x128xbf16, #tpu.memory_space<vmem>>, vector<8x128xbf16>
    tpu.vector_store %arg11[%c8_114, %c0_115], %100 {strides = array<i32>} : memref<16x128xbf16, #tpu.memory_space<vmem>>, vector<8x128xbf16>,
    %c8_116 = arith.constant 8 : index
    %c0_117 = arith.constant 0 : index
    %102 = vector.load %arg11[%c8_116, %c0_117] : memref<16x128xbf16, #tpu.memory_space<vmem>>, vector<8x128xbf16>
    %c1_118 = arith.constant 1 : index
    %c0_119 = arith.constant 0 : index
    %c0_120 = arith.constant 0 : index
    %103 = vector.load %arg14[%c1_118, %c0_119, %c0_120] : memref<3x8x128xbf16, #tpu.memory_space<vmem>>, vector<1x8x128xbf16>
    %104 = vector.shape_cast %103 : vector<1x8x128xbf16> to vector<8x128xbf16>
    %105 = vector.shape_cast %102 : vector<8x128xbf16> to vector<1x8x128xbf16>
    tpu.vector_store %arg14[%c1_118, %c0_119, %c0_120], %105 {strides = array<i32>} : memref<3x8x128xbf16, #tpu.memory_space<vmem>>, vector<1x8x128xbf16>,
    %c4_121 = arith.constant 4 : index
    %c0_122 = arith.constant 0 : index
    %106 = vector.load %arg11[%c4_121, %c0_122] : memref<16x128xbf16, #tpu.memory_space<vmem>>, vector<8x128xbf16>
    %c0_123 = arith.constant 0 : index
    %c0_124 = arith.constant 0 : index
    %107 = vector.load %arg12[%c0_123, %c0_124] : memref<8x384xbf16, #tpu.memory_space<vmem>>, vector<8x128xbf16>
    tpu.vector_store %arg12[%c0_123, %c0_124], %106 {strides = array<i32>} : memref<8x384xbf16, #tpu.memory_space<vmem>>, vector<8x128xbf16>,
    %c6_125 = arith.constant 6 : index
    %c0_126 = arith.constant 0 : index
    %108 = vector.load %arg11[%c6_125, %c0_126] : memref<16x128xbf16, #tpu.memory_space<vmem>>, vector<8x128xbf16>
    %c0_127 = arith.constant 0 : index
    %c128_128 = arith.constant 128 : index
    %109 = vector.load %arg12[%c0_127, %c128_128] : memref<8x384xbf16, #tpu.memory_space<vmem>>, vector<8x128xbf16>
    tpu.vector_store %arg12[%c0_127, %c128_128], %108 {strides = array<i32>} : memref<8x384xbf16, #tpu.memory_space<vmem>>, vector<8x128xbf16>,
    %c8_129 = arith.constant 8 : index
    %c0_130 = arith.constant 0 : index
    %110 = vector.load %arg11[%c8_129, %c0_130] : memref<16x128xbf16, #tpu.memory_space<vmem>>, vector<8x128xbf16>
    %c0_131 = arith.constant 0 : index
    %c256_132 = arith.constant 256 : index
    %111 = vector.load %arg12[%c0_131, %c256_132] : memref<8x384xbf16, #tpu.memory_space<vmem>>, vector<8x128xbf16>
    tpu.vector_store %arg12[%c0_131, %c256_132], %110 {strides = array<i32>} : memref<8x384xbf16, #tpu.memory_space<vmem>>, vector<8x128xbf16>,
    %c0_133 = arith.constant 0 : index
    %c0_134 = arith.constant 0 : index
    %112 = vector.load %arg12[%c0_133, %c0_134] : memref<8x384xbf16, #tpu.memory_space<vmem>>, vector<8x384xbf16>
    %c1_135 = arith.constant 1 : index
    %c0_136 = arith.constant 0 : index
    %c0_137 = arith.constant 0 : index
    %113 = vector.load %arg5[%c1_135, %c0_136, %c0_137] : memref<3x384x128xbf16, #tpu.memory_space<vmem>>, vector<1x384x128xbf16>
    %114 = vector.shape_cast %113 : vector<1x384x128xbf16> to vector<384x128xbf16>
    %cst_138 = arith.constant dense<0.000000e+00> : vector<8x128xf32>
    %115 = tpu.matmul %112, %114, %cst_138 {dimension_numbers = #tpu.dot_dimension_numbers<[1], [0], [0], [1], [0, 0, 1, 1], [], []>} : vector<8x384xbf16>, vector<384x128xbf16>, vector<8x128xf32> -> vector<8x128xf32>
    %c1_139 = arith.constant 1 : index
    %c0_140 = arith.constant 0 : index
    %c0_141 = arith.constant 0 : index
    %116 = vector.load %arg6[%c1_139, %c0_140, %c0_141] : memref<3x1x128xf32, #tpu.memory_space<vmem>>, vector<1x1x128xf32>
    %117 = vector.shape_cast %116 : vector<1x1x128xf32> to vector<1x128xf32>
    %118 = vector.broadcast %117 : vector<1x128xf32> to vector<8x128xf32>
    %119 = arith.addf %115, %118 : vector<8x128xf32>
    %cst_142 = arith.constant 0.000000e+00 : f32
    %120 = vector.broadcast %cst_142 : f32 to vector<8x128xf32>
    %121 = arith.cmpf oge, %119, %120 : vector<8x128xf32>
    %cst_143 = arith.constant 0.00999999977 : f32
    %122 = vector.broadcast %cst_143 : f32 to vector<8x128xf32>
    %123 = arith.mulf %122, %119 : vector<8x128xf32>
    %124 = arith.select %121, %119, %123 : vector<8x128xi1>, vector<8x128xf32>
    %c8_144 = arith.constant 8 : index
    %c0_145 = arith.constant 0 : index
    %125 = vector.load %arg10[%c8_144, %c0_145] : memref<16x128xbf16, #tpu.memory_space<vmem>>, vector<8x128xbf16>
    %126 = arith.extf %125 : vector<8x128xbf16> to vector<8x128xf32>
    %127 = arith.addf %124, %126 : vector<8x128xf32>
    %128 = arith.truncf %127 : vector<8x128xf32> to vector<8x128xbf16>
    %c8_146 = arith.constant 8 : index
    %c0_147 = arith.constant 0 : index
    %129 = vector.load %arg10[%c8_146, %c0_147] : memref<16x128xbf16, #tpu.memory_space<vmem>>, vector<8x128xbf16>
    tpu.vector_store %arg10[%c8_146, %c0_147], %128 {strides = array<i32>} : memref<16x128xbf16, #tpu.memory_space<vmem>>, vector<8x128xbf16>,
    %c2 = arith.constant 2 : index
    %c0_148 = arith.constant 0 : index
    %c0_149 = arith.constant 0 : index
    %130 = vector.load %arg13[%c2, %c0_148, %c0_149] : memref<3x8x128xbf16, #tpu.memory_space<vmem>>, vector<1x8x128xbf16>
    %131 = vector.shape_cast %130 : vector<1x8x128xbf16> to vector<8x128xbf16>
    %c0_150 = arith.constant 0 : index
    %c0_151 = arith.constant 0 : index
    %132 = vector.load %arg10[%c0_150, %c0_151] : memref<16x128xbf16, #tpu.memory_space<vmem>>, vector<8x128xbf16>
    tpu.vector_store %arg10[%c0_150, %c0_151], %131 {strides = array<i32>} : memref<16x128xbf16, #tpu.memory_space<vmem>>, vector<8x128xbf16>,
    %c8_152 = arith.constant 8 : index
    %c0_153 = arith.constant 0 : index
    %133 = vector.load %arg10[%c8_152, %c0_153] : memref<16x128xbf16, #tpu.memory_space<vmem>>, vector<8x128xbf16>
    %c2_154 = arith.constant 2 : index
    %c0_155 = arith.constant 0 : index
    %c0_156 = arith.constant 0 : index
    %134 = vector.load %arg13[%c2_154, %c0_155, %c0_156] : memref<3x8x128xbf16, #tpu.memory_space<vmem>>, vector<1x8x128xbf16>
    %135 = vector.shape_cast %134 : vector<1x8x128xbf16> to vector<8x128xbf16>
    %136 = vector.shape_cast %133 : vector<8x128xbf16> to vector<1x8x128xbf16>
    tpu.vector_store %arg13[%c2_154, %c0_155, %c0_156], %136 {strides = array<i32>} : memref<3x8x128xbf16, #tpu.memory_space<vmem>>, vector<1x8x128xbf16>,
    %c0_157 = arith.constant 0 : index
    %c0_158 = arith.constant 0 : index
    %137 = vector.load %arg10[%c0_157, %c0_158] : memref<16x128xbf16, #tpu.memory_space<vmem>>, vector<8x128xbf16>
    %c0_159 = arith.constant 0 : index
    %c0_160 = arith.constant 0 : index
    %138 = vector.load %arg12[%c0_159, %c0_160] : memref<8x384xbf16, #tpu.memory_space<vmem>>, vector<8x128xbf16>
    tpu.vector_store %arg12[%c0_159, %c0_160], %137 {strides = array<i32>} : memref<8x384xbf16, #tpu.memory_space<vmem>>, vector<8x128xbf16>,
    %c4_161 = arith.constant 4 : index
    %c0_162 = arith.constant 0 : index
    %139 = vector.load %arg10[%c4_161, %c0_162] : memref<16x128xbf16, #tpu.memory_space<vmem>>, vector<8x128xbf16>
    %c0_163 = arith.constant 0 : index
    %c128_164 = arith.constant 128 : index
    %140 = vector.load %arg12[%c0_163, %c128_164] : memref<8x384xbf16, #tpu.memory_space<vmem>>, vector<8x128xbf16>
    tpu.vector_store %arg12[%c0_163, %c128_164], %139 {strides = array<i32>} : memref<8x384xbf16, #tpu.memory_space<vmem>>, vector<8x128xbf16>,
    %c8_165 = arith.constant 8 : index
    %c0_166 = arith.constant 0 : index
    %141 = vector.load %arg10[%c8_165, %c0_166] : memref<16x128xbf16, #tpu.memory_space<vmem>>, vector<8x128xbf16>
    %c0_167 = arith.constant 0 : index
    %c256_168 = arith.constant 256 : index
    %142 = vector.load %arg12[%c0_167, %c256_168] : memref<8x384xbf16, #tpu.memory_space<vmem>>, vector<8x128xbf16>
    tpu.vector_store %arg12[%c0_167, %c256_168], %141 {strides = array<i32>} : memref<8x384xbf16, #tpu.memory_space<vmem>>, vector<8x128xbf16>,
    %c0_169 = arith.constant 0 : index
    %c0_170 = arith.constant 0 : index
    %143 = vector.load %arg12[%c0_169, %c0_170] : memref<8x384xbf16, #tpu.memory_space<vmem>>, vector<8x384xbf16>
    %c2_171 = arith.constant 2 : index
    %c0_172 = arith.constant 0 : index
    %c0_173 = arith.constant 0 : index
    %144 = vector.load %arg3[%c2_171, %c0_172, %c0_173] : memref<3x384x128xbf16, #tpu.memory_space<vmem>>, vector<1x384x128xbf16>
    %145 = vector.shape_cast %144 : vector<1x384x128xbf16> to vector<384x128xbf16>
    %cst_174 = arith.constant dense<0.000000e+00> : vector<8x128xf32>
    %146 = tpu.matmul %143, %145, %cst_174 {dimension_numbers = #tpu.dot_dimension_numbers<[1], [0], [0], [1], [0, 0, 1, 1], [], []>} : vector<8x384xbf16>, vector<384x128xbf16>, vector<8x128xf32> -> vector<8x128xf32>
    %c2_175 = arith.constant 2 : index
    %c0_176 = arith.constant 0 : index
    %c0_177 = arith.constant 0 : index
    %147 = vector.load %arg4[%c2_175, %c0_176, %c0_177] : memref<3x1x128xf32, #tpu.memory_space<vmem>>, vector<1x1x128xf32>
    %148 = vector.shape_cast %147 : vector<1x1x128xf32> to vector<1x128xf32>
    %149 = vector.broadcast %148 : vector<1x128xf32> to vector<8x128xf32>
    %150 = arith.addf %146, %149 : vector<8x128xf32>
    %cst_178 = arith.constant 0.000000e+00 : f32
    %151 = vector.broadcast %cst_178 : f32 to vector<8x128xf32>
    %152 = arith.cmpf oge, %150, %151 : vector<8x128xf32>
    %cst_179 = arith.constant 0.00999999977 : f32
    %153 = vector.broadcast %cst_179 : f32 to vector<8x128xf32>
    %154 = arith.mulf %153, %150 : vector<8x128xf32>
    %155 = arith.select %152, %150, %154 : vector<8x128xi1>, vector<8x128xf32>
    %c2_180 = arith.constant 2 : index
    %c0_181 = arith.constant 0 : index
    %c0_182 = arith.constant 0 : index
    %156 = vector.load %arg14[%c2_180, %c0_181, %c0_182] : memref<3x8x128xbf16, #tpu.memory_space<vmem>>, vector<1x8x128xbf16>
    %157 = vector.shape_cast %156 : vector<1x8x128xbf16> to vector<8x128xbf16>
    %c0_183 = arith.constant 0 : index
    %c0_184 = arith.constant 0 : index
    %158 = vector.load %arg11[%c0_183, %c0_184] : memref<16x128xbf16, #tpu.memory_space<vmem>>, vector<8x128xbf16>
    tpu.vector_store %arg11[%c0_183, %c0_184], %157 {strides = array<i32>} : memref<16x128xbf16, #tpu.memory_space<vmem>>, vector<8x128xbf16>,
    %159 = arith.truncf %155 : vector<8x128xf32> to vector<8x128xbf16>
    %c8_185 = arith.constant 8 : index
    %c0_186 = arith.constant 0 : index
    %160 = vector.load %arg11[%c8_185, %c0_186] : memref<16x128xbf16, #tpu.memory_space<vmem>>, vector<8x128xbf16>
    tpu.vector_store %arg11[%c8_185, %c0_186], %159 {strides = array<i32>} : memref<16x128xbf16, #tpu.memory_space<vmem>>, vector<8x128xbf16>,
    %c8_187 = arith.constant 8 : index
    %c0_188 = arith.constant 0 : index
    %161 = vector.load %arg11[%c8_187, %c0_188] : memref<16x128xbf16, #tpu.memory_space<vmem>>, vector<8x128xbf16>
    %c2_189 = arith.constant 2 : index
    %c0_190 = arith.constant 0 : index
    %c0_191 = arith.constant 0 : index
    %162 = vector.load %arg14[%c2_189, %c0_190, %c0_191] : memref<3x8x128xbf16, #tpu.memory_space<vmem>>, vector<1x8x128xbf16>
    %163 = vector.shape_cast %162 : vector<1x8x128xbf16> to vector<8x128xbf16>
    %164 = vector.shape_cast %161 : vector<8x128xbf16> to vector<1x8x128xbf16>
    tpu.vector_store %arg14[%c2_189, %c0_190, %c0_191], %164 {strides = array<i32>} : memref<3x8x128xbf16, #tpu.memory_space<vmem>>, vector<1x8x128xbf16>,
    %c0_192 = arith.constant 0 : index
    %c0_193 = arith.constant 0 : index
    %165 = vector.load %arg11[%c0_192, %c0_193] : memref<16x128xbf16, #tpu.memory_space<vmem>>, vector<8x128xbf16>
    %c0_194 = arith.constant 0 : index
    %c0_195 = arith.constant 0 : index
    %166 = vector.load %arg12[%c0_194, %c0_195] : memref<8x384xbf16, #tpu.memory_space<vmem>>, vector<8x128xbf16>
    tpu.vector_store %arg12[%c0_194, %c0_195], %165 {strides = array<i32>} : memref<8x384xbf16, #tpu.memory_space<vmem>>, vector<8x128xbf16>,
    %c4_196 = arith.constant 4 : index
    %c0_197 = arith.constant 0 : index
    %167 = vector.load %arg11[%c4_196, %c0_197] : memref<16x128xbf16, #tpu.memory_space<vmem>>, vector<8x128xbf16>
    %c0_198 = arith.constant 0 : index
    %c128_199 = arith.constant 128 : index
    %168 = vector.load %arg12[%c0_198, %c128_199] : memref<8x384xbf16, #tpu.memory_space<vmem>>, vector<8x128xbf16>
    tpu.vector_store %arg12[%c0_198, %c128_199], %167 {strides = array<i32>} : memref<8x384xbf16, #tpu.memory_space<vmem>>, vector<8x128xbf16>,
    %c8_200 = arith.constant 8 : index
    %c0_201 = arith.constant 0 : index
    %169 = vector.load %arg11[%c8_200, %c0_201] : memref<16x128xbf16, #tpu.memory_space<vmem>>, vector<8x128xbf16>
    %c0_202 = arith.constant 0 : index
    %c256_203 = arith.constant 256 : index
    %170 = vector.load %arg12[%c0_202, %c256_203] : memref<8x384xbf16, #tpu.memory_space<vmem>>, vector<8x128xbf16>
    tpu.vector_store %arg12[%c0_202, %c256_203], %169 {strides = array<i32>} : memref<8x384xbf16, #tpu.memory_space<vmem>>, vector<8x128xbf16>,
    %c0_204 = arith.constant 0 : index
    %c0_205 = arith.constant 0 : index
    %171 = vector.load %arg12[%c0_204, %c0_205] : memref<8x384xbf16, #tpu.memory_space<vmem>>, vector<8x384xbf16>
    %c2_206 = arith.constant 2 : index
    %c0_207 = arith.constant 0 : index
    %c0_208 = arith.constant 0 : index
    %172 = vector.load %arg5[%c2_206, %c0_207, %c0_208] : memref<3x384x128xbf16, #tpu.memory_space<vmem>>, vector<1x384x128xbf16>
    %173 = vector.shape_cast %172 : vector<1x384x128xbf16> to vector<384x128xbf16>
    %cst_209 = arith.constant dense<0.000000e+00> : vector<8x128xf32>
    %174 = tpu.matmul %171, %173, %cst_209 {dimension_numbers = #tpu.dot_dimension_numbers<[1], [0], [0], [1], [0, 0, 1, 1], [], []>} : vector<8x384xbf16>, vector<384x128xbf16>, vector<8x128xf32> -> vector<8x128xf32>
    %c2_210 = arith.constant 2 : index
    %c0_211 = arith.constant 0 : index
    %c0_212 = arith.constant 0 : index
    %175 = vector.load %arg6[%c2_210, %c0_211, %c0_212] : memref<3x1x128xf32, #tpu.memory_space<vmem>>, vector<1x1x128xf32>
    %176 = vector.shape_cast %175 : vector<1x1x128xf32> to vector<1x128xf32>
    %177 = vector.broadcast %176 : vector<1x128xf32> to vector<8x128xf32>
    %178 = arith.addf %174, %177 : vector<8x128xf32>
    %cst_213 = arith.constant 0.000000e+00 : f32
    %179 = vector.broadcast %cst_213 : f32 to vector<8x128xf32>
    %180 = arith.cmpf oge, %178, %179 : vector<8x128xf32>
    %cst_214 = arith.constant 0.00999999977 : f32
    %181 = vector.broadcast %cst_214 : f32 to vector<8x128xf32>
    %182 = arith.mulf %181, %178 : vector<8x128xf32>
    %183 = arith.select %180, %178, %182 : vector<8x128xi1>, vector<8x128xf32>
    %c8_215 = arith.constant 8 : index
    %c0_216 = arith.constant 0 : index
    %184 = vector.load %arg10[%c8_215, %c0_216] : memref<16x128xbf16, #tpu.memory_space<vmem>>, vector<8x128xbf16>
    %c1_217 = arith.constant 1 : index
    %c0_218 = arith.constant 0 : index
    %c0_219 = arith.constant 0 : index
    %185 = vector.load %arg7[%c1_217, %c0_218, %c0_219] : memref<2x128x128xbf16, #tpu.memory_space<vmem>>, vector<1x128x128xbf16>
    %186 = vector.shape_cast %185 : vector<1x128x128xbf16> to vector<128x128xbf16>
    %cst_220 = arith.constant dense<0.000000e+00> : vector<8x128xf32>
    %187 = tpu.matmul %184, %186, %cst_220 {dimension_numbers = #tpu.dot_dimension_numbers<[1], [0], [0], [1], [0, 0, 1, 1], [], []>} : vector<8x128xbf16>, vector<128x128xbf16>, vector<8x128xf32> -> vector<8x128xf32>
    %c1_221 = arith.constant 1 : index
    %c0_222 = arith.constant 0 : index
    %c0_223 = arith.constant 0 : index
    %188 = vector.load %arg8[%c1_221, %c0_222, %c0_223] : memref<2x1x128xf32, #tpu.memory_space<vmem>>, vector<1x1x128xf32>
    %189 = vector.shape_cast %188 : vector<1x1x128xf32> to vector<1x128xf32>
    %190 = vector.broadcast %189 : vector<1x128xf32> to vector<8x128xf32>
    %191 = arith.addf %187, %190 : vector<8x128xf32>
    %192 = arith.addf %183, %191 : vector<8x128xf32>
    %193 = arith.truncf %192 : vector<8x128xf32> to vector<8x128xbf16>
    %c0_224 = arith.constant 0 : index
    %c0_225 = arith.constant 0 : index
    %c0_226 = arith.constant 0 : index
    %194 = vector.load %arg9[%c0_224, %c0_225, %c0_226] : memref<1x8x128xbf16, #tpu.memory_space<vmem>>, vector<1x8x128xbf16>
    %195 = vector.shape_cast %194 : vector<1x8x128xbf16> to vector<8x128xbf16>
    %196 = vector.shape_cast %193 : vector<8x128xbf16> to vector<1x8x128xbf16>
    tpu.vector_store %arg9[%c0_224, %c0_225, %c0_226], %196 {strides = array<i32>} : memref<1x8x128xbf16, #tpu.memory_space<vmem>>, vector<1x8x128xbf16>,
    return
  }
  func.func @transform_0(%arg0: i32, %arg1: i32) -> (i32, i32, i32) {
    %c0_i32 = arith.constant 0 : i32
    %c0_i32_0 = arith.constant 0 : i32
    return %arg0, %arg1, %c0_i32 : i32, i32, i32
  }
  func.func @transform_1(%arg0: i32, %arg1: i32) -> (i32, i32, i32) {
    %c0_i32 = arith.constant 0 : i32
    %c0_i32_0 = arith.constant 0 : i32
    %c0_i32_1 = arith.constant 0 : i32
    %c0_i32_2 = arith.constant 0 : i32
    return %c0_i32, %c0_i32_0, %c0_i32_1 : i32, i32, i32
  }
  func.func @transform_2(%arg0: i32, %arg1: i32) -> (i32, i32, i32) {
    %c0_i32 = arith.constant 0 : i32
    %c0_i32_0 = arith.constant 0 : i32
    %c0_i32_1 = arith.constant 0 : i32
    %c0_i32_2 = arith.constant 0 : i32
    return %c0_i32, %c0_i32_0, %c0_i32_1 : i32, i32, i32
  }
  func.func @transform_3(%arg0: i32, %arg1: i32) -> (i32, i32, i32) {
    %c0_i32 = arith.constant 0 : i32
    %c0_i32_0 = arith.constant 0 : i32
    %c0_i32_1 = arith.constant 0 : i32
    %c0_i32_2 = arith.constant 0 : i32
    return %c0_i32, %c0_i32_0, %c0_i32_1 : i32, i32, i32
  }
  func.func @transform_4(%arg0: i32, %arg1: i32) -> (i32, i32, i32) {
    %c0_i32 = arith.constant 0 : i32
    %c0_i32_0 = arith.constant 0 : i32
    %c0_i32_1 = arith.constant 0 : i32
    %c0_i32_2 = arith.constant 0 : i32
    return %c0_i32, %c0_i32_0, %c0_i32_1 : i32, i32, i32
  }
  func.func @transform_5(%arg0: i32, %arg1: i32) -> (i32, i32, i32) {
    %c0_i32 = arith.constant 0 : i32
    %c0_i32_0 = arith.constant 0 : i32
    %c0_i32_1 = arith.constant 0 : i32
    %c0_i32_2 = arith.constant 0 : i32
    return %c0_i32, %c0_i32_0, %c0_i32_1 : i32, i32, i32
  }
  func.func @transform_6(%arg0: i32, %arg1: i32) -> (i32, i32, i32) {
    %c0_i32 = arith.constant 0 : i32
    %c0_i32_0 = arith.constant 0 : i32
    %c0_i32_1 = arith.constant 0 : i32
    %c0_i32_2 = arith.constant 0 : i32
    return %c0_i32, %c0_i32_0, %c0_i32_1 : i32, i32, i32
  }
  func.func @transform_7(%arg0: i32, %arg1: i32) -> (i32, i32, i32) {
    %c0_i32 = arith.constant 0 : i32
    %c0_i32_0 = arith.constant 0 : i32
    return %arg0, %arg1, %c0_i32 : i32, i32, i32
  }
}

module attributes {stable_mosaic.version = 11 : i64} {
  func.func @_fused_stack_kernel(%arg0: i32, %arg1: i32, %arg2: memref<1x8x128xbf16, #tpu.memory_space<vmem>>, %arg3: memref<3x384x128xbf16, #tpu.memory_space<vmem>>, %arg4: memref<3x1x128xf32, #tpu.memory_space<vmem>>, %arg5: memref<3x384x128xbf16, #tpu.memory_space<vmem>>, %arg6: memref<3x1x128xf32, #tpu.memory_space<vmem>>, %arg7: memref<2x128x128xbf16, #tpu.memory_space<vmem>>, %arg8: memref<2x1x128xf32, #tpu.memory_space<vmem>>, %arg9: memref<1x8x128xbf16, #tpu.memory_space<vmem>>, %arg10: memref<16x128xbf16, #tpu.memory_space<vmem>>, %arg11: memref<16x128xbf16, #tpu.memory_space<vmem>>, %arg12: memref<8x384xbf16, #tpu.memory_space<vmem>>, %arg13: memref<3x8x128xbf16, #tpu.memory_space<vmem>>, %arg14: memref<3x8x128xbf16, #tpu.memory_space<vmem>>) attributes {dimension_semantics = [#tpu.dimension_semantics<parallel>, #tpu.dimension_semantics<arbitrary>], iteration_bounds = array<i64: 2, 2>, scalar_prefetch = 0 : i64, scratch_operands = 5 : i64, tpu.core_type = #tpu.core_type<tc>, window_params = [{transform_indices = @transform_0, window_bounds = array<i64: 1, 8, 128>}, {pipeline_mode = #tpu.pipeline_mode<synchronous>, transform_indices = @transform_1, window_bounds = array<i64: 3, 384, 128>}, {pipeline_mode = #tpu.pipeline_mode<synchronous>, transform_indices = @transform_2, window_bounds = array<i64: 3, 1, 128>}, {pipeline_mode = #tpu.pipeline_mode<synchronous>, transform_indices = @transform_3, window_bounds = array<i64: 3, 384, 128>}, {pipeline_mode = #tpu.pipeline_mode<synchronous>, transform_indices = @transform_4, window_bounds = array<i64: 3, 1, 128>}, {pipeline_mode = #tpu.pipeline_mode<synchronous>, transform_indices = @transform_5, window_bounds = array<i64: 2, 128, 128>}, {pipeline_mode = #tpu.pipeline_mode<synchronous>, transform_indices = @transform_6, window_bounds = array<i64: 2, 1, 128>}, {transform_indices = @transform_7, window_bounds = array<i64: 1, 8, 128>}]} {
    %c0_i32 = arith.constant 0 : i32
    %0 = arith.cmpi eq, %arg1, %c0_i32 : i32
    %1 = arith.extui %0 : i1 to i32
    %c0_i32_0 = arith.constant 0 : i32
    %2 = arith.cmpi ne, %1, %c0_i32_0 : i32
    scf.if %2 {
      %cst_227 = arith.constant 0.000000e+00 : bf16
      %197 = vector.broadcast %cst_227 : bf16 to vector<3x8x128xbf16>
      %c0_228 = arith.constant 0 : index
      %c0_229 = arith.constant 0 : index
      %c0_230 = arith.constant 0 : index
      %198 = vector.load %arg13[%c0_228, %c0_229, %c0_230] : memref<3x8x128xbf16, #tpu.memory_space<vmem>>, vector<3x8x128xbf16>
      tpu.vector_store %arg13[%c0_228, %c0_229, %c0_230], %197 {strides = array<i32>} : memref<3x8x128xbf16, #tpu.memory_space<vmem>>, vector<3x8x128xbf16>,
      %cst_231 = arith.constant 0.000000e+00 : bf16
      %199 = vector.broadcast %cst_231 : bf16 to vector<3x8x128xbf16>
      %c0_232 = arith.constant 0 : index
      %c0_233 = arith.constant 0 : index
      %c0_234 = arith.constant 0 : index
      %200 = vector.load %arg14[%c0_232, %c0_233, %c0_234] : memref<3x8x128xbf16, #tpu.memory_space<vmem>>, vector<3x8x128xbf16>
      tpu.vector_store %arg14[%c0_232, %c0_233, %c0_234], %199 {strides = array<i32>} : memref<3x8x128xbf16, #tpu.memory_space<vmem>>, vector<3x8x128xbf16>,
    } else {
    }
    %c0 = arith.constant 0 : index
    %c0_1 = arith.constant 0 : index
    %c0_2 = arith.constant 0 : index
    %3 = vector.load %arg2[%c0, %c0_1, %c0_2] : memref<1x8x128xbf16, #tpu.memory_space<vmem>>, vector<1x8x128xbf16>
    %4 = vector.shape_cast %3 : vector<1x8x128xbf16> to vector<8x128xbf16>
    %c8 = arith.constant 8 : index
    %c0_3 = arith.constant 0 : index
    %5 = vector.load %arg10[%c8, %c0_3] : memref<16x128xbf16, #tpu.memory_space<vmem>>, vector<8x128xbf16>
    tpu.vector_store %arg10[%c8, %c0_3], %4 {strides = array<i32>} : memref<16x128xbf16, #tpu.memory_space<vmem>>, vector<8x128xbf16>,
    %c0_4 = arith.constant 0 : index
    %c0_5 = arith.constant 0 : index
    %c0_6 = arith.constant 0 : index
    %6 = vector.load %arg13[%c0_4, %c0_5, %c0_6] : memref<3x8x128xbf16, #tpu.memory_space<vmem>>, vector<1x8x128xbf16>
    %7 = vector.shape_cast %6 : vector<1x8x128xbf16> to vector<8x128xbf16>
    %c0_7 = arith.constant 0 : index
    %c0_8 = arith.constant 0 : index
    %8 = vector.load %arg10[%c0_7, %c0_8] : memref<16x128xbf16, #tpu.memory_space<vmem>>, vector<8x128xbf16>
    tpu.vector_store %arg10[%c0_7, %c0_8], %7 {strides = array<i32>} : memref<16x128xbf16, #tpu.memory_space<vmem>>, vector<8x128xbf16>,
    %c8_9 = arith.constant 8 : index
    %c0_10 = arith.constant 0 : index
    %9 = vector.load %arg10[%c8_9, %c0_10] : memref<16x128xbf16, #tpu.memory_space<vmem>>, vector<8x128xbf16>
    %c0_11 = arith.constant 0 : index
    %c0_12 = arith.constant 0 : index
    %c0_13 = arith.constant 0 : index
    %10 = vector.load %arg13[%c0_11, %c0_12, %c0_13] : memref<3x8x128xbf16, #tpu.memory_space<vmem>>, vector<1x8x128xbf16>
    %11 = vector.shape_cast %10 : vector<1x8x128xbf16> to vector<8x128xbf16>
    %12 = vector.shape_cast %9 : vector<8x128xbf16> to vector<1x8x128xbf16>
    tpu.vector_store %arg13[%c0_11, %c0_12, %c0_13], %12 {strides = array<i32>} : memref<3x8x128xbf16, #tpu.memory_space<vmem>>, vector<1x8x128xbf16>,
    %c6 = arith.constant 6 : index
    %c0_14 = arith.constant 0 : index
    %13 = vector.load %arg10[%c6, %c0_14] : memref<16x128xbf16, #tpu.memory_space<vmem>>, vector<8x128xbf16>
    %c0_15 = arith.constant 0 : index
    %c0_16 = arith.constant 0 : index
    %14 = vector.load %arg12[%c0_15, %c0_16] : memref<8x384xbf16, #tpu.memory_space<vmem>>, vector<8x128xbf16>
    tpu.vector_store %arg12[%c0_15, %c0_16], %13 {strides = array<i32>} : memref<8x384xbf16, #tpu.memory_space<vmem>>, vector<8x128xbf16>,
    %c7 = arith.constant 7 : index
    %c0_17 = arith.constant 0 : index
    %15 = vector.load %arg10[%c7, %c0_17] : memref<16x128xbf16, #tpu.memory_space<vmem>>, vector<8x128xbf16>
    %c0_18 = arith.constant 0 : index
    %c128 = arith.constant 128 : index
    %16 = vector.load %arg12[%c0_18, %c128] : memref<8x384xbf16, #tpu.memory_space<vmem>>, vector<8x128xbf16>
    tpu.vector_store %arg12[%c0_18, %c128], %15 {strides = array<i32>} : memref<8x384xbf16, #tpu.memory_space<vmem>>, vector<8x128xbf16>,
    %c8_19 = arith.constant 8 : index
    %c0_20 = arith.constant 0 : index
    %17 = vector.load %arg10[%c8_19, %c0_20] : memref<16x128xbf16, #tpu.memory_space<vmem>>, vector<8x128xbf16>
    %c0_21 = arith.constant 0 : index
    %c256 = arith.constant 256 : index
    %18 = vector.load %arg12[%c0_21, %c256] : memref<8x384xbf16, #tpu.memory_space<vmem>>, vector<8x128xbf16>
    tpu.vector_store %arg12[%c0_21, %c256], %17 {strides = array<i32>} : memref<8x384xbf16, #tpu.memory_space<vmem>>, vector<8x128xbf16>,
    %c0_22 = arith.constant 0 : index
    %c0_23 = arith.constant 0 : index
    %19 = vector.load %arg12[%c0_22, %c0_23] : memref<8x384xbf16, #tpu.memory_space<vmem>>, vector<8x384xbf16>
    %c0_24 = arith.constant 0 : index
    %c0_25 = arith.constant 0 : index
    %c0_26 = arith.constant 0 : index
    %20 = vector.load %arg3[%c0_24, %c0_25, %c0_26] : memref<3x384x128xbf16, #tpu.memory_space<vmem>>, vector<1x384x128xbf16>
    %21 = vector.shape_cast %20 : vector<1x384x128xbf16> to vector<384x128xbf16>
    %cst = arith.constant dense<0.000000e+00> : vector<8x128xf32>
    %22 = tpu.matmul %19, %21, %cst {dimension_numbers = #tpu.dot_dimension_numbers<[1], [0], [0], [1], [0, 0, 1, 1], [], []>} : vector<8x384xbf16>, vector<384x128xbf16>, vector<8x128xf32> -> vector<8x128xf32>
    %c0_27 = arith.constant 0 : index
    %c0_28 = arith.constant 0 : index
    %c0_29 = arith.constant 0 : index
    %23 = vector.load %arg4[%c0_27, %c0_28, %c0_29] : memref<3x1x128xf32, #tpu.memory_space<vmem>>, vector<1x1x128xf32>
    %24 = vector.shape_cast %23 : vector<1x1x128xf32> to vector<1x128xf32>
    %25 = vector.broadcast %24 : vector<1x128xf32> to vector<8x128xf32>
    %26 = arith.addf %22, %25 : vector<8x128xf32>
    %cst_30 = arith.constant 0.000000e+00 : f32
    %27 = vector.broadcast %cst_30 : f32 to vector<8x128xf32>
    %28 = arith.cmpf oge, %26, %27 : vector<8x128xf32>
    %cst_31 = arith.constant 0.00999999977 : f32
    %29 = vector.broadcast %cst_31 : f32 to vector<8x128xf32>
    %30 = arith.mulf %29, %26 : vector<8x128xf32>
    %31 = arith.select %28, %26, %30 : vector<8x128xi1>, vector<8x128xf32>
    %c0_32 = arith.constant 0 : index
    %c0_33 = arith.constant 0 : index
    %c0_34 = arith.constant 0 : index
    %32 = vector.load %arg14[%c0_32, %c0_33, %c0_34] : memref<3x8x128xbf16, #tpu.memory_space<vmem>>, vector<1x8x128xbf16>
    %33 = vector.shape_cast %32 : vector<1x8x128xbf16> to vector<8x128xbf16>
    %c0_35 = arith.constant 0 : index
    %c0_36 = arith.constant 0 : index
    %34 = vector.load %arg11[%c0_35, %c0_36] : memref<16x128xbf16, #tpu.memory_space<vmem>>, vector<8x128xbf16>
    tpu.vector_store %arg11[%c0_35, %c0_36], %33 {strides = array<i32>} : memref<16x128xbf16, #tpu.memory_space<vmem>>, vector<8x128xbf16>,
    %35 = arith.truncf %31 : vector<8x128xf32> to vector<8x128xbf16>
    %c8_37 = arith.constant 8 : index
    %c0_38 = arith.constant 0 : index
    %36 = vector.load %arg11[%c8_37, %c0_38] : memref<16x128xbf16, #tpu.memory_space<vmem>>, vector<8x128xbf16>
    tpu.vector_store %arg11[%c8_37, %c0_38], %35 {strides = array<i32>} : memref<16x128xbf16, #tpu.memory_space<vmem>>, vector<8x128xbf16>,
    %c8_39 = arith.constant 8 : index
    %c0_40 = arith.constant 0 : index
    %37 = vector.load %arg11[%c8_39, %c0_40] : memref<16x128xbf16, #tpu.memory_space<vmem>>, vector<8x128xbf16>
    %c0_41 = arith.constant 0 : index
    %c0_42 = arith.constant 0 : index
    %c0_43 = arith.constant 0 : index
    %38 = vector.load %arg14[%c0_41, %c0_42, %c0_43] : memref<3x8x128xbf16, #tpu.memory_space<vmem>>, vector<1x8x128xbf16>
    %39 = vector.shape_cast %38 : vector<1x8x128xbf16> to vector<8x128xbf16>
    %40 = vector.shape_cast %37 : vector<8x128xbf16> to vector<1x8x128xbf16>
    tpu.vector_store %arg14[%c0_41, %c0_42, %c0_43], %40 {strides = array<i32>} : memref<3x8x128xbf16, #tpu.memory_space<vmem>>, vector<1x8x128xbf16>,
    %c6_44 = arith.constant 6 : index
    %c0_45 = arith.constant 0 : index
    %41 = vector.load %arg11[%c6_44, %c0_45] : memref<16x128xbf16, #tpu.memory_space<vmem>>, vector<8x128xbf16>
    %c0_46 = arith.constant 0 : index
    %c0_47 = arith.constant 0 : index
    %42 = vector.load %arg12[%c0_46, %c0_47] : memref<8x384xbf16, #tpu.memory_space<vmem>>, vector<8x128xbf16>
    tpu.vector_store %arg12[%c0_46, %c0_47], %41 {strides = array<i32>} : memref<8x384xbf16, #tpu.memory_space<vmem>>, vector<8x128xbf16>,
    %c7_48 = arith.constant 7 : index
    %c0_49 = arith.constant 0 : index
    %43 = vector.load %arg11[%c7_48, %c0_49] : memref<16x128xbf16, #tpu.memory_space<vmem>>, vector<8x128xbf16>
    %c0_50 = arith.constant 0 : index
    %c128_51 = arith.constant 128 : index
    %44 = vector.load %arg12[%c0_50, %c128_51] : memref<8x384xbf16, #tpu.memory_space<vmem>>, vector<8x128xbf16>
    tpu.vector_store %arg12[%c0_50, %c128_51], %43 {strides = array<i32>} : memref<8x384xbf16, #tpu.memory_space<vmem>>, vector<8x128xbf16>,
    %c8_52 = arith.constant 8 : index
    %c0_53 = arith.constant 0 : index
    %45 = vector.load %arg11[%c8_52, %c0_53] : memref<16x128xbf16, #tpu.memory_space<vmem>>, vector<8x128xbf16>
    %c0_54 = arith.constant 0 : index
    %c256_55 = arith.constant 256 : index
    %46 = vector.load %arg12[%c0_54, %c256_55] : memref<8x384xbf16, #tpu.memory_space<vmem>>, vector<8x128xbf16>
    tpu.vector_store %arg12[%c0_54, %c256_55], %45 {strides = array<i32>} : memref<8x384xbf16, #tpu.memory_space<vmem>>, vector<8x128xbf16>,
    %c0_56 = arith.constant 0 : index
    %c0_57 = arith.constant 0 : index
    %47 = vector.load %arg12[%c0_56, %c0_57] : memref<8x384xbf16, #tpu.memory_space<vmem>>, vector<8x384xbf16>
    %c0_58 = arith.constant 0 : index
    %c0_59 = arith.constant 0 : index
    %c0_60 = arith.constant 0 : index
    %48 = vector.load %arg5[%c0_58, %c0_59, %c0_60] : memref<3x384x128xbf16, #tpu.memory_space<vmem>>, vector<1x384x128xbf16>
    %49 = vector.shape_cast %48 : vector<1x384x128xbf16> to vector<384x128xbf16>
    %cst_61 = arith.constant dense<0.000000e+00> : vector<8x128xf32>
    %50 = tpu.matmul %47, %49, %cst_61 {dimension_numbers = #tpu.dot_dimension_numbers<[1], [0], [0], [1], [0, 0, 1, 1], [], []>} : vector<8x384xbf16>, vector<384x128xbf16>, vector<8x128xf32> -> vector<8x128xf32>
    %c0_62 = arith.constant 0 : index
    %c0_63 = arith.constant 0 : index
    %c0_64 = arith.constant 0 : index
    %51 = vector.load %arg6[%c0_62, %c0_63, %c0_64] : memref<3x1x128xf32, #tpu.memory_space<vmem>>, vector<1x1x128xf32>
    %52 = vector.shape_cast %51 : vector<1x1x128xf32> to vector<1x128xf32>
    %53 = vector.broadcast %52 : vector<1x128xf32> to vector<8x128xf32>
    %54 = arith.addf %50, %53 : vector<8x128xf32>
    %cst_65 = arith.constant 0.000000e+00 : f32
    %55 = vector.broadcast %cst_65 : f32 to vector<8x128xf32>
    %56 = arith.cmpf oge, %54, %55 : vector<8x128xf32>
    %cst_66 = arith.constant 0.00999999977 : f32
    %57 = vector.broadcast %cst_66 : f32 to vector<8x128xf32>
    %58 = arith.mulf %57, %54 : vector<8x128xf32>
    %59 = arith.select %56, %54, %58 : vector<8x128xi1>, vector<8x128xf32>
    %c8_67 = arith.constant 8 : index
    %c0_68 = arith.constant 0 : index
    %60 = vector.load %arg10[%c8_67, %c0_68] : memref<16x128xbf16, #tpu.memory_space<vmem>>, vector<8x128xbf16>
    %c0_69 = arith.constant 0 : index
    %c0_70 = arith.constant 0 : index
    %c0_71 = arith.constant 0 : index
    %61 = vector.load %arg7[%c0_69, %c0_70, %c0_71] : memref<2x128x128xbf16, #tpu.memory_space<vmem>>, vector<1x128x128xbf16>
    %62 = vector.shape_cast %61 : vector<1x128x128xbf16> to vector<128x128xbf16>
    %cst_72 = arith.constant dense<0.000000e+00> : vector<8x128xf32>
    %63 = tpu.matmul %60, %62, %cst_72 {dimension_numbers = #tpu.dot_dimension_numbers<[1], [0], [0], [1], [0, 0, 1, 1], [], []>} : vector<8x128xbf16>, vector<128x128xbf16>, vector<8x128xf32> -> vector<8x128xf32>
    %c0_73 = arith.constant 0 : index
    %c0_74 = arith.constant 0 : index
    %c0_75 = arith.constant 0 : index
    %64 = vector.load %arg8[%c0_73, %c0_74, %c0_75] : memref<2x1x128xf32, #tpu.memory_space<vmem>>, vector<1x1x128xf32>
    %65 = vector.shape_cast %64 : vector<1x1x128xf32> to vector<1x128xf32>
    %66 = vector.broadcast %65 : vector<1x128xf32> to vector<8x128xf32>
    %67 = arith.addf %63, %66 : vector<8x128xf32>
    %68 = arith.addf %59, %67 : vector<8x128xf32>
    %69 = arith.truncf %68 : vector<8x128xf32> to vector<8x128xbf16>
    %c8_76 = arith.constant 8 : index
    %c0_77 = arith.constant 0 : index
    %70 = vector.load %arg10[%c8_76, %c0_77] : memref<16x128xbf16, #tpu.memory_space<vmem>>, vector<8x128xbf16>
    tpu.vector_store %arg10[%c8_76, %c0_77], %69 {strides = array<i32>} : memref<16x128xbf16, #tpu.memory_space<vmem>>, vector<8x128xbf16>,
    %c1 = arith.constant 1 : index
    %c0_78 = arith.constant 0 : index
    %c0_79 = arith.constant 0 : index
    %71 = vector.load %arg13[%c1, %c0_78, %c0_79] : memref<3x8x128xbf16, #tpu.memory_space<vmem>>, vector<1x8x128xbf16>
    %72 = vector.shape_cast %71 : vector<1x8x128xbf16> to vector<8x128xbf16>
    %c0_80 = arith.constant 0 : index
    %c0_81 = arith.constant 0 : index
    %73 = vector.load %arg10[%c0_80, %c0_81] : memref<16x128xbf16, #tpu.memory_space<vmem>>, vector<8x128xbf16>
    tpu.vector_store %arg10[%c0_80, %c0_81], %72 {strides = array<i32>} : memref<16x128xbf16, #tpu.memory_space<vmem>>, vector<8x128xbf16>,
    %c8_82 = arith.constant 8 : index
    %c0_83 = arith.constant 0 : index
    %74 = vector.load %arg10[%c8_82, %c0_83] : memref<16x128xbf16, #tpu.memory_space<vmem>>, vector<8x128xbf16>
    %c1_84 = arith.constant 1 : index
    %c0_85 = arith.constant 0 : index
    %c0_86 = arith.constant 0 : index
    %75 = vector.load %arg13[%c1_84, %c0_85, %c0_86] : memref<3x8x128xbf16, #tpu.memory_space<vmem>>, vector<1x8x128xbf16>
    %76 = vector.shape_cast %75 : vector<1x8x128xbf16> to vector<8x128xbf16>
    %77 = vector.shape_cast %74 : vector<8x128xbf16> to vector<1x8x128xbf16>
    tpu.vector_store %arg13[%c1_84, %c0_85, %c0_86], %77 {strides = array<i32>} : memref<3x8x128xbf16, #tpu.memory_space<vmem>>, vector<1x8x128xbf16>,
    %c4 = arith.constant 4 : index
    %c0_87 = arith.constant 0 : index
    %78 = vector.load %arg10[%c4, %c0_87] : memref<16x128xbf16, #tpu.memory_space<vmem>>, vector<8x128xbf16>
    %c0_88 = arith.constant 0 : index
    %c0_89 = arith.constant 0 : index
    %79 = vector.load %arg12[%c0_88, %c0_89] : memref<8x384xbf16, #tpu.memory_space<vmem>>, vector<8x128xbf16>
    tpu.vector_store %arg12[%c0_88, %c0_89], %78 {strides = array<i32>} : memref<8x384xbf16, #tpu.memory_space<vmem>>, vector<8x128xbf16>,
    %c6_90 = arith.constant 6 : index
    %c0_91 = arith.constant 0 : index
    %80 = vector.load %arg10[%c6_90, %c0_91] : memref<16x128xbf16, #tpu.memory_space<vmem>>, vector<8x128xbf16>
    %c0_92 = arith.constant 0 : index
    %c128_93 = arith.constant 128 : index
    %81 = vector.load %arg12[%c0_92, %c128_93] : memref<8x384xbf16, #tpu.memory_space<vmem>>, vector<8x128xbf16>
    tpu.vector_store %arg12[%c0_92, %c128_93], %80 {strides = array<i32>} : memref<8x384xbf16, #tpu.memory_space<vmem>>, vector<8x128xbf16>,
    %c8_94 = arith.constant 8 : index
    %c0_95 = arith.constant 0 : index
    %82 = vector.load %arg10[%c8_94, %c0_95] : memref<16x128xbf16, #tpu.memory_space<vmem>>, vector<8x128xbf16>
    %c0_96 = arith.constant 0 : index
    %c256_97 = arith.constant 256 : index
    %83 = vector.load %arg12[%c0_96, %c256_97] : memref<8x384xbf16, #tpu.memory_space<vmem>>, vector<8x128xbf16>
    tpu.vector_store %arg12[%c0_96, %c256_97], %82 {strides = array<i32>} : memref<8x384xbf16, #tpu.memory_space<vmem>>, vector<8x128xbf16>,
    %c0_98 = arith.constant 0 : index
    %c0_99 = arith.constant 0 : index
    %84 = vector.load %arg12[%c0_98, %c0_99] : memref<8x384xbf16, #tpu.memory_space<vmem>>, vector<8x384xbf16>
    %c1_100 = arith.constant 1 : index
    %c0_101 = arith.constant 0 : index
    %c0_102 = arith.constant 0 : index
    %85 = vector.load %arg3[%c1_100, %c0_101, %c0_102] : memref<3x384x128xbf16, #tpu.memory_space<vmem>>, vector<1x384x128xbf16>
    %86 = vector.shape_cast %85 : vector<1x384x128xbf16> to vector<384x128xbf16>
    %cst_103 = arith.constant dense<0.000000e+00> : vector<8x128xf32>
    %87 = tpu.matmul %84, %86, %cst_103 {dimension_numbers = #tpu.dot_dimension_numbers<[1], [0], [0], [1], [0, 0, 1, 1], [], []>} : vector<8x384xbf16>, vector<384x128xbf16>, vector<8x128xf32> -> vector<8x128xf32>
    %c1_104 = arith.constant 1 : index
    %c0_105 = arith.constant 0 : index
    %c0_106 = arith.constant 0 : index
    %88 = vector.load %arg4[%c1_104, %c0_105, %c0_106] : memref<3x1x128xf32, #tpu.memory_space<vmem>>, vector<1x1x128xf32>
    %89 = vector.shape_cast %88 : vector<1x1x128xf32> to vector<1x128xf32>
    %90 = vector.broadcast %89 : vector<1x128xf32> to vector<8x128xf32>
    %91 = arith.addf %87, %90 : vector<8x128xf32>
    %cst_107 = arith.constant 0.000000e+00 : f32
    %92 = vector.broadcast %cst_107 : f32 to vector<8x128xf32>
    %93 = arith.cmpf oge, %91, %92 : vector<8x128xf32>
    %cst_108 = arith.constant 0.00999999977 : f32
    %94 = vector.broadcast %cst_108 : f32 to vector<8x128xf32>
    %95 = arith.mulf %94, %91 : vector<8x128xf32>
    %96 = arith.select %93, %91, %95 : vector<8x128xi1>, vector<8x128xf32>
    %c1_109 = arith.constant 1 : index
    %c0_110 = arith.constant 0 : index
    %c0_111 = arith.constant 0 : index
    %97 = vector.load %arg14[%c1_109, %c0_110, %c0_111] : memref<3x8x128xbf16, #tpu.memory_space<vmem>>, vector<1x8x128xbf16>
    %98 = vector.shape_cast %97 : vector<1x8x128xbf16> to vector<8x128xbf16>
    %c0_112 = arith.constant 0 : index
    %c0_113 = arith.constant 0 : index
    %99 = vector.load %arg11[%c0_112, %c0_113] : memref<16x128xbf16, #tpu.memory_space<vmem>>, vector<8x128xbf16>
    tpu.vector_store %arg11[%c0_112, %c0_113], %98 {strides = array<i32>} : memref<16x128xbf16, #tpu.memory_space<vmem>>, vector<8x128xbf16>,
    %100 = arith.truncf %96 : vector<8x128xf32> to vector<8x128xbf16>
    %c8_114 = arith.constant 8 : index
    %c0_115 = arith.constant 0 : index
    %101 = vector.load %arg11[%c8_114, %c0_115] : memref<16x128xbf16, #tpu.memory_space<vmem>>, vector<8x128xbf16>
    tpu.vector_store %arg11[%c8_114, %c0_115], %100 {strides = array<i32>} : memref<16x128xbf16, #tpu.memory_space<vmem>>, vector<8x128xbf16>,
    %c8_116 = arith.constant 8 : index
    %c0_117 = arith.constant 0 : index
    %102 = vector.load %arg11[%c8_116, %c0_117] : memref<16x128xbf16, #tpu.memory_space<vmem>>, vector<8x128xbf16>
    %c1_118 = arith.constant 1 : index
    %c0_119 = arith.constant 0 : index
    %c0_120 = arith.constant 0 : index
    %103 = vector.load %arg14[%c1_118, %c0_119, %c0_120] : memref<3x8x128xbf16, #tpu.memory_space<vmem>>, vector<1x8x128xbf16>
    %104 = vector.shape_cast %103 : vector<1x8x128xbf16> to vector<8x128xbf16>
    %105 = vector.shape_cast %102 : vector<8x128xbf16> to vector<1x8x128xbf16>
    tpu.vector_store %arg14[%c1_118, %c0_119, %c0_120], %105 {strides = array<i32>} : memref<3x8x128xbf16, #tpu.memory_space<vmem>>, vector<1x8x128xbf16>,
    %c4_121 = arith.constant 4 : index
    %c0_122 = arith.constant 0 : index
    %106 = vector.load %arg11[%c4_121, %c0_122] : memref<16x128xbf16, #tpu.memory_space<vmem>>, vector<8x128xbf16>
    %c0_123 = arith.constant 0 : index
    %c0_124 = arith.constant 0 : index
    %107 = vector.load %arg12[%c0_123, %c0_124] : memref<8x384xbf16, #tpu.memory_space<vmem>>, vector<8x128xbf16>
    tpu.vector_store %arg12[%c0_123, %c0_124], %106 {strides = array<i32>} : memref<8x384xbf16, #tpu.memory_space<vmem>>, vector<8x128xbf16>,
    %c6_125 = arith.constant 6 : index
    %c0_126 = arith.constant 0 : index
    %108 = vector.load %arg11[%c6_125, %c0_126] : memref<16x128xbf16, #tpu.memory_space<vmem>>, vector<8x128xbf16>
    %c0_127 = arith.constant 0 : index
    %c128_128 = arith.constant 128 : index
    %109 = vector.load %arg12[%c0_127, %c128_128] : memref<8x384xbf16, #tpu.memory_space<vmem>>, vector<8x128xbf16>
    tpu.vector_store %arg12[%c0_127, %c128_128], %108 {strides = array<i32>} : memref<8x384xbf16, #tpu.memory_space<vmem>>, vector<8x128xbf16>,
    %c8_129 = arith.constant 8 : index
    %c0_130 = arith.constant 0 : index
    %110 = vector.load %arg11[%c8_129, %c0_130] : memref<16x128xbf16, #tpu.memory_space<vmem>>, vector<8x128xbf16>
    %c0_131 = arith.constant 0 : index
    %c256_132 = arith.constant 256 : index
    %111 = vector.load %arg12[%c0_131, %c256_132] : memref<8x384xbf16, #tpu.memory_space<vmem>>, vector<8x128xbf16>
    tpu.vector_store %arg12[%c0_131, %c256_132], %110 {strides = array<i32>} : memref<8x384xbf16, #tpu.memory_space<vmem>>, vector<8x128xbf16>,
    %c0_133 = arith.constant 0 : index
    %c0_134 = arith.constant 0 : index
    %112 = vector.load %arg12[%c0_133, %c0_134] : memref<8x384xbf16, #tpu.memory_space<vmem>>, vector<8x384xbf16>
    %c1_135 = arith.constant 1 : index
    %c0_136 = arith.constant 0 : index
    %c0_137 = arith.constant 0 : index
    %113 = vector.load %arg5[%c1_135, %c0_136, %c0_137] : memref<3x384x128xbf16, #tpu.memory_space<vmem>>, vector<1x384x128xbf16>
    %114 = vector.shape_cast %113 : vector<1x384x128xbf16> to vector<384x128xbf16>
    %cst_138 = arith.constant dense<0.000000e+00> : vector<8x128xf32>
    %115 = tpu.matmul %112, %114, %cst_138 {dimension_numbers = #tpu.dot_dimension_numbers<[1], [0], [0], [1], [0, 0, 1, 1], [], []>} : vector<8x384xbf16>, vector<384x128xbf16>, vector<8x128xf32> -> vector<8x128xf32>
    %c1_139 = arith.constant 1 : index
    %c0_140 = arith.constant 0 : index
    %c0_141 = arith.constant 0 : index
    %116 = vector.load %arg6[%c1_139, %c0_140, %c0_141] : memref<3x1x128xf32, #tpu.memory_space<vmem>>, vector<1x1x128xf32>
    %117 = vector.shape_cast %116 : vector<1x1x128xf32> to vector<1x128xf32>
    %118 = vector.broadcast %117 : vector<1x128xf32> to vector<8x128xf32>
    %119 = arith.addf %115, %118 : vector<8x128xf32>
    %cst_142 = arith.constant 0.000000e+00 : f32
    %120 = vector.broadcast %cst_142 : f32 to vector<8x128xf32>
    %121 = arith.cmpf oge, %119, %120 : vector<8x128xf32>
    %cst_143 = arith.constant 0.00999999977 : f32
    %122 = vector.broadcast %cst_143 : f32 to vector<8x128xf32>
    %123 = arith.mulf %122, %119 : vector<8x128xf32>
    %124 = arith.select %121, %119, %123 : vector<8x128xi1>, vector<8x128xf32>
    %c8_144 = arith.constant 8 : index
    %c0_145 = arith.constant 0 : index
    %125 = vector.load %arg10[%c8_144, %c0_145] : memref<16x128xbf16, #tpu.memory_space<vmem>>, vector<8x128xbf16>
    %126 = arith.extf %125 : vector<8x128xbf16> to vector<8x128xf32>
    %127 = arith.addf %124, %126 : vector<8x128xf32>
    %128 = arith.truncf %127 : vector<8x128xf32> to vector<8x128xbf16>
    %c8_146 = arith.constant 8 : index
    %c0_147 = arith.constant 0 : index
    %129 = vector.load %arg10[%c8_146, %c0_147] : memref<16x128xbf16, #tpu.memory_space<vmem>>, vector<8x128xbf16>
    tpu.vector_store %arg10[%c8_146, %c0_147], %128 {strides = array<i32>} : memref<16x128xbf16, #tpu.memory_space<vmem>>, vector<8x128xbf16>,
    %c2 = arith.constant 2 : index
    %c0_148 = arith.constant 0 : index
    %c0_149 = arith.constant 0 : index
    %130 = vector.load %arg13[%c2, %c0_148, %c0_149] : memref<3x8x128xbf16, #tpu.memory_space<vmem>>, vector<1x8x128xbf16>
    %131 = vector.shape_cast %130 : vector<1x8x128xbf16> to vector<8x128xbf16>
    %c0_150 = arith.constant 0 : index
    %c0_151 = arith.constant 0 : index
    %132 = vector.load %arg10[%c0_150, %c0_151] : memref<16x128xbf16, #tpu.memory_space<vmem>>, vector<8x128xbf16>
    tpu.vector_store %arg10[%c0_150, %c0_151], %131 {strides = array<i32>} : memref<16x128xbf16, #tpu.memory_space<vmem>>, vector<8x128xbf16>,
    %c8_152 = arith.constant 8 : index
    %c0_153 = arith.constant 0 : index
    %133 = vector.load %arg10[%c8_152, %c0_153] : memref<16x128xbf16, #tpu.memory_space<vmem>>, vector<8x128xbf16>
    %c2_154 = arith.constant 2 : index
    %c0_155 = arith.constant 0 : index
    %c0_156 = arith.constant 0 : index
    %134 = vector.load %arg13[%c2_154, %c0_155, %c0_156] : memref<3x8x128xbf16, #tpu.memory_space<vmem>>, vector<1x8x128xbf16>
    %135 = vector.shape_cast %134 : vector<1x8x128xbf16> to vector<8x128xbf16>
    %136 = vector.shape_cast %133 : vector<8x128xbf16> to vector<1x8x128xbf16>
    tpu.vector_store %arg13[%c2_154, %c0_155, %c0_156], %136 {strides = array<i32>} : memref<3x8x128xbf16, #tpu.memory_space<vmem>>, vector<1x8x128xbf16>,
    %c0_157 = arith.constant 0 : index
    %c0_158 = arith.constant 0 : index
    %137 = vector.load %arg10[%c0_157, %c0_158] : memref<16x128xbf16, #tpu.memory_space<vmem>>, vector<8x128xbf16>
    %c0_159 = arith.constant 0 : index
    %c0_160 = arith.constant 0 : index
    %138 = vector.load %arg12[%c0_159, %c0_160] : memref<8x384xbf16, #tpu.memory_space<vmem>>, vector<8x128xbf16>
    tpu.vector_store %arg12[%c0_159, %c0_160], %137 {strides = array<i32>} : memref<8x384xbf16, #tpu.memory_space<vmem>>, vector<8x128xbf16>,
    %c4_161 = arith.constant 4 : index
    %c0_162 = arith.constant 0 : index
    %139 = vector.load %arg10[%c4_161, %c0_162] : memref<16x128xbf16, #tpu.memory_space<vmem>>, vector<8x128xbf16>
    %c0_163 = arith.constant 0 : index
    %c128_164 = arith.constant 128 : index
    %140 = vector.load %arg12[%c0_163, %c128_164] : memref<8x384xbf16, #tpu.memory_space<vmem>>, vector<8x128xbf16>
    tpu.vector_store %arg12[%c0_163, %c128_164], %139 {strides = array<i32>} : memref<8x384xbf16, #tpu.memory_space<vmem>>, vector<8x128xbf16>,
    %c8_165 = arith.constant 8 : index
    %c0_166 = arith.constant 0 : index
    %141 = vector.load %arg10[%c8_165, %c0_166] : memref<16x128xbf16, #tpu.memory_space<vmem>>, vector<8x128xbf16>
    %c0_167 = arith.constant 0 : index
    %c256_168 = arith.constant 256 : index
    %142 = vector.load %arg12[%c0_167, %c256_168] : memref<8x384xbf16, #tpu.memory_space<vmem>>, vector<8x128xbf16>
    tpu.vector_store %arg12[%c0_167, %c256_168], %141 {strides = array<i32>} : memref<8x384xbf16, #tpu.memory_space<vmem>>, vector<8x128xbf16>,
    %c0_169 = arith.constant 0 : index
    %c0_170 = arith.constant 0 : index
    %143 = vector.load %arg12[%c0_169, %c0_170] : memref<8x384xbf16, #tpu.memory_space<vmem>>, vector<8x384xbf16>
    %c2_171 = arith.constant 2 : index
    %c0_172 = arith.constant 0 : index
    %c0_173 = arith.constant 0 : index
    %144 = vector.load %arg3[%c2_171, %c0_172, %c0_173] : memref<3x384x128xbf16, #tpu.memory_space<vmem>>, vector<1x384x128xbf16>
    %145 = vector.shape_cast %144 : vector<1x384x128xbf16> to vector<384x128xbf16>
    %cst_174 = arith.constant dense<0.000000e+00> : vector<8x128xf32>
    %146 = tpu.matmul %143, %145, %cst_174 {dimension_numbers = #tpu.dot_dimension_numbers<[1], [0], [0], [1], [0, 0, 1, 1], [], []>} : vector<8x384xbf16>, vector<384x128xbf16>, vector<8x128xf32> -> vector<8x128xf32>
    %c2_175 = arith.constant 2 : index
    %c0_176 = arith.constant 0 : index
    %c0_177 = arith.constant 0 : index
    %147 = vector.load %arg4[%c2_175, %c0_176, %c0_177] : memref<3x1x128xf32, #tpu.memory_space<vmem>>, vector<1x1x128xf32>
    %148 = vector.shape_cast %147 : vector<1x1x128xf32> to vector<1x128xf32>
    %149 = vector.broadcast %148 : vector<1x128xf32> to vector<8x128xf32>
    %150 = arith.addf %146, %149 : vector<8x128xf32>
    %cst_178 = arith.constant 0.000000e+00 : f32
    %151 = vector.broadcast %cst_178 : f32 to vector<8x128xf32>
    %152 = arith.cmpf oge, %150, %151 : vector<8x128xf32>
    %cst_179 = arith.constant 0.00999999977 : f32
    %153 = vector.broadcast %cst_179 : f32 to vector<8x128xf32>
    %154 = arith.mulf %153, %150 : vector<8x128xf32>
    %155 = arith.select %152, %150, %154 : vector<8x128xi1>, vector<8x128xf32>
    %c2_180 = arith.constant 2 : index
    %c0_181 = arith.constant 0 : index
    %c0_182 = arith.constant 0 : index
    %156 = vector.load %arg14[%c2_180, %c0_181, %c0_182] : memref<3x8x128xbf16, #tpu.memory_space<vmem>>, vector<1x8x128xbf16>
    %157 = vector.shape_cast %156 : vector<1x8x128xbf16> to vector<8x128xbf16>
    %c0_183 = arith.constant 0 : index
    %c0_184 = arith.constant 0 : index
    %158 = vector.load %arg11[%c0_183, %c0_184] : memref<16x128xbf16, #tpu.memory_space<vmem>>, vector<8x128xbf16>
    tpu.vector_store %arg11[%c0_183, %c0_184], %157 {strides = array<i32>} : memref<16x128xbf16, #tpu.memory_space<vmem>>, vector<8x128xbf16>,
    %159 = arith.truncf %155 : vector<8x128xf32> to vector<8x128xbf16>
    %c8_185 = arith.constant 8 : index
    %c0_186 = arith.constant 0 : index
    %160 = vector.load %arg11[%c8_185, %c0_186] : memref<16x128xbf16, #tpu.memory_space<vmem>>, vector<8x128xbf16>
    tpu.vector_store %arg11[%c8_185, %c0_186], %159 {strides = array<i32>} : memref<16x128xbf16, #tpu.memory_space<vmem>>, vector<8x128xbf16>,
    %c8_187 = arith.constant 8 : index
    %c0_188 = arith.constant 0 : index
    %161 = vector.load %arg11[%c8_187, %c0_188] : memref<16x128xbf16, #tpu.memory_space<vmem>>, vector<8x128xbf16>
    %c2_189 = arith.constant 2 : index
    %c0_190 = arith.constant 0 : index
    %c0_191 = arith.constant 0 : index
    %162 = vector.load %arg14[%c2_189, %c0_190, %c0_191] : memref<3x8x128xbf16, #tpu.memory_space<vmem>>, vector<1x8x128xbf16>
    %163 = vector.shape_cast %162 : vector<1x8x128xbf16> to vector<8x128xbf16>
    %164 = vector.shape_cast %161 : vector<8x128xbf16> to vector<1x8x128xbf16>
    tpu.vector_store %arg14[%c2_189, %c0_190, %c0_191], %164 {strides = array<i32>} : memref<3x8x128xbf16, #tpu.memory_space<vmem>>, vector<1x8x128xbf16>,
    %c0_192 = arith.constant 0 : index
    %c0_193 = arith.constant 0 : index
    %165 = vector.load %arg11[%c0_192, %c0_193] : memref<16x128xbf16, #tpu.memory_space<vmem>>, vector<8x128xbf16>
    %c0_194 = arith.constant 0 : index
    %c0_195 = arith.constant 0 : index
    %166 = vector.load %arg12[%c0_194, %c0_195] : memref<8x384xbf16, #tpu.memory_space<vmem>>, vector<8x128xbf16>
    tpu.vector_store %arg12[%c0_194, %c0_195], %165 {strides = array<i32>} : memref<8x384xbf16, #tpu.memory_space<vmem>>, vector<8x128xbf16>,
    %c4_196 = arith.constant 4 : index
    %c0_197 = arith.constant 0 : index
    %167 = vector.load %arg11[%c4_196, %c0_197] : memref<16x128xbf16, #tpu.memory_space<vmem>>, vector<8x128xbf16>
    %c0_198 = arith.constant 0 : index
    %c128_199 = arith.constant 128 : index
    %168 = vector.load %arg12[%c0_198, %c128_199] : memref<8x384xbf16, #tpu.memory_space<vmem>>, vector<8x128xbf16>
    tpu.vector_store %arg12[%c0_198, %c128_199], %167 {strides = array<i32>} : memref<8x384xbf16, #tpu.memory_space<vmem>>, vector<8x128xbf16>,
    %c8_200 = arith.constant 8 : index
    %c0_201 = arith.constant 0 : index
    %169 = vector.load %arg11[%c8_200, %c0_201] : memref<16x128xbf16, #tpu.memory_space<vmem>>, vector<8x128xbf16>
    %c0_202 = arith.constant 0 : index
    %c256_203 = arith.constant 256 : index
    %170 = vector.load %arg12[%c0_202, %c256_203] : memref<8x384xbf16, #tpu.memory_space<vmem>>, vector<8x128xbf16>
    tpu.vector_store %arg12[%c0_202, %c256_203], %169 {strides = array<i32>} : memref<8x384xbf16, #tpu.memory_space<vmem>>, vector<8x128xbf16>,
    %c0_204 = arith.constant 0 : index
    %c0_205 = arith.constant 0 : index
    %171 = vector.load %arg12[%c0_204, %c0_205] : memref<8x384xbf16, #tpu.memory_space<vmem>>, vector<8x384xbf16>
    %c2_206 = arith.constant 2 : index
    %c0_207 = arith.constant 0 : index
    %c0_208 = arith.constant 0 : index
    %172 = vector.load %arg5[%c2_206, %c0_207, %c0_208] : memref<3x384x128xbf16, #tpu.memory_space<vmem>>, vector<1x384x128xbf16>
    %173 = vector.shape_cast %172 : vector<1x384x128xbf16> to vector<384x128xbf16>
    %cst_209 = arith.constant dense<0.000000e+00> : vector<8x128xf32>
    %174 = tpu.matmul %171, %173, %cst_209 {dimension_numbers = #tpu.dot_dimension_numbers<[1], [0], [0], [1], [0, 0, 1, 1], [], []>} : vector<8x384xbf16>, vector<384x128xbf16>, vector<8x128xf32> -> vector<8x128xf32>
    %c2_210 = arith.constant 2 : index
    %c0_211 = arith.constant 0 : index
    %c0_212 = arith.constant 0 : index
    %175 = vector.load %arg6[%c2_210, %c0_211, %c0_212] : memref<3x1x128xf32, #tpu.memory_space<vmem>>, vector<1x1x128xf32>
    %176 = vector.shape_cast %175 : vector<1x1x128xf32> to vector<1x128xf32>
    %177 = vector.broadcast %176 : vector<1x128xf32> to vector<8x128xf32>
    %178 = arith.addf %174, %177 : vector<8x128xf32>
    %cst_213 = arith.constant 0.000000e+00 : f32
    %179 = vector.broadcast %cst_213 : f32 to vector<8x128xf32>
    %180 = arith.cmpf oge, %178, %179 : vector<8x128xf32>
    %cst_214 = arith.constant 0.00999999977 : f32
    %181 = vector.broadcast %cst_214 : f32 to vector<8x128xf32>
    %182 = arith.mulf %181, %178 : vector<8x128xf32>
    %183 = arith.select %180, %178, %182 : vector<8x128xi1>, vector<8x128xf32>
    %c8_215 = arith.constant 8 : index
    %c0_216 = arith.constant 0 : index
    %184 = vector.load %arg10[%c8_215, %c0_216] : memref<16x128xbf16, #tpu.memory_space<vmem>>, vector<8x128xbf16>
    %c1_217 = arith.constant 1 : index
    %c0_218 = arith.constant 0 : index
    %c0_219 = arith.constant 0 : index
    %185 = vector.load %arg7[%c1_217, %c0_218, %c0_219] : memref<2x128x128xbf16, #tpu.memory_space<vmem>>, vector<1x128x128xbf16>
    %186 = vector.shape_cast %185 : vector<1x128x128xbf16> to vector<128x128xbf16>
    %cst_220 = arith.constant dense<0.000000e+00> : vector<8x128xf32>
    %187 = tpu.matmul %184, %186, %cst_220 {dimension_numbers = #tpu.dot_dimension_numbers<[1], [0], [0], [1], [0, 0, 1, 1], [], []>} : vector<8x128xbf16>, vector<128x128xbf16>, vector<8x128xf32> -> vector<8x128xf32>
    %c1_221 = arith.constant 1 : index
    %c0_222 = arith.constant 0 : index
    %c0_223 = arith.constant 0 : index
    %188 = vector.load %arg8[%c1_221, %c0_222, %c0_223] : memref<2x1x128xf32, #tpu.memory_space<vmem>>, vector<1x1x128xf32>
    %189 = vector.shape_cast %188 : vector<1x1x128xf32> to vector<1x128xf32>
    %190 = vector.broadcast %189 : vector<1x128xf32> to vector<8x128xf32>
    %191 = arith.addf %187, %190 : vector<8x128xf32>
    %192 = arith.addf %183, %191 : vector<8x128xf32>
    %193 = arith.truncf %192 : vector<8x128xf32> to vector<8x128xbf16>
    %c0_224 = arith.constant 0 : index
    %c0_225 = arith.constant 0 : index
    %c0_226 = arith.constant 0 : index
    %194 = vector.load %arg9[%c0_224, %c0_225, %c0_226] : memref<1x8x128xbf16, #tpu.memory_space<vmem>>, vector<1x8x128xbf16>
    %195 = vector.shape_cast %194 : vector<1x8x128xbf16> to vector<8x128xbf16>
    %196 = vector.shape_cast %193 : vector<8x128xbf16> to vector<1x8x128xbf16>
    tpu.vector_store %arg9[%c0_224, %c0_225, %c0_226], %196 {strides = array<i32>} : memref<1x8x128xbf16, #tpu.memory_space<vmem>>, vector<1x8x128xbf16>,
    return
  }
  func.func @transform_0(%arg0: i32, %arg1: i32) -> (i32, i32, i32) {
    %c0_i32 = arith.constant 0 : i32
    %c0_i32_0 = arith.constant 0 : i32
    return %arg0, %arg1, %c0_i32 : i32, i32, i32
  }
  func.func @transform_1(%arg0: i32, %arg1: i32) -> (i32, i32, i32) {
    %c0_i32 = arith.constant 0 : i32
    %c0_i32_0 = arith.constant 0 : i32
    %c0_i32_1 = arith.constant 0 : i32
    %c0_i32_2 = arith.constant 0 : i32
    return %c0_i32, %c0_i32_0, %c0_i32_1 : i32, i32, i32
  }
  func.func @transform_2(%arg0: i32, %arg1: i32) -> (i32, i32, i32) {
    %c0_i32 = arith.constant 0 : i32
    %c0_i32_0 = arith.constant 0 : i32
    %c0_i32_1 = arith.constant 0 : i32
    %c0_i32_2 = arith.constant 0 : i32
    return %c0_i32, %c0_i32_0, %c0_i32_1 : i32, i32, i32
  }
  func.func @transform_3(%arg0: i32, %arg1: i32) -> (i32, i32, i32) {
    %c0_i32 = arith.constant 0 : i32
    %c0_i32_0 = arith.constant 0 : i32
    %c0_i32_1 = arith.constant 0 : i32
    %c0_i32_2 = arith.constant 0 : i32
    return %c0_i32, %c0_i32_0, %c0_i32_1 : i32, i32, i32
  }
  func.func @transform_4(%arg0: i32, %arg1: i32) -> (i32, i32, i32) {
    %c0_i32 = arith.constant 0 : i32
    %c0_i32_0 = arith.constant 0 : i32
    %c0_i32_1 = arith.constant 0 : i32
    %c0_i32_2 = arith.constant 0 : i32
    return %c0_i32, %c0_i32_0, %c0_i32_1 : i32, i32, i32
  }
  func.func @transform_5(%arg0: i32, %arg1: i32) -> (i32, i32, i32) {
    %c0_i32 = arith.constant 0 : i32
    %c0_i32_0 = arith.constant 0 : i32
    %c0_i32_1 = arith.constant 0 : i32
    %c0_i32_2 = arith.constant 0 : i32
    return %c0_i32, %c0_i32_0, %c0_i32_1 : i32, i32, i32
  }
  func.func @transform_6(%arg0: i32, %arg1: i32) -> (i32, i32, i32) {
    %c0_i32 = arith.constant 0 : i32
    %c0_i32_0 = arith.constant 0 : i32
    %c0_i32_1 = arith.constant 0 : i32
    %c0_i32_2 = arith.constant 0 : i32
    return %c0_i32, %c0_i32_0, %c0_i32_1 : i32, i32, i32
  }
  func.func @transform_7(%arg0: i32, %arg1: i32) -> (i32, i32, i32) {
    %c0_i32 = arith.constant 0 : i32
    %c0_i32_0 = arith.constant 0 : i32
    return %arg0, %arg1, %c0_i32 : i32, i32, i32
  }
}

</mosaic_0001>

<llo_original>
// kernel: tpu_custom_call.1
$region0: #{tpu_custom_call.1}
  #allocation0 [shape = 'u32[]', space=smem, size = 0x4, offset = 0x4, fixed_abs, tag = 'smem constant byte address 0x4 - core index']
  #allocation1 [shape = 'u32[144,128]{1,0:T(1,128)}', space=vmem, size = 0x12000, scoped, tag = 'internal scratch']
  #allocation2 [shape = 'bf16[16,128]{1,0:T(8,128)(2,1)}', space=vmem, size = 0x1000, scoped, tag = 'scratch operand']
  #allocation3 [shape = 'bf16[16,128]{1,0:T(8,128)(2,1)}', space=vmem, size = 0x1000, scoped, tag = 'scratch operand']
  #allocation4 [shape = 'bf16[8,384]{1,0:T(8,128)(2,1)}', space=vmem, size = 0x1800, scoped, tag = 'scratch operand']
  #allocation5 [shape = 'bf16[3,8,128]{2,1,0:T(8,128)(2,1)}', space=vmem, size = 0x1800, scoped, tag = 'scratch operand']
  #allocation6 [shape = 'bf16[3,8,128]{2,1,0:T(8,128)(2,1)}', space=vmem, size = 0x1800, scoped, tag = 'scratch operand']
  %s0 = inlined_call_operand.hbm [shape: bf16[2,16,128], index: 0, kind: input, shape index: {}]
  %s1 = inlined_call_operand.hbm [shape: bf16[3,384,128], index: 1, kind: input, shape index: {}]
  %s2 = inlined_call_operand.vmem [shape: f32[3,1,128], index: 2, kind: input, shape index: {}]
  %s3 = inlined_call_operand.hbm [shape: bf16[3,384,128], index: 3, kind: input, shape index: {}]
  %s4 = inlined_call_operand.vmem [shape: f32[3,1,128], index: 4, kind: input, shape index: {}]
  %s5 = inlined_call_operand.hbm [shape: bf16[2,128,128], index: 5, kind: input, shape index: {}]
  %s6 = inlined_call_operand.vmem [shape: f32[2,1,128], index: 6, kind: input, shape index: {}]
  %s7 = inlined_call_operand.hbm [shape: bf16[2,16,128], index: 7, kind: output, shape index: {}]
  %s8 = sld [smem:[#allocation0]]
  $region81: #{tpu_custom_call.1} parent=0
    _
  %s10 = ssub.s32 1, %s8
  %s11 = scalar_select 0, %s10, %s8
  $region1: #{tpu_custom_call.1} parent=0
    #allocation7 [shape = 'u8[4096]{0}', space=vmem, size = 0x1000, scoped, tag = 'input window, operand 0']
    #allocation8 [shape = 's32[2]{0}', space=sflag, size = 0x8, scoped, tag = 'scoped memory for tpu_custom_call.1']
    #allocation9 [shape = 's32[2]{0}', space=sflag, size = 0x8, scoped, tag = 'scoped memory for tpu_custom_call.1']
    #allocation10 [shape = 'u8[294912]{0}', space=vmem, size = 0x48000, scoped, tag = 'input window, operand 1, single buffered']
    #allocation11 [shape = 's32[1]{0}', space=sflag, size = 0x4, scoped, tag = 'scoped memory for tpu_custom_call.1']
    #allocation12 [shape = 'u8[294912]{0}', space=vmem, size = 0x48000, scoped, tag = 'input window, operand 3, single buffered']
    #allocation13 [shape = 'u8[65536]{0}', space=vmem, size = 0x10000, scoped, tag = 'input window, operand 5, single buffered']
    #allocation14 [shape = 's32[1]{0}', space=sflag, size = 0x4, scoped, tag = 'scoped memory for tpu_custom_call.1']
    #allocation15 [shape = 'u8[4096]{0}', space=vmem, size = 0x1000, scoped, tag = 'output window, operand 0']
    %12 = vsyncpa [#allocation8], 0
    %s13 = scalar_lea.sflag [#allocation8], 1
    %14 = vsyncpa %s13, 0
    %15 = vsyncpa [#allocation11], 0
    %16 = vsyncpa [#allocation14], 0
    %17 = vsyncpa [#allocation9], 0
    %s18 = scalar_lea.sflag [#allocation9], 1
    %19 = vsyncpa %s18, 0
    loop: start=0, step=1, limit=6
    $region2: #{tpu_custom_call.1} parent=1 // loop_pre_header
      _
    $region3: #{tpu_custom_call.1} parent=1 // loop_header
      %s21 = sphi 0, %s25
      %p22 = scmp.ge.s32.totalorder %s21, 6
      %s28 = sphi 0, %s40
      %s29 = sphi 0, %s36
      %s30 = sphi 0, %s28
      %s31 = sphi 0, %s29
      %s32 = sphi 0, %s30
      %s33 = sphi 0, %s31
      %s45 = sphi 0, %s47
      %s48 = sphi 0, %s45
      %s49 = sphi 0, %s48
      %s65 = sphi 0, %s49
      %s69 = sphi 0, %s69
      %s71 = sphi 0, %s69
      %s72 = sphi 0, %s71
      %s86 = sphi 0, %s72
      %s90 = sphi 0, %s90
      %s92 = sphi 0, %s90
      %s93 = sphi 0, %s92
      %s107 = sphi 0, %s93
      %s111 = sphi 0, %s111
      %s113 = sphi 0, %s111
      %s114 = sphi 0, %s113
      %s128 = sphi 0, %s114
      %s132 = sphi 0, %s132
      %s134 = sphi 0, %s132
      %s135 = sphi 0, %s134
      %s149 = sphi 0, %s135
      %s153 = sphi 0, %s153
      %s155 = sphi 0, %s153
      %s156 = sphi 0, %s155
      %s170 = sphi 0, %s156
      %s174 = sphi 0, %s174
      %s176 = sphi 0, %s174
      %s177 = sphi 0, %s176
      %s191 = sphi 0, %s177
      %s199 = sphi 0, %s201
      %s202 = sphi 0, %s199
      %s203 = sphi 0, %s202
      %s219 = sphi 0, %s203
    $region4: #{tpu_custom_call.1} parent=1 // loop_header_branch
      %24 = sbr.rel (%p22) target = $region8
    $region5: #{tpu_custom_call.1} parent=1 // loop_body
      %s26 = ssub.s32 %s21, 1
      %s27 = ssub.s32 %s21, 2
      %s34 = sadd.s32 1, %s29
      %p35 = scmp.ge.s32.totalorder %s34, 2
      %s36 = scalar_select %p35, 0, %s34
      %s37 = sadd.s32 1, %s28
      %s38 = scalar_select %p35, %s37, %s28
      %p39 = scmp.ge.s32.totalorder %s38, 2
      %s40 = scalar_select %p39, 0, %s38
      %s41 = ssub.s32 %s28, %s40
      %s42 = ssub.s32 %s29, %s36
      %s43 = sor.u32 %s41, %s42
      %p44 = scmp.eq.s32.totalorder %s43, 0
      %s46 = sadd.s32 %s45, 1
      %s47 = scalar_select %p44, %s45, %s46
      %p50 = pneg %p44
      %p51 = scmp.eq.s32.totalorder %s21, 3
      %p52 = por %p50, %p51
      %p53 = scmp.ne.s32.totalorder %s45, %s48
      %p54 = scmp.eq.s32.totalorder %s21, 0
      %p55 = por %p53, %p54
      %p56 = scmp.ne.s32.totalorder %s45, %s48
      %p57 = scmp.eq.s32.totalorder %s26, 3
      %p58 = por %p56, %p57
      %p59 = scmp.ne.s32.totalorder %s48, %s49
      %p60 = scmp.eq.s32.totalorder %s26, 0
      %p61 = por %p59, %p60
      %p62 = scmp.ne.s32.totalorder %s48, %s49
      %p63 = scmp.eq.s32.totalorder %s27, 3
      %p64 = por %p62, %p63
      %p66 = scmp.ne.s32.totalorder %s49, %s65
      %p67 = scmp.eq.s32.totalorder %s27, 0
      %p68 = por %p66, %p67
      %s70 = sadd.s32 %s69, 1
      %p73 = scmp.eq.s32.totalorder %s21, 3
      %p74 = scmp.ne.s32.totalorder %s69, %s71
      %p75 = scmp.eq.s32.totalorder %s21, 0
      %p76 = por %p74, %p75
      %p77 = scmp.ne.s32.totalorder %s69, %s71
      %p78 = scmp.eq.s32.totalorder %s26, 3
      %p79 = por %p77, %p78
      %p80 = scmp.ne.s32.totalorder %s71, %s72
      %p81 = scmp.eq.s32.totalorder %s26, 0
      %p82 = por %p80, %p81
      %p83 = scmp.ne.s32.totalorder %s71, %s72
      %p84 = scmp.eq.s32.totalorder %s27, 3
      %p85 = por %p83, %p84
      %p87 = scmp.ne.s32.totalorder %s72, %s86
      %p88 = scmp.eq.s32.totalorder %s27, 0
      %p89 = por %p87, %p88
      %s91 = sadd.s32 %s90, 1
      %p94 = scmp.eq.s32.totalorder %s21, 3
      %p95 = scmp.ne.s32.totalorder %s90, %s92
      %p96 = scmp.eq.s32.totalorder %s21, 0
      %p97 = por %p95, %p96
      %p98 = scmp.ne.s32.totalorder %s90, %s92
      %p99 = scmp.eq.s32.totalorder %s26, 3
      %p100 = por %p98, %p99
      %p101 = scmp.ne.s32.totalorder %s92, %s93
      %p102 = scmp.eq.s32.totalorder %s26, 0
      %p103 = por %p101, %p102
      %p104 = scmp.ne.s32.totalorder %s92, %s93
      %p105 = scmp.eq.s32.totalorder %s27, 3
      %p106 = por %p104, %p105
      %p108 = scmp.ne.s32.totalorder %s93, %s107
      %p109 = scmp.eq.s32.totalorder %s27, 0
      %p110 = por %p108, %p109
      %s112 = sadd.s32 %s111, 1
      %p115 = scmp.eq.s32.totalorder %s21, 3
      %p116 = scmp.ne.s32.totalorder %s111, %s113
      %p117 = scmp.eq.s32.totalorder %s21, 0
      %p118 = por %p116, %p117
      %p119 = scmp.ne.s32.totalorder %s111, %s113
      %p120 = scmp.eq.s32.totalorder %s26, 3
      %p121 = por %p119, %p120
      %p122 = scmp.ne.s32.totalorder %s113, %s114
      %p123 = scmp.eq.s32.totalorder %s26, 0
      %p124 = por %p122, %p123
      %p125 = scmp.ne.s32.totalorder %s113, %s114
      %p126 = scmp.eq.s32.totalorder %s27, 3
      %p127 = por %p125, %p126
      %p129 = scmp.ne.s32.totalorder %s114, %s128
      %p130 = scmp.eq.s32.totalorder %s27, 0
      %p131 = por %p129, %p130
      %s133 = sadd.s32 %s132, 1
      %p136 = scmp.eq.s32.totalorder %s21, 3
      %p137 = scmp.ne.s32.totalorder %s132, %s134
      %p138 = scmp.eq.s32.totalorder %s21, 0
      %p139 = por %p137, %p138
      %p140 = scmp.ne.s32.totalorder %s132, %s134
      %p141 = scmp.eq.s32.totalorder %s26, 3
      %p142 = por %p140, %p141
      %p143 = scmp.ne.s32.totalorder %s134, %s135
      %p144 = scmp.eq.s32.totalorder %s26, 0
      %p145 = por %p143, %p144
      %p146 = scmp.ne.s32.totalorder %s134, %s135
      %p147 = scmp.eq.s32.totalorder %s27, 3
      %p148 = por %p146, %p147
      %p150 = scmp.ne.s32.totalorder %s135, %s149
      %p151 = scmp.eq.s32.totalorder %s27, 0
      %p152 = por %p150, %p151
      %s154 = sadd.s32 %s153, 1
      %p157 = scmp.eq.s32.totalorder %s21, 3
      %p158 = scmp.ne.s32.totalorder %s153, %s155
      %p159 = scmp.eq.s32.totalorder %s21, 0
      %p160 = por %p158, %p159
      %p161 = scmp.ne.s32.totalorder %s153, %s155
      %p162 = scmp.eq.s32.totalorder %s26, 3
      %p163 = por %p161, %p162
      %p164 = scmp.ne.s32.totalorder %s155, %s156
      %p165 = scmp.eq.s32.totalorder %s26, 0
      %p166 = por %p164, %p165
      %p167 = scmp.ne.s32.totalorder %s155, %s156
      %p168 = scmp.eq.s32.totalorder %s27, 3
      %p169 = por %p167, %p168
      %p171 = scmp.ne.s32.totalorder %s156, %s170
      %p172 = scmp.eq.s32.totalorder %s27, 0
      %p173 = por %p171, %p172
      %s175 = sadd.s32 %s174, 1
      %p178 = scmp.eq.s32.totalorder %s21, 3
      %p179 = scmp.ne.s32.totalorder %s174, %s176
      %p180 = scmp.eq.s32.totalorder %s21, 0
      %p181 = por %p179, %p180
      %p182 = scmp.ne.s32.totalorder %s174, %s176
      %p183 = scmp.eq.s32.totalorder %s26, 3
      %p184 = por %p182, %p183
      %p185 = scmp.ne.s32.totalorder %s176, %s177
      %p186 = scmp.eq.s32.totalorder %s26, 0
      %p187 = por %p185, %p186
      %p188 = scmp.ne.s32.totalorder %s176, %s177
      %p189 = scmp.eq.s32.totalorder %s27, 3
      %p190 = por %p188, %p189
      %p192 = scmp.ne.s32.totalorder %s177, %s191
      %p193 = scmp.eq.s32.totalorder %s27, 0
      %p194 = por %p192, %p193
      %s195 = ssub.s32 %s28, %s40
      %s196 = ssub.s32 %s29, %s36
      %s197 = sor.u32 %s195, %s196
      %p198 = scmp.eq.s32.totalorder %s197, 0
      %s200 = sadd.s32 %s199, 1
      %s201 = scalar_select %p198, %s199, %s200
      %p204 = pneg %p198
      %p205 = scmp.eq.s32.totalorder %s21, 3
      %p206 = por %p204, %p205
      %p207 = scmp.ne.s32.totalorder %s199, %s202
      %p208 = scmp.eq.s32.totalorder %s21, 0
      %p209 = por %p207, %p208
      %p210 = scmp.ne.s32.totalorder %s199, %s202
      %p211 = scmp.eq.s32.totalorder %s26, 3
      %p212 = por %p210, %p211
      %p213 = scmp.ne.s32.totalorder %s202, %s203
      %p214 = scmp.eq.s32.totalorder %s26, 0
      %p215 = por %p213, %p214
      %p216 = scmp.ne.s32.totalorder %s202, %s203
      %p217 = scmp.eq.s32.totalorder %s27, 3
      %p218 = por %p216, %p217
      %p220 = scmp.ne.s32.totalorder %s203, %s219
      %p221 = scmp.eq.s32.totalorder %s27, 0
      %p222 = por %p220, %p221
      %p223 = scmp.le.s32.totalorder 1, %s21
      %p224 = scmp.lt.s32.totalorder %s21, 5
      %p225 = pnand %p223, %p224
      %p226 = pneg %p225
      // Predicated region
      $region9: #{tpu_custom_call.1} parent=5 // pred_check
        _
      $region10: #{tpu_custom_call.1} parent=5 // pred_check_branch
        %228 = sbr.rel (%p225) target = $region12
      $region11: #{tpu_custom_call.1} parent=5 // pred_region
        %s229 = ssub.s32 %s21, 1
        // Predicated region
        $region13: #{tpu_custom_call.1} parent=11 // pred_check
          %p230 = pneg %p82
        $region14: #{tpu_custom_call.1} parent=11 // pred_check_branch
          %232 = sbr.rel (%p230) target = $region16
        $region15: #{tpu_custom_call.1} parent=11 // pred_region
          %s234 = ssub.s32 9216, 9216
          %235 = vsyncadd [#allocation11], %s234
          %s236 = sshll.u32 [#allocation10], 4
          %s237 = int_to_ptr.vmem [resolvable:$true] %s236
          %242 = dma.hbm_to_vmem [thread:$0]  %s1, 9216, %s237, [#allocation11], 64, 64, 4
        $region16: #{tpu_custom_call.1} parent=11 // pred_fallthru
          _
        // Predicated region
        $region17: #{tpu_custom_call.1} parent=11 // pred_check
          %p243 = pneg %p103
        $region18: #{tpu_custom_call.1} parent=11 // pred_check_branch
          %245 = sbr.rel (%p243) target = $region20
        $region19: #{tpu_custom_call.1} parent=11 // pred_region
          _
        $region20: #{tpu_custom_call.1} parent=11 // pred_fallthru
          _
        // Predicated region
        $region21: #{tpu_custom_call.1} parent=11 // pred_check
          %p246 = pneg %p124
        $region22: #{tpu_custom_call.1} parent=11 // pred_check_branch
          %248 = sbr.rel (%p246) target = $region24
        $region23: #{tpu_custom_call.1} parent=11 // pred_region
          %s250 = ssub.s32 9216, 9216
          %251 = vsyncadd [#allocation11], %s250
          %s252 = sshll.u32 [#allocation12], 4
          %s253 = int_to_ptr.vmem [resolvable:$true] %s252
          %258 = dma.hbm_to_vmem [thread:$0]  %s3, 9216, %s253, [#allocation11], 64, 64, 4
        $region24: #{tpu_custom_call.1} parent=11 // pred_fallthru
          _
        // Predicated region
        $region25: #{tpu_custom_call.1} parent=11 // pred_check
          %p259 = pneg %p145
        $region26: #{tpu_custom_call.1} parent=11 // pred_check_branch
          %261 = sbr.rel (%p259) target = $region28
        $region27: #{tpu_custom_call.1} parent=11 // pred_region
          _
        $region28: #{tpu_custom_call.1} parent=11 // pred_fallthru
          _
        // Predicated region
        $region29: #{tpu_custom_call.1} parent=11 // pred_check
          %p262 = pneg %p166
        $region30: #{tpu_custom_call.1} parent=11 // pred_check_branch
          %264 = sbr.rel (%p262) target = $region32
        $region31: #{tpu_custom_call.1} parent=11 // pred_region
          %s266 = ssub.s32 2048, 2048
          %267 = vsyncadd [#allocation14], %s266
          %s268 = sshll.u32 [#allocation13], 4
          %s269 = int_to_ptr.vmem [resolvable:$true] %s268
          %274 = dma.hbm_to_vmem [thread:$0]  %s5, 2048, %s269, [#allocation14], 64, 64, 4
        $region32: #{tpu_custom_call.1} parent=11 // pred_fallthru
          _
        // Predicated region
        $region33: #{tpu_custom_call.1} parent=11 // pred_check
          %p275 = pneg %p187
        $region34: #{tpu_custom_call.1} parent=11 // pred_check_branch
          %277 = sbr.rel (%p275) target = $region36
        $region35: #{tpu_custom_call.1} parent=11 // pred_region
          _
        $region36: #{tpu_custom_call.1} parent=11 // pred_fallthru
          _
      $region12: #{tpu_custom_call.1} parent=5 // pred_fallthru
        _
      %p278 = scmp.lt.s32.totalorder %s21, 4
      // Predicated region
      $region37: #{tpu_custom_call.1} parent=5 // pred_check
        %p279 = pneg %p278
      $region38: #{tpu_custom_call.1} parent=5 // pred_check_branch
        %281 = sbr.rel (%p279) target = $region40
      $region39: #{tpu_custom_call.1} parent=5 // pred_region
        // Predicated region
        $region41: #{tpu_custom_call.1} parent=39 // pred_check
          %p282 = pneg %p55
        $region42: #{tpu_custom_call.1} parent=39 // pred_check_branch
          %284 = sbr.rel (%p282) target = $region44
        $region43: #{tpu_custom_call.1} parent=39 // pred_region
          %s285 = sand.u32 %s45, 1
          %s286 = scalar_lea.sflag [#allocation8], %s285
          %s287 = sand.u32 %s45, 1
          %s288 = smul.addr %s287, 4
          %s289 = scalar_lea.vmem [#allocation7], %s288
          %s291 = ssub.s32 64, 64
          %292 = vsyncadd %s286, %s291
          %s293 = smul.addr %s28, 2
          %s294 = sadd.s32 %s29, %s293
          %s295 = smul.addr %s294, 64
          %s296 = scalar_lea.hbm %s0, %s295
          %s298 = sshll.u32 %s289, 4
          %s299 = int_to_ptr.vmem [resolvable:$true] %s298
          %301 = dma.hbm_to_vmem [thread:$0]  %s296, 64, %s299, %s286
        $region44: #{tpu_custom_call.1} parent=39 // pred_fallthru
          _
      $region40: #{tpu_custom_call.1} parent=5 // pred_fallthru
        _
      %p302 = scmp.le.s32.totalorder 1, %s21
      %p303 = scmp.lt.s32.totalorder %s21, 5
      %p304 = pnand %p302, %p303
      %p305 = pneg %p304
      // Predicated region
      $region45: #{tpu_custom_call.1} parent=5 // pred_check
        _
      $region46: #{tpu_custom_call.1} parent=5 // pred_check_branch
        %307 = sbr.rel (%p304) target = $region48
      $region47: #{tpu_custom_call.1} parent=5 // pred_region
        %s308 = ssub.s32 %s21, 1
        %s309 = sand.u32 %s48, 1
        %s310 = scalar_lea.sflag [#allocation8], %s309
        %s311 = sand.u32 %s48, 1
        %s312 = smul.addr %s311, 4
        %s313 = scalar_lea.vmem [#allocation7], %s312
        // Predicated region
        $region49: #{tpu_custom_call.1} parent=47 // pred_check
          %p314 = pneg %p61
        $region50: #{tpu_custom_call.1} parent=47 // pred_check_branch
          %316 = sbr.rel (%p314) target = $region52
        $region51: #{tpu_custom_call.1} parent=47 // pred_region
          %317 = dma.done %s310, 64
        $region52: #{tpu_custom_call.1} parent=47 // pred_fallthru
          _
        // Predicated region
        $region53: #{tpu_custom_call.1} parent=47 // pred_check
          %p318 = pneg %p82
        $region54: #{tpu_custom_call.1} parent=47 // pred_check_branch
          %320 = sbr.rel (%p318) target = $region56
        $region55: #{tpu_custom_call.1} parent=47 // pred_region
          %321 = dma.done [#allocation11], 9216
        $region56: #{tpu_custom_call.1} parent=47 // pred_fallthru
          _
        // Predicated region
        $region57: #{tpu_custom_call.1} parent=47 // pred_check
          %p322 = pneg %p124
        $region58: #{tpu_custom_call.1} parent=47 // pred_check_branch
          %324 = sbr.rel (%p322) target = $region60
        $region59: #{tpu_custom_call.1} parent=47 // pred_region
          %325 = dma.done [#allocation11], 9216
        $region60: #{tpu_custom_call.1} parent=47 // pred_fallthru
          _
        // Predicated region
        $region61: #{tpu_custom_call.1} parent=47 // pred_check
          %p326 = pneg %p166
        $region62: #{tpu_custom_call.1} parent=47 // pred_check_branch
          %328 = sbr.rel (%p326) target = $region64
        $region63: #{tpu_custom_call.1} parent=47 // pred_region
          %329 = dma.done [#allocation14], 2048
        $region64: #{tpu_custom_call.1} parent=47 // pred_fallthru
          _
        %s330 = sand.u32 %s48, 1
        %s331 = scalar_lea.sflag [#allocation8], %s330
        %s332 = sand.u32 %s48, 1
        %s333 = smul.addr %s332, 4
        %s334 = scalar_lea.vmem [#allocation7], %s333
        %p335 = pneg %p61
        %p336 = pneg %p58
        %p337 = pneg %p82
        %p338 = pneg %p79
        %p339 = pneg %p103
        %p340 = pneg %p100
        %p341 = pneg %p124
        %p342 = pneg %p121
        %p343 = pneg %p145
        %p344 = pneg %p142
        %p345 = pneg %p166
        %p346 = pneg %p163
        %p347 = pneg %p187
        %p348 = pneg %p184
        %p349 = pneg %p215
        %p350 = pneg %p212
        %s351 = sand.u32 %s202, 1
        %s352 = scalar_lea.sflag [#allocation9], %s351
        %s353 = sand.u32 %s202, 1
        %s354 = smul.addr %s353, 4
        %s355 = scalar_lea.vmem [#allocation15], %s354
        %p357 = scmp.eq.s32.totalorder %s31, 0
        // Predicated region
        $region65: #{tpu_custom_call.1} parent=47 // pred_check
          %p358 = pneg %p357
        $region66: #{tpu_custom_call.1} parent=47 // pred_check_branch
          %360 = sbr.rel (%p358) target = $region68
        $region67: #{tpu_custom_call.1} parent=47 // pred_region
          %361 = vst [vmem:[#allocation5] sm:$0xf] 0
          %362 = vst [vmem:[#allocation5 + $0x4] sm:$0xf] 0
          %363 = vst [vmem:[#allocation5 + $0x8] sm:$0xf] 0
          %364 = vst [vmem:[#allocation6] sm:$0xf] 0
          %365 = vst [vmem:[#allocation6 + $0x4] sm:$0xf] 0
          %366 = vst [vmem:[#allocation6 + $0x8] sm:$0xf] 0
        $region68: #{tpu_custom_call.1} parent=47 // pred_fallthru
          _
        %v367 = vld [vmem:[%s313] sm:$0xf]
        %368 = vst [vmem:[#allocation2 + $0x4] sm:$0xf] %v367
        %v369 = vld [vmem:[#allocation5] sm:$0xf]
        %370 = vst [vmem:[#allocation2] sm:$0xf] %v369
        %v371 = vld [vmem:[#allocation2 + $0x4] sm:$0xf]
        %372 = vst [vmem:[#allocation5] sm:$0xf] %v371
        %v373 = vld [vmem:[#allocation2] sm:$0x8]
        %v374 = vld [vmem:[#allocation2 + $0x4] sm:$0x7]
        %vm377 = vcmask 1040384
        %vm378 = vcmask 1044484
        %vm379 = vmor %vm377, %vm378
        %v380 = vrot.slane %v373, 7
        %v381 = vrot.slane %v380, 4
        %v382 = vrot.slane %v374, 7
        %v383 = vsel %vm379, %v381, %v382
        %385 = vst [vmem:[#allocation4] sm:$0xf] %v383
        %v386 = vld [vmem:[#allocation2] sm:$0x8]
        %v387 = vld [vmem:[#allocation2 + $0x4] sm:$0xf]
        %vm388 = vsmask.f32 256
        %vm389 = vsmask.f32 4368
        %vm390 = vmor %vm388, %vm389
        %v392 = vshrl.u32 %v386, 16
        %v394 = vrot.slane %v392, 7
        %v395 = vrot.slane %v394, 4
        %v397 = vshrl.u32 %v387, 16
        %v399 = vrot.slane %v397, 7
        %v400 = vshll.u32 %v387, 16
        %v402 = vor.u32 %v399, %v400
        %v403 = vsel %vm390, %v395, %v402
        %405 = vst [vmem:[#allocation4 + $0x4] sm:$0xf] %v403
        %v406 = vld [vmem:[#allocation2 + $0x4] sm:$0xf]
        %407 = vst [vmem:[#allocation4 + $0x8] sm:$0xf] %v406
        %v408 = vld [vmem:[#allocation4] sm:$0xff]
        %v409 = vld [vmem:[#allocation4 + $0x8] sm:$0xf]
        %v410 = vld [vmem:[#allocation10] sm:$0xf]
        %v411 = vld [vmem:[#allocation10 + $0x4] sm:$0xf]
        %v412 = vld [vmem:[#allocation10 + $0x8] sm:$0xf]
        %v413 = vld [vmem:[#allocation10 + $0xc] sm:$0xf]
        %v414 = vld [vmem:[#allocation10 + $0x10] sm:$0xf]
        %v415 = vld [vmem:[#allocation10 + $0x14] sm:$0xf]
        %v416 = vld [vmem:[#allocation10 + $0x18] sm:$0xf]
        %v417 = vld [vmem:[#allocation10 + $0x1c] sm:$0xf]
        %v418 = vld [vmem:[#allocation10 + $0x20] sm:$0xf]
        %v419 = vld [vmem:[#allocation10 + $0x24] sm:$0xf]
        %v420 = vld [vmem:[#allocation10 + $0x28] sm:$0xf]
        %v421 = vld [vmem:[#allocation10 + $0x2c] sm:$0xf]
        %v422 = vld [vmem:[#allocation10 + $0x30] sm:$0xf]
        %v423 = vld [vmem:[#allocation10 + $0x34] sm:$0xf]
        %v424 = vld [vmem:[#allocation10 + $0x38] sm:$0xf]
        %v425 = vld [vmem:[#allocation10 + $0x3c] sm:$0xf]
        %v426 = vld [vmem:[#allocation10 + $0x40] sm:$0xf]
        %v427 = vld [vmem:[#allocation10 + $0x44] sm:$0xf]
        %v428 = vld [vmem:[#allocation10 + $0x48] sm:$0xf]
        %v429 = vld [vmem:[#allocation10 + $0x4c] sm:$0xf]
        %v430 = vld [vmem:[#allocation10 + $0x50] sm:$0xf]
        %v431 = vld [vmem:[#allocation10 + $0x54] sm:$0xf]
        %v432 = vld [vmem:[#allocation10 + $0x58] sm:$0xf]
        %v433 = vld [vmem:[#allocation10 + $0x5c] sm:$0xf]
        %v434 = vld [vmem:[#allocation10 + $0x60] sm:$0xf]
        %v435 = vld [vmem:[#allocation10 + $0x64] sm:$0xf]
        %v436 = vld [vmem:[#allocation10 + $0x68] sm:$0xf]
        %v437 = vld [vmem:[#allocation10 + $0x6c] sm:$0xf]
        %v438 = vld [vmem:[#allocation10 + $0x70] sm:$0xf]
        %v439 = vld [vmem:[#allocation10 + $0x74] sm:$0xf]
        %v440 = vld [vmem:[#allocation10 + $0x78] sm:$0xf]
        %v441 = vld [vmem:[#allocation10 + $0x7c] sm:$0xf]
        %v442 = vld [vmem:[#allocation10 + $0x80] sm:$0xf]
        %v443 = vld [vmem:[#allocation10 + $0x84] sm:$0xf]
        %v444 = vld [vmem:[#allocation10 + $0x88] sm:$0xf]
        %v445 = vld [vmem:[#allocation10 + $0x8c] sm:$0xf]
        %v446 = vld [vmem:[#allocation10 + $0x90] sm:$0xf]
        %v447 = vld [vmem:[#allocation10 + $0x94] sm:$0xf]
        %v448 = vld [vmem:[#allocation10 + $0x98] sm:$0xf]
        %v449 = vld [vmem:[#allocation10 + $0x9c] sm:$0xf]
        %v450 = vld [vmem:[#allocation10 + $0xa0] sm:$0xf]
        %v451 = vld [vmem:[#allocation10 + $0xa4] sm:$0xf]
        %v452 = vld [vmem:[#allocation10 + $0xa8] sm:$0xf]
        %v453 = vld [vmem:[#allocation10 + $0xac] sm:$0xf]
        %v454 = vld [vmem:[#allocation10 + $0xb0] sm:$0xf]
        %v455 = vld [vmem:[#allocation10 + $0xb4] sm:$0xf]
        %v456 = vld [vmem:[#allocation10 + $0xb8] sm:$0xf]
        %v457 = vld [vmem:[#allocation10 + $0xbc] sm:$0xf]
        %v458 = vld [vmem:[%s2] sm:$0x1]
        %v460 = vlaneseq
        %v461 = vshrl.u32 %v460, 7
        %v462 = vsub.s32 0, %v461
        %v463 = vrot.slane %v458, %v462
        %v467 = vunpack.c.l.b16 %v408
        %v468 = vunpack.c.h.b16 %v408
        %v469 = vunpack.c.l.b16 %v409
        %v470 = vpack.c.b16 %v467, %v467
        %v471 = vpack.c.b16 %v468, %v468
        %v472 = vpack.c.b16 %v469, %v469
        %v524 = vunpack.c.l.b16 %v410
        %v525 = vunpack.c.l.b16 %v411
        %v526 = vunpack.c.l.b16 %v412
        %v527 = vunpack.c.l.b16 %v413
        %v528 = vunpack.c.l.b16 %v414
        %v529 = vunpack.c.l.b16 %v415
        %v530 = vunpack.c.l.b16 %v416
        %v531 = vunpack.c.l.b16 %v417
        %v532 = vunpack.c.l.b16 %v418
        %v533 = vunpack.c.l.b16 %v419
        %v534 = vunpack.c.l.b16 %v420
        %v535 = vunpack.c.l.b16 %v421
        %v536 = vunpack.c.l.b16 %v422
        %v537 = vunpack.c.l.b16 %v423
        %v538 = vunpack.c.l.b16 %v424
        %v539 = vunpack.c.l.b16 %v425
        %v540 = vunpack.c.l.b16 %v426
        %v541 = vunpack.c.l.b16 %v427
        %v542 = vunpack.c.l.b16 %v428
        %v543 = vunpack.c.l.b16 %v429
        %v544 = vunpack.c.l.b16 %v430
        %v545 = vunpack.c.l.b16 %v431
        %v546 = vunpack.c.l.b16 %v432
        %v547 = vunpack.c.l.b16 %v433
        %v548 = vunpack.c.l.b16 %v434
        %v549 = vunpack.c.l.b16 %v435
        %v550 = vunpack.c.l.b16 %v436
        %v551 = vunpack.c.l.b16 %v437
        %v552 = vunpack.c.l.b16 %v438
        %v553 = vunpack.c.l.b16 %v439
        %v554 = vunpack.c.l.b16 %v440
        %v555 = vunpack.c.l.b16 %v441
        %v556 = vunpack.c.l.b16 %v442
        %v557 = vunpack.c.l.b16 %v443
        %v558 = vunpack.c.l.b16 %v444
        %v559 = vunpack.c.l.b16 %v445
        %v560 = vunpack.c.l.b16 %v446
        %v561 = vunpack.c.l.b16 %v447
        %v562 = vunpack.c.l.b16 %v448
        %v563 = vunpack.c.l.b16 %v449
        %v564 = vunpack.c.l.b16 %v450
        %v565 = vunpack.c.l.b16 %v451
        %v566 = vunpack.c.l.b16 %v452
        %v567 = vunpack.c.l.b16 %v453
        %v568 = vunpack.c.l.b16 %v454
        %v569 = vunpack.c.l.b16 %v455
        %v570 = vunpack.c.l.b16 %v456
        %v571 = vunpack.c.l.b16 %v457
        %v572 = vpack.c.b16 %v525, %v524
        %v573 = vpack.c.b16 %v527, %v526
        %v574 = vpack.c.b16 %v529, %v528
        %v575 = vpack.c.b16 %v531, %v530
        %v576 = vpack.c.b16 %v533, %v532
        %v577 = vpack.c.b16 %v535, %v534
        %v578 = vpack.c.b16 %v537, %v536
        %v579 = vpack.c.b16 %v539, %v538
        %v580 = vpack.c.b16 %v541, %v540
        %v581 = vpack.c.b16 %v543, %v542
        %v582 = vpack.c.b16 %v545, %v544
        %v583 = vpack.c.b16 %v547, %v546
        %v584 = vpack.c.b16 %v549, %v548
        %v585 = vpack.c.b16 %v551, %v550
        %v586 = vpack.c.b16 %v553, %v552
        %v587 = vpack.c.b16 %v555, %v554
        %v588 = vpack.c.b16 %v557, %v556
        %v589 = vpack.c.b16 %v559, %v558
        %v590 = vpack.c.b16 %v561, %v560
        %v591 = vpack.c.b16 %v563, %v562
        %v592 = vpack.c.b16 %v565, %v564
        %v593 = vpack.c.b16 %v567, %v566
        %v594 = vpack.c.b16 %v569, %v568
        %v595 = vpack.c.b16 %v571, %v570
        %620 = vmatprep.subr.bf16.mxu0 0
        %621 = vmatpush1.bf16.msra.mxu0 %v579
        %622 = vmatprep.subr.bf16.mxu0 0
        %623 = vmatpush1.bf16.msra.mxu0 %v578
        %624 = vmatprep.subr.bf16.mxu0 0
        %625 = vmatpush1.bf16.msra.mxu0 %v577
        %626 = vmatprep.subr.bf16.mxu0 0
        %627 = vmatpush1.bf16.msra.mxu0 %v576
        %628 = vmatprep.subr.bf16.mxu0 0
        %629 = vmatpush1.bf16.msra.mxu0 %v575
        %630 = vmatprep.subr.bf16.mxu0 0
        %631 = vmatpush1.bf16.msra.mxu0 %v574
        %632 = vmatprep.subr.bf16.mxu0 0
        %633 = vmatpush1.bf16.msra.mxu0 %v573
        %634 = vmatprep.subr.bf16.mxu0 0
        %635 = vmatpush1.bf16.msra.mxu0 %v572
        %636 = vmatprep.subr.bf16.mxu0 0
        %637 = vmatpush2.bf16.msra.mxu0 %v587
        %638 = vmatprep.subr.bf16.mxu0 0
        %639 = vmatpush2.bf16.msra.mxu0 %v586
        %640 = vmatprep.subr.bf16.mxu0 0
        %641 = vmatpush2.bf16.msra.mxu0 %v585
        %642 = vmatprep.subr.bf16.mxu0 0
        %643 = vmatpush2.bf16.msra.mxu0 %v584
        %644 = vmatprep.subr.bf16.mxu0 0
        %645 = vmatpush2.bf16.msra.mxu0 %v583
        %646 = vmatprep.subr.bf16.mxu0 0
        %647 = vmatpush2.bf16.msra.mxu0 %v582
        %648 = vmatprep.subr.bf16.mxu0 0
        %649 = vmatpush2.bf16.msra.mxu0 %v581
        %650 = vmatprep.subr.bf16.mxu0 0
        %651 = vmatpush2.bf16.msra.mxu0 %v580
        %652 = vmatprep.mubr.bf16.mxu0 %v471
        %653 = vmatmul.mubr.bf16.gmra.mxu0 %v470
        %v654 = vpop.f32.mrf.mxu0
        %v655 = vadd.f32 %v463, %v654
        %v656 = vpop.f32.mrf.mxu0
        %v657 = vpop.f32.mrf.mxu0
        %v658 = vpop.f32.mrf.mxu0
        %659 = vdwg.mxu0
        %660 = vmatprep.subr.bf16.mxu0 0
        %661 = vmatpush1.bf16.msra.mxu0 %v595
        %662 = vmatprep.subr.bf16.mxu0 0
        %663 = vmatpush1.bf16.msra.mxu0 %v594
        %664 = vmatprep.subr.bf16.mxu0 0
        %665 = vmatpush1.bf16.msra.mxu0 %v593
        %666 = vmatprep.subr.bf16.mxu0 0
        %667 = vmatpush1.bf16.msra.mxu0 %v592
        %668 = vmatprep.subr.bf16.mxu0 0
        %669 = vmatpush1.bf16.msra.mxu0 %v591
        %670 = vmatprep.subr.bf16.mxu0 0
        %671 = vmatpush1.bf16.msra.mxu0 %v590
        %672 = vmatprep.subr.bf16.mxu0 0
        %673 = vmatpush1.bf16.msra.mxu0 %v589
        %674 = vmatprep.subr.bf16.mxu0 0
        %675 = vmatpush1.bf16.msra.mxu0 %v588
        %676 = vmatprep.subr.bf16.mxu0 0
        %677 = vmatpush2.bf16.msra.mxu0 0
        %678 = vmatprep.subr.bf16.mxu0 0
        %679 = vmatpush2.bf16.msra.mxu0 0
        %680 = vmatprep.subr.bf16.mxu0 0
        %681 = vmatpush2.bf16.msra.mxu0 0
        %682 = vmatprep.subr.bf16.mxu0 0
        %683 = vmatpush2.bf16.msra.mxu0 0
        %684 = vmatprep.subr.bf16.mxu0 0
        %685 = vmatpush2.bf16.msra.mxu0 0
        %686 = vmatprep.subr.bf16.mxu0 0
        %687 = vmatpush2.bf16.msra.mxu0 0
        %688 = vmatprep.subr.bf16.mxu0 0
        %689 = vmatpush2.bf16.msra.mxu0 0
        %690 = vmatprep.subr.bf16.mxu0 0
        %691 = vmatpush2.bf16.msra.mxu0 0
        %692 = vmatprep.mubr.bf16.mxu0 0
        %693 = vmatmul.mubr.bf16.gmra.mxu0 %v472
        %v694 = vpop.f32.mrf.mxu0
        %v695 = vadd.f32 %v655, %v694
        %v696 = vpop.f32.mrf.mxu0
        %v697 = vpop.f32.mrf.mxu0
        %v698 = vpop.f32.mrf.mxu0
        %699 = vdwg.mxu0
        %vm700 = vcmp.ge.f32.partialorder %v695, 0.0
        %v701 = vmul.f32 %v695, 0.01
        %v702 = vsel %vm700, %v695, %v701
        %v703 = vld [vmem:[#allocation6] sm:$0xf]
        %704 = vst [vmem:[#allocation3] sm:$0xf] %v703
        %v705 = vpack.c.bf16 %v702, %v702
        %706 = vst [vmem:[#allocation3 + $0x4] sm:$0xf] %v705
        %v707 = vld [vmem:[#allocation3 + $0x4] sm:$0xf]
        %708 = vst [vmem:[#allocation6] sm:$0xf] %v707
        %v709 = vld [vmem:[#allocation3] sm:$0x8]
        %v710 = vld [vmem:[#allocation3 + $0x4] sm:$0x7]
        %v713 = vrot.slane %v709, 7
        %v714 = vrot.slane %v713, 4
        %v715 = vrot.slane %v710, 7
        %v716 = vsel %vm379, %v714, %v715
        %718 = vst [vmem:[#allocation4] sm:$0xf] %v716
        %v719 = vld [vmem:[#allocation3] sm:$0x8]
        %v720 = vld [vmem:[#allocation3 + $0x4] sm:$0xf]
        %v722 = vshrl.u32 %v719, 16
        %v724 = vrot.slane %v722, 7
        %v725 = vrot.slane %v724, 4
        %v727 = vshrl.u32 %v720, 16
        %v729 = vrot.slane %v727, 7
        %v730 = vshll.u32 %v720, 16
        %v732 = vor.u32 %v729, %v730
        %v733 = vsel %vm390, %v725, %v732
        %735 = vst [vmem:[#allocation4 + $0x4] sm:$0xf] %v733
        %v736 = vld [vmem:[#allocation3 + $0x4] sm:$0xf]
        %737 = vst [vmem:[#allocation4 + $0x8] sm:$0xf] %v736
        %v738 = vld [vmem:[#allocation4] sm:$0xff]
        %v739 = vld [vmem:[#allocation4 + $0x8] sm:$0xf]
        %v740 = vld [vmem:[#allocation12] sm:$0xf]
        %v741 = vld [vmem:[#allocation12 + $0x4] sm:$0xf]
        %v742 = vld [vmem:[#allocation12 + $0x8] sm:$0xf]
        %v743 = vld [vmem:[#allocation12 + $0xc] sm:$0xf]
        %v744 = vld [vmem:[#allocation12 + $0x10] sm:$0xf]
        %v745 = vld [vmem:[#allocation12 + $0x14] sm:$0xf]
        %v746 = vld [vmem:[#allocation12 + $0x18] sm:$0xf]
        %v747 = vld [vmem:[#allocation12 + $0x1c] sm:$0xf]
        %v748 = vld [vmem:[#allocation12 + $0x20] sm:$0xf]
        %v749 = vld [vmem:[#allocation12 + $0x24] sm:$0xf]
        %v750 = vld [vmem:[#allocation12 + $0x28] sm:$0xf]
        %v751 = vld [vmem:[#allocation12 + $0x2c] sm:$0xf]
        %v752 = vld [vmem:[#allocation12 + $0x30] sm:$0xf]
        %v753 = vld [vmem:[#allocation12 + $0x34] sm:$0xf]
        %v754 = vld [vmem:[#allocation12 + $0x38] sm:$0xf]
        %v755 = vld [vmem:[#allocation12 + $0x3c] sm:$0xf]
        %v756 = vld [vmem:[#allocation12 + $0x40] sm:$0xf]
        %v757 = vld [vmem:[#allocation12 + $0x44] sm:$0xf]
        %v758 = vld [vmem:[#allocation12 + $0x48] sm:$0xf]
        %v759 = vld [vmem:[#allocation12 + $0x4c] sm:$0xf]
        %v760 = vld [vmem:[#allocation12 + $0x50] sm:$0xf]
        %v761 = vld [vmem:[#allocation12 + $0x54] sm:$0xf]
        %v762 = vld [vmem:[#allocation12 + $0x58] sm:$0xf]
        %v763 = vld [vmem:[#allocation12 + $0x5c] sm:$0xf]
        %v764 = vld [vmem:[#allocation12 + $0x60] sm:$0xf]
        %v765 = vld [vmem:[#allocation12 + $0x64] sm:$0xf]
        %v766 = vld [vmem:[#allocation12 + $0x68] sm:$0xf]
        %v767 = vld [vmem:[#allocation12 + $0x6c] sm:$0xf]
        %v768 = vld [vmem:[#allocation12 + $0x70] sm:$0xf]
        %v769 = vld [vmem:[#allocation12 + $0x74] sm:$0xf]
        %v770 = vld [vmem:[#allocation12 + $0x78] sm:$0xf]
        %v771 = vld [vmem:[#allocation12 + $0x7c] sm:$0xf]
        %v772 = vld [vmem:[#allocation12 + $0x80] sm:$0xf]
        %v773 = vld [vmem:[#allocation12 + $0x84] sm:$0xf]
        %v774 = vld [vmem:[#allocation12 + $0x88] sm:$0xf]
        %v775 = vld [vmem:[#allocation12 + $0x8c] sm:$0xf]
        %v776 = vld [vmem:[#allocation12 + $0x90] sm:$0xf]
        %v777 = vld [vmem:[#allocation12 + $0x94] sm:$0xf]
        %v778 = vld [vmem:[#allocation12 + $0x98] sm:$0xf]
        %v779 = vld [vmem:[#allocation12 + $0x9c] sm:$0xf]
        %v780 = vld [vmem:[#allocation12 + $0xa0] sm:$0xf]
        %v781 = vld [vmem:[#allocation12 + $0xa4] sm:$0xf]
        %v782 = vld [vmem:[#allocation12 + $0xa8] sm:$0xf]
        %v783 = vld [vmem:[#allocation12 + $0xac] sm:$0xf]
        %v784 = vld [vmem:[#allocation12 + $0xb0] sm:$0xf]
        %v785 = vld [vmem:[#allocation12 + $0xb4] sm:$0xf]
        %v786 = vld [vmem:[#allocation12 + $0xb8] sm:$0xf]
        %v787 = vld [vmem:[#allocation12 + $0xbc] sm:$0xf]
        %v788 = vld [vmem:[%s4] sm:$0x1]
        %v790 = vlaneseq
        %v791 = vshrl.u32 %v790, 7
        %v792 = vsub.s32 0, %v791
        %v793 = vrot.slane %v788, %v792
        %v797 = vunpack.c.l.b16 %v738
        %v798 = vunpack.c.h.b16 %v738
        %v799 = vunpack.c.l.b16 %v739
        %v800 = vpack.c.b16 %v797, %v797
        %v801 = vpack.c.b16 %v798, %v798
        %v802 = vpack.c.b16 %v799, %v799
        %v854 = vunpack.c.l.b16 %v740
        %v855 = vunpack.c.l.b16 %v741
        %v856 = vunpack.c.l.b16 %v742
        %v857 = vunpack.c.l.b16 %v743
        %v858 = vunpack.c.l.b16 %v744
        %v859 = vunpack.c.l.b16 %v745
        %v860 = vunpack.c.l.b16 %v746
        %v861 = vunpack.c.l.b16 %v747
        %v862 = vunpack.c.l.b16 %v748
        %v863 = vunpack.c.l.b16 %v749
        %v864 = vunpack.c.l.b16 %v750
        %v865 = vunpack.c.l.b16 %v751
        %v866 = vunpack.c.l.b16 %v752
        %v867 = vunpack.c.l.b16 %v753
        %v868 = vunpack.c.l.b16 %v754
        %v869 = vunpack.c.l.b16 %v755
        %v870 = vunpack.c.l.b16 %v756
        %v871 = vunpack.c.l.b16 %v757
        %v872 = vunpack.c.l.b16 %v758
        %v873 = vunpack.c.l.b16 %v759
        %v874 = vunpack.c.l.b16 %v760
        %v875 = vunpack.c.l.b16 %v761
        %v876 = vunpack.c.l.b16 %v762
        %v877 = vunpack.c.l.b16 %v763
        %v878 = vunpack.c.l.b16 %v764
        %v879 = vunpack.c.l.b16 %v765
        %v880 = vunpack.c.l.b16 %v766
        %v881 = vunpack.c.l.b16 %v767
        %v882 = vunpack.c.l.b16 %v768
        %v883 = vunpack.c.l.b16 %v769
        %v884 = vunpack.c.l.b16 %v770
        %v885 = vunpack.c.l.b16 %v771
        %v886 = vunpack.c.l.b16 %v772
        %v887 = vunpack.c.l.b16 %v773
        %v888 = vunpack.c.l.b16 %v774
        %v889 = vunpack.c.l.b16 %v775
        %v890 = vunpack.c.l.b16 %v776
        %v891 = vunpack.c.l.b16 %v777
        %v892 = vunpack.c.l.b16 %v778
        %v893 = vunpack.c.l.b16 %v779
        %v894 = vunpack.c.l.b16 %v780
        %v895 = vunpack.c.l.b16 %v781
        %v896 = vunpack.c.l.b16 %v782
        %v897 = vunpack.c.l.b16 %v783
        %v898 = vunpack.c.l.b16 %v784
        %v899 = vunpack.c.l.b16 %v785
        %v900 = vunpack.c.l.b16 %v786
        %v901 = vunpack.c.l.b16 %v787
        %v902 = vpack.c.b16 %v855, %v854
        %v903 = vpack.c.b16 %v857, %v856
        %v904 = vpack.c.b16 %v859, %v858
        %v905 = vpack.c.b16 %v861, %v860
        %v906 = vpack.c.b16 %v863, %v862
        %v907 = vpack.c.b16 %v865, %v864
        %v908 = vpack.c.b16 %v867, %v866
        %v909 = vpack.c.b16 %v869, %v868
        %v910 = vpack.c.b16 %v871, %v870
        %v911 = vpack.c.b16 %v873, %v872
        %v912 = vpack.c.b16 %v875, %v874
        %v913 = vpack.c.b16 %v877, %v876
        %v914 = vpack.c.b16 %v879, %v878
        %v915 = vpack.c.b16 %v881, %v880
        %v916 = vpack.c.b16 %v883, %v882
        %v917 = vpack.c.b16 %v885, %v884
        %v918 = vpack.c.b16 %v887, %v886
        %v919 = vpack.c.b16 %v889, %v888
        %v920 = vpack.c.b16 %v891, %v890
        %v921 = vpack.c.b16 %v893, %v892
        %v922 = vpack.c.b16 %v895, %v894
        %v923 = vpack.c.b16 %v897, %v896
        %v924 = vpack.c.b16 %v899, %v898
        %v925 = vpack.c.b16 %v901, %v900
        %950 = vmatprep.subr.bf16.mxu0 0
        %951 = vmatpush1.bf16.msra.mxu0 %v909
        %952 = vmatprep.subr.bf16.mxu0 0
        %953 = vmatpush1.bf16.msra.mxu0 %v908
        %954 = vmatprep.subr.bf16.mxu0 0
        %955 = vmatpush1.bf16.msra.mxu0 %v907
        %956 = vmatprep.subr.bf16.mxu0 0
        %957 = vmatpush1.bf16.msra.mxu0 %v906
        %958 = vmatprep.subr.bf16.mxu0 0
        %959 = vmatpush1.bf16.msra.mxu0 %v905
        %960 = vmatprep.subr.bf16.mxu0 0
        %961 = vmatpush1.bf16.msra.mxu0 %v904
        %962 = vmatprep.subr.bf16.mxu0 0
        %963 = vmatpush1.bf16.msra.mxu0 %v903
        %964 = vmatprep.subr.bf16.mxu0 0
        %965 = vmatpush1.bf16.msra.mxu0 %v902
        %966 = vmatprep.subr.bf16.mxu0 0
        %967 = vmatpush2.bf16.msra.mxu0 %v917
        %968 = vmatprep.subr.bf16.mxu0 0
        %969 = vmatpush2.bf16.msra.mxu0 %v916
        %970 = vmatprep.subr.bf16.mxu0 0
        %971 = vmatpush2.bf16.msra.mxu0 %v915
        %972 = vmatprep.subr.bf16.mxu0 0
        %973 = vmatpush2.bf16.msra.mxu0 %v914
        %974 = vmatprep.subr.bf16.mxu0 0
        %975 = vmatpush2.bf16.msra.mxu0 %v913
        %976 = vmatprep.subr.bf16.mxu0 0
        %977 = vmatpush2.bf16.msra.mxu0 %v912
        %978 = vmatprep.subr.bf16.mxu0 0
        %979 = vmatpush2.bf16.msra.mxu0 %v911
        %980 = vmatprep.subr.bf16.mxu0 0
        %981 = vmatpush2.bf16.msra.mxu0 %v910
        %982 = vmatprep.mubr.bf16.mxu0 %v801
        %983 = vmatmul.mubr.bf16.gmra.mxu0 %v800
        %v984 = vpop.f32.mrf.mxu0
        %v985 = vadd.f32 %v793, %v984
        %v986 = vpop.f32.mrf.mxu0
        %v987 = vpop.f32.mrf.mxu0
        %v988 = vpop.f32.mrf.mxu0
        %989 = vdwg.mxu0
        %990 = vmatprep.subr.bf16.mxu0 0
        %991 = vmatpush1.bf16.msra.mxu0 %v925
        %992 = vmatprep.subr.bf16.mxu0 0
        %993 = vmatpush1.bf16.msra.mxu0 %v924
        %994 = vmatprep.subr.bf16.mxu0 0
        %995 = vmatpush1.bf16.msra.mxu0 %v923
        %996 = vmatprep.subr.bf16.mxu0 0
        %997 = vmatpush1.bf16.msra.mxu0 %v922
        %998 = vmatprep.subr.bf16.mxu0 0
        %999 = vmatpush1.bf16.msra.mxu0 %v921
        %1000 = vmatprep.subr.bf16.mxu0 0
        %1001 = vmatpush1.bf16.msra.mxu0 %v920
        %1002 = vmatprep.subr.bf16.mxu0 0
        %1003 = vmatpush1.bf16.msra.mxu0 %v919
        %1004 = vmatprep.subr.bf16.mxu0 0
        %1005 = vmatpush1.bf16.msra.mxu0 %v918
        %1006 = vmatprep.subr.bf16.mxu0 0
        %1007 = vmatpush2.bf16.msra.mxu0 0
        %1008 = vmatprep.subr.bf16.mxu0 0
        %1009 = vmatpush2.bf16.msra.mxu0 0
        %1010 = vmatprep.subr.bf16.mxu0 0
        %1011 = vmatpush2.bf16.msra.mxu0 0
        %1012 = vmatprep.subr.bf16.mxu0 0
        %1013 = vmatpush2.bf16.msra.mxu0 0
        %1014 = vmatprep.subr.bf16.mxu0 0
        %1015 = vmatpush2.bf16.msra.mxu0 0
        %1016 = vmatprep.subr.bf16.mxu0 0
        %1017 = vmatpush2.bf16.msra.mxu0 0
        %1018 = vmatprep.subr.bf16.mxu0 0
        %1019 = vmatpush2.bf16.msra.mxu0 0
        %1020 = vmatprep.subr.bf16.mxu0 0
        %1021 = vmatpush2.bf16.msra.mxu0 0
        %1022 = vmatprep.mubr.bf16.mxu0 0
        %1023 = vmatmul.mubr.bf16.gmra.mxu0 %v802
        %v1024 = vpop.f32.mrf.mxu0
        %v1025 = vadd.f32 %v985, %v1024
        %v1026 = vpop.f32.mrf.mxu0
        %v1027 = vpop.f32.mrf.mxu0
        %v1028 = vpop.f32.mrf.mxu0
        %1029 = vdwg.mxu0
        %vm1030 = vcmp.ge.f32.partialorder %v1025, 0.0
        %v1031 = vmul.f32 %v1025, 0.01
        %v1032 = vsel %vm1030, %v1025, %v1031
        %v1033 = vld [vmem:[#allocation2 + $0x4] sm:$0xf]
        %v1034 = vld [vmem:[#allocation13] sm:$0xf]
        %v1035 = vld [vmem:[#allocation13 + $0x4] sm:$0xf]
        %v1036 = vld [vmem:[#allocation13 + $0x8] sm:$0xf]
        %v1037 = vld [vmem:[#allocation13 + $0xc] sm:$0xf]
        %v1038 = vld [vmem:[#allocation13 + $0x10] sm:$0xf]
        %v1039 = vld [vmem:[#allocation13 + $0x14] sm:$0xf]
        %v1040 = vld [vmem:[#allocation13 + $0x18] sm:$0xf]
        %v1041 = vld [vmem:[#allocation13 + $0x1c] sm:$0xf]
        %v1042 = vld [vmem:[#allocation13 + $0x20] sm:$0xf]
        %v1043 = vld [vmem:[#allocation13 + $0x24] sm:$0xf]
        %v1044 = vld [vmem:[#allocation13 + $0x28] sm:$0xf]
        %v1045 = vld [vmem:[#allocation13 + $0x2c] sm:$0xf]
        %v1046 = vld [vmem:[#allocation13 + $0x30] sm:$0xf]
        %v1047 = vld [vmem:[#allocation13 + $0x34] sm:$0xf]
        %v1048 = vld [vmem:[#allocation13 + $0x38] sm:$0xf]
        %v1049 = vld [vmem:[#allocation13 + $0x3c] sm:$0xf]
        %v1050 = vld [vmem:[%s6] sm:$0x1]
        %v1052 = vlaneseq
        %v1053 = vshrl.u32 %v1052, 7
        %v1054 = vsub.s32 0, %v1053
        %v1055 = vrot.slane %v1050, %v1054
        %v1073 = vunpack.c.l.b16 %v1034
        %v1074 = vunpack.c.l.b16 %v1035
        %v1075 = vunpack.c.l.b16 %v1036
        %v1076 = vunpack.c.l.b16 %v1037
        %v1077 = vunpack.c.l.b16 %v1038
        %v1078 = vunpack.c.l.b16 %v1039
        %v1079 = vunpack.c.l.b16 %v1040
        %v1080 = vunpack.c.l.b16 %v1041
        %v1081 = vunpack.c.l.b16 %v1042
        %v1082 = vunpack.c.l.b16 %v1043
        %v1083 = vunpack.c.l.b16 %v1044
        %v1084 = vunpack.c.l.b16 %v1045
        %v1085 = vunpack.c.l.b16 %v1046
        %v1086 = vunpack.c.l.b16 %v1047
        %v1087 = vunpack.c.l.b16 %v1048
        %v1088 = vunpack.c.l.b16 %v1049
        %v1089 = vpack.c.b16 %v1074, %v1073
        %v1090 = vpack.c.b16 %v1076, %v1075
        %v1091 = vpack.c.b16 %v1078, %v1077
        %v1092 = vpack.c.b16 %v1080, %v1079
        %v1093 = vpack.c.b16 %v1082, %v1081
        %v1094 = vpack.c.b16 %v1084, %v1083
        %v1095 = vpack.c.b16 %v1086, %v1085
        %v1096 = vpack.c.b16 %v1088, %v1087
        %1105 = vmatprep.subr.bf16.mxu0 0
        %1106 = vmatpush1.bf16.msra.mxu0 %v1096
        %1107 = vmatprep.subr.bf16.mxu0 0
        %1108 = vmatpush1.bf16.msra.mxu0 %v1095
        %1109 = vmatprep.subr.bf16.mxu0 0
        %1110 = vmatpush1.bf16.msra.mxu0 %v1094
        %1111 = vmatprep.subr.bf16.mxu0 0
        %1112 = vmatpush1.bf16.msra.mxu0 %v1093
        %1113 = vmatprep.subr.bf16.mxu0 0
        %1114 = vmatpush1.bf16.msra.mxu0 %v1092
        %1115 = vmatprep.subr.bf16.mxu0 0
        %1116 = vmatpush1.bf16.msra.mxu0 %v1091
        %1117 = vmatprep.subr.bf16.mxu0 0
        %1118 = vmatpush1.bf16.msra.mxu0 %v1090
        %1119 = vmatprep.subr.bf16.mxu0 0
        %1120 = vmatpush1.bf16.msra.mxu0 %v1089
        %1121 = vmatprep.subr.bf16.mxu0 0
        %1122 = vmatpush2.bf16.msra.mxu0 0
        %1123 = vmatprep.subr.bf16.mxu0 0
        %1124 = vmatpush2.bf16.msra.mxu0 0
        %1125 = vmatprep.subr.bf16.mxu0 0
        %1126 = vmatpush2.bf16.msra.mxu0 0
        %1127 = vmatprep.subr.bf16.mxu0 0
        %1128 = vmatpush2.bf16.msra.mxu0 0
        %1129 = vmatprep.subr.bf16.mxu0 0
        %1130 = vmatpush2.bf16.msra.mxu0 0
        %1131 = vmatprep.subr.bf16.mxu0 0
        %1132 = vmatpush2.bf16.msra.mxu0 0
        %1133 = vmatprep.subr.bf16.mxu0 0
        %1134 = vmatpush2.bf16.msra.mxu0 0
        %1135 = vmatprep.subr.bf16.mxu0 0
        %1136 = vmatpush2.bf16.msra.mxu0 0
        %1137 = vmatprep.mubr.bf16.mxu0 0
        %1138 = vmatmul.mubr.bf16.gmra.mxu0 %v1033
        %v1139 = vpop.f32.mrf.mxu0
        %v1140 = vadd.f32 %v1055, %v1139
        %v1141 = vpop.f32.mrf.mxu0
        %v1142 = vpop.f32.mrf.mxu0
        %v1143 = vpop.f32.mrf.mxu0
        %1144 = vdwg.mxu0
        %v1145 = vadd.f32 %v1032, %v1140
        %v1146 = vpack.c.bf16 %v1145, %v1145
        %1147 = vst [vmem:[#allocation2 + $0x4] sm:$0xf] %v1146
        %s1148 = scalar_lea.vmem [#allocation5], 4
        %v1149 = vld [vmem:[%s1148] sm:$0xf]
        %1150 = vst [vmem:[#allocation2] sm:$0xf] %v1149
        %v1151 = vld [vmem:[#allocation2 + $0x4] sm:$0xf]
        %1152 = vst [vmem:[%s1148] sm:$0xf] %v1151
        %v1153 = vld [vmem:[#allocation2] sm:$0xc]
        %v1154 = vld [vmem:[#allocation2 + $0x4] sm:$0x3]
        %vm1157 = vcmask 1041408
        %vm1158 = vcmask 1045508
        %vm1159 = vmor %vm1157, %vm1158
        %v1160 = vrot.slane %v1153, 6
        %v1161 = vrot.slane %v1160, 4
        %v1162 = vrot.slane %v1154, 6
        %v1163 = vsel %vm1159, %v1161, %v1162
        %1165 = vst [vmem:[#allocation4] sm:$0xf] %v1163
        %v1166 = vld [vmem:[#allocation2] sm:$0x8]
        %v1167 = vld [vmem:[#allocation2 + $0x4] sm:$0x7]
        %v1170 = vrot.slane %v1166, 7
        %v1171 = vrot.slane %v1170, 4
        %v1172 = vrot.slane %v1167, 7
        %v1173 = vsel %vm379, %v1171, %v1172
        %1175 = vst [vmem:[#allocation4 + $0x4] sm:$0xf] %v1173
        %v1176 = vld [vmem:[#allocation2 + $0x4] sm:$0xf]
        %1177 = vst [vmem:[#allocation4 + $0x8] sm:$0xf] %v1176
        %v1178 = vld [vmem:[#allocation4] sm:$0xff]
        %v1179 = vld [vmem:[#allocation4 + $0x8] sm:$0xf]
        %s1180 = scalar_lea.vmem [#allocation10], 192
        %v1181 = vld [vmem:[%s1180] sm:$0xf]
        %v1182 = vld [vmem:[%s1180 + $0x4] sm:$0xf]
        %v1183 = vld [vmem:[%s1180 + $0x8] sm:$0xf]
        %v1184 = vld [vmem:[%s1180 + $0xc] sm:$0xf]
        %v1185 = vld [vmem:[%s1180 + $0x10] sm:$0xf]
        %v1186 = vld [vmem:[%s1180 + $0x14] sm:$0xf]
        %v1187 = vld [vmem:[%s1180 + $0x18] sm:$0xf]
        %v1188 = vld [vmem:[%s1180 + $0x1c] sm:$0xf]
        %v1189 = vld [vmem:[%s1180 + $0x20] sm:$0xf]
        %v1190 = vld [vmem:[%s1180 + $0x24] sm:$0xf]
        %v1191 = vld [vmem:[%s1180 + $0x28] sm:$0xf]
        %v1192 = vld [vmem:[%s1180 + $0x2c] sm:$0xf]
        %v1193 = vld [vmem:[%s1180 + $0x30] sm:$0xf]
        %v1194 = vld [vmem:[%s1180 + $0x34] sm:$0xf]
        %v1195 = vld [vmem:[%s1180 + $0x38] sm:$0xf]
        %v1196 = vld [vmem:[%s1180 + $0x3c] sm:$0xf]
        %v1197 = vld [vmem:[%s1180 + $0x40] sm:$0xf]
        %v1198 = vld [vmem:[%s1180 + $0x44] sm:$0xf]
        %v1199 = vld [vmem:[%s1180 + $0x48] sm:$0xf]
        %v1200 = vld [vmem:[%s1180 + $0x4c] sm:$0xf]
        %v1201 = vld [vmem:[%s1180 + $0x50] sm:$0xf]
        %v1202 = vld [vmem:[%s1180 + $0x54] sm:$0xf]
        %v1203 = vld [vmem:[%s1180 + $0x58] sm:$0xf]
        %v1204 = vld [vmem:[%s1180 + $0x5c] sm:$0xf]
        %v1205 = vld [vmem:[%s1180 + $0x60] sm:$0xf]
        %v1206 = vld [vmem:[%s1180 + $0x64] sm:$0xf]
        %v1207 = vld [vmem:[%s1180 + $0x68] sm:$0xf]
        %v1208 = vld [vmem:[%s1180 + $0x6c] sm:$0xf]
        %v1209 = vld [vmem:[%s1180 + $0x70] sm:$0xf]
        %v1210 = vld [vmem:[%s1180 + $0x74] sm:$0xf]
        %v1211 = vld [vmem:[%s1180 + $0x78] sm:$0xf]
        %v1212 = vld [vmem:[%s1180 + $0x7c] sm:$0xf]
        %v1213 = vld [vmem:[%s1180 + $0x80] sm:$0xf]
        %v1214 = vld [vmem:[%s1180 + $0x84] sm:$0xf]
        %v1215 = vld [vmem:[%s1180 + $0x88] sm:$0xf]
        %v1216 = vld [vmem:[%s1180 + $0x8c] sm:$0xf]
        %v1217 = vld [vmem:[%s1180 + $0x90] sm:$0xf]
        %v1218 = vld [vmem:[%s1180 + $0x94] sm:$0xf]
        %v1219 = vld [vmem:[%s1180 + $0x98] sm:$0xf]
        %v1220 = vld [vmem:[%s1180 + $0x9c] sm:$0xf]
        %v1221 = vld [vmem:[%s1180 + $0xa0] sm:$0xf]
        %v1222 = vld [vmem:[%s1180 + $0xa4] sm:$0xf]
        %v1223 = vld [vmem:[%s1180 + $0xa8] sm:$0xf]
        %v1224 = vld [vmem:[%s1180 + $0xac] sm:$0xf]
        %v1225 = vld [vmem:[%s1180 + $0xb0] sm:$0xf]
        %v1226 = vld [vmem:[%s1180 + $0xb4] sm:$0xf]
        %v1227 = vld [vmem:[%s1180 + $0xb8] sm:$0xf]
        %v1228 = vld [vmem:[%s1180 + $0xbc] sm:$0xf]
        %s1229 = scalar_lea.vmem %s2, 1
        %v1230 = vld [vmem:[%s1229] sm:$0x1]
        %v1232 = vlaneseq
        %v1233 = vshrl.u32 %v1232, 7
        %v1234 = vsub.s32 0, %v1233
        %v1235 = vrot.slane %v1230, %v1234
        %v1239 = vunpack.c.l.b16 %v1178
        %v1240 = vunpack.c.h.b16 %v1178
        %v1241 = vunpack.c.l.b16 %v1179
        %v1242 = vpack.c.b16 %v1239, %v1239
        %v1243 = vpack.c.b16 %v1240, %v1240
        %v1244 = vpack.c.b16 %v1241, %v1241
        %v1296 = vunpack.c.l.b16 %v1181
        %v1297 = vunpack.c.l.b16 %v1182
        %v1298 = vunpack.c.l.b16 %v1183
        %v1299 = vunpack.c.l.b16 %v1184
        %v1300 = vunpack.c.l.b16 %v1185
        %v1301 = vunpack.c.l.b16 %v1186
        %v1302 = vunpack.c.l.b16 %v1187
        %v1303 = vunpack.c.l.b16 %v1188
        %v1304 = vunpack.c.l.b16 %v1189
        %v1305 = vunpack.c.l.b16 %v1190
        %v1306 = vunpack.c.l.b16 %v1191
        %v1307 = vunpack.c.l.b16 %v1192
        %v1308 = vunpack.c.l.b16 %v1193
        %v1309 = vunpack.c.l.b16 %v1194
        %v1310 = vunpack.c.l.b16 %v1195
        %v1311 = vunpack.c.l.b16 %v1196
        %v1312 = vunpack.c.l.b16 %v1197
        %v1313 = vunpack.c.l.b16 %v1198
        %v1314 = vunpack.c.l.b16 %v1199
        %v1315 = vunpack.c.l.b16 %v1200
        %v1316 = vunpack.c.l.b16 %v1201
        %v1317 = vunpack.c.l.b16 %v1202
        %v1318 = vunpack.c.l.b16 %v1203
        %v1319 = vunpack.c.l.b16 %v1204
        %v1320 = vunpack.c.l.b16 %v1205
        %v1321 = vunpack.c.l.b16 %v1206
        %v1322 = vunpack.c.l.b16 %v1207
        %v1323 = vunpack.c.l.b16 %v1208
        %v1324 = vunpack.c.l.b16 %v1209
        %v1325 = vunpack.c.l.b16 %v1210
        %v1326 = vunpack.c.l.b16 %v1211
        %v1327 = vunpack.c.l.b16 %v1212
        %v1328 = vunpack.c.l.b16 %v1213
        %v1329 = vunpack.c.l.b16 %v1214
        %v1330 = vunpack.c.l.b16 %v1215
        %v1331 = vunpack.c.l.b16 %v1216
        %v1332 = vunpack.c.l.b16 %v1217
        %v1333 = vunpack.c.l.b16 %v1218
        %v1334 = vunpack.c.l.b16 %v1219
        %v1335 = vunpack.c.l.b16 %v1220
        %v1336 = vunpack.c.l.b16 %v1221
        %v1337 = vunpack.c.l.b16 %v1222
        %v1338 = vunpack.c.l.b16 %v1223
        %v1339 = vunpack.c.l.b16 %v1224
        %v1340 = vunpack.c.l.b16 %v1225
        %v1341 = vunpack.c.l.b16 %v1226
        %v1342 = vunpack.c.l.b16 %v1227
        %v1343 = vunpack.c.l.b16 %v1228
        %v1344 = vpack.c.b16 %v1297, %v1296
        %v1345 = vpack.c.b16 %v1299, %v1298
        %v1346 = vpack.c.b16 %v1301, %v1300
        %v1347 = vpack.c.b16 %v1303, %v1302
        %v1348 = vpack.c.b16 %v1305, %v1304
        %v1349 = vpack.c.b16 %v1307, %v1306
        %v1350 = vpack.c.b16 %v1309, %v1308
        %v1351 = vpack.c.b16 %v1311, %v1310
        %v1352 = vpack.c.b16 %v1313, %v1312
        %v1353 = vpack.c.b16 %v1315, %v1314
        %v1354 = vpack.c.b16 %v1317, %v1316
        %v1355 = vpack.c.b16 %v1319, %v1318
        %v1356 = vpack.c.b16 %v1321, %v1320
        %v1357 = vpack.c.b16 %v1323, %v1322
        %v1358 = vpack.c.b16 %v1325, %v1324
        %v1359 = vpack.c.b16 %v1327, %v1326
        %v1360 = vpack.c.b16 %v1329, %v1328
        %v1361 = vpack.c.b16 %v1331, %v1330
        %v1362 = vpack.c.b16 %v1333, %v1332
        %v1363 = vpack.c.b16 %v1335, %v1334
        %v1364 = vpack.c.b16 %v1337, %v1336
        %v1365 = vpack.c.b16 %v1339, %v1338
        %v1366 = vpack.c.b16 %v1341, %v1340
        %v1367 = vpack.c.b16 %v1343, %v1342
        %1392 = vmatprep.subr.bf16.mxu0 0
        %1393 = vmatpush1.bf16.msra.mxu0 %v1351
        %1394 = vmatprep.subr.bf16.mxu0 0
        %1395 = vmatpush1.bf16.msra.mxu0 %v1350
        %1396 = vmatprep.subr.bf16.mxu0 0
        %1397 = vmatpush1.bf16.msra.mxu0 %v1349
        %1398 = vmatprep.subr.bf16.mxu0 0
        %1399 = vmatpush1.bf16.msra.mxu0 %v1348
        %1400 = vmatprep.subr.bf16.mxu0 0
        %1401 = vmatpush1.bf16.msra.mxu0 %v1347
        %1402 = vmatprep.subr.bf16.mxu0 0
        %1403 = vmatpush1.bf16.msra.mxu0 %v1346
        %1404 = vmatprep.subr.bf16.mxu0 0
        %1405 = vmatpush1.bf16.msra.mxu0 %v1345
        %1406 = vmatprep.subr.bf16.mxu0 0
        %1407 = vmatpush1.bf16.msra.mxu0 %v1344
        %1408 = vmatprep.subr.bf16.mxu0 0
        %1409 = vmatpush2.bf16.msra.mxu0 %v1359
        %1410 = vmatprep.subr.bf16.mxu0 0
        %1411 = vmatpush2.bf16.msra.mxu0 %v1358
        %1412 = vmatprep.subr.bf16.mxu0 0
        %1413 = vmatpush2.bf16.msra.mxu0 %v1357
        %1414 = vmatprep.subr.bf16.mxu0 0
        %1415 = vmatpush2.bf16.msra.mxu0 %v1356
        %1416 = vmatprep.subr.bf16.mxu0 0
        %1417 = vmatpush2.bf16.msra.mxu0 %v1355
        %1418 = vmatprep.subr.bf16.mxu0 0
        %1419 = vmatpush2.bf16.msra.mxu0 %v1354
        %1420 = vmatprep.subr.bf16.mxu0 0
        %1421 = vmatpush2.bf16.msra.mxu0 %v1353
        %1422 = vmatprep.subr.bf16.mxu0 0
        %1423 = vmatpush2.bf16.msra.mxu0 %v1352
        %1424 = vmatprep.mubr.bf16.mxu0 %v1243
        %1425 = vmatmul.mubr.bf16.gmra.mxu0 %v1242
        %v1426 = vpop.f32.mrf.mxu0
        %v1427 = vadd.f32 %v1235, %v1426
        %v1428 = vpop.f32.mrf.mxu0
        %v1429 = vpop.f32.mrf.mxu0
        %v1430 = vpop.f32.mrf.mxu0
        %1431 = vdwg.mxu0
        %1432 = vmatprep.subr.bf16.mxu0 0
        %1433 = vmatpush1.bf16.msra.mxu0 %v1367
        %1434 = vmatprep.subr.bf16.mxu0 0
        %1435 = vmatpush1.bf16.msra.mxu0 %v1366
        %1436 = vmatprep.subr.bf16.mxu0 0
        %1437 = vmatpush1.bf16.msra.mxu0 %v1365
        %1438 = vmatprep.subr.bf16.mxu0 0
        %1439 = vmatpush1.bf16.msra.mxu0 %v1364
        %1440 = vmatprep.subr.bf16.mxu0 0
        %1441 = vmatpush1.bf16.msra.mxu0 %v1363
        %1442 = vmatprep.subr.bf16.mxu0 0
        %1443 = vmatpush1.bf16.msra.mxu0 %v1362
        %1444 = vmatprep.subr.bf16.mxu0 0
        %1445 = vmatpush1.bf16.msra.mxu0 %v1361
        %1446 = vmatprep.subr.bf16.mxu0 0
        %1447 = vmatpush1.bf16.msra.mxu0 %v1360
        %1448 = vmatprep.subr.bf16.mxu0 0
        %1449 = vmatpush2.bf16.msra.mxu0 0
        %1450 = vmatprep.subr.bf16.mxu0 0
        %1451 = vmatpush2.bf16.msra.mxu0 0
        %1452 = vmatprep.subr.bf16.mxu0 0
        %1453 = vmatpush2.bf16.msra.mxu0 0
        %1454 = vmatprep.subr.bf16.mxu0 0
        %1455 = vmatpush2.bf16.msra.mxu0 0
        %1456 = vmatprep.subr.bf16.mxu0 0
        %1457 = vmatpush2.bf16.msra.mxu0 0
        %1458 = vmatprep.subr.bf16.mxu0 0
        %1459 = vmatpush2.bf16.msra.mxu0 0
        %1460 = vmatprep.subr.bf16.mxu0 0
        %1461 = vmatpush2.bf16.msra.mxu0 0
        %1462 = vmatprep.subr.bf16.mxu0 0
        %1463 = vmatpush2.bf16.msra.mxu0 0
        %1464 = vmatprep.mubr.bf16.mxu0 0
        %1465 = vmatmul.mubr.bf16.gmra.mxu0 %v1244
        %v1466 = vpop.f32.mrf.mxu0
        %v1467 = vadd.f32 %v1427, %v1466
        %v1468 = vpop.f32.mrf.mxu0
        %v1469 = vpop.f32.mrf.mxu0
        %v1470 = vpop.f32.mrf.mxu0
        %1471 = vdwg.mxu0
        %vm1472 = vcmp.ge.f32.partialorder %v1467, 0.0
        %v1473 = vmul.f32 %v1467, 0.01
        %v1474 = vsel %vm1472, %v1467, %v1473
        %s1475 = scalar_lea.vmem [#allocation6], 4
        %v1476 = vld [vmem:[%s1475] sm:$0xf]
        %1477 = vst [vmem:[#allocation3] sm:$0xf] %v1476
        %v1478 = vpack.c.bf16 %v1474, %v1474
        %1479 = vst [vmem:[#allocation3 + $0x4] sm:$0xf] %v1478
        %v1480 = vld [vmem:[#allocation3 + $0x4] sm:$0xf]
        %1481 = vst [vmem:[%s1475] sm:$0xf] %v1480
        %v1482 = vld [vmem:[#allocation3] sm:$0xc]
        %v1483 = vld [vmem:[#allocation3 + $0x4] sm:$0x3]
        %v1486 = vrot.slane %v1482, 6
        %v1487 = vrot.slane %v1486, 4
        %v1488 = vrot.slane %v1483, 6
        %v1489 = vsel %vm1159, %v1487, %v1488
        %1491 = vst [vmem:[#allocation4] sm:$0xf] %v1489
        %v1492 = vld [vmem:[#allocation3] sm:$0x8]
        %v1493 = vld [vmem:[#allocation3 + $0x4] sm:$0x7]
        %v1496 = vrot.slane %v1492, 7
        %v1497 = vrot.slane %v1496, 4
        %v1498 = vrot.slane %v1493, 7
        %v1499 = vsel %vm379, %v1497, %v1498
        %1501 = vst [vmem:[#allocation4 + $0x4] sm:$0xf] %v1499
        %v1502 = vld [vmem:[#allocation3 + $0x4] sm:$0xf]
        %1503 = vst [vmem:[#allocation4 + $0x8] sm:$0xf] %v1502
        %v1504 = vld [vmem:[#allocation4] sm:$0xff]
        %v1505 = vld [vmem:[#allocation4 + $0x8] sm:$0xf]
        %s1506 = scalar_lea.vmem [#allocation12], 192
        %v1507 = vld [vmem:[%s1506] sm:$0xf]
        %v1508 = vld [vmem:[%s1506 + $0x4] sm:$0xf]
        %v1509 = vld [vmem:[%s1506 + $0x8] sm:$0xf]
        %v1510 = vld [vmem:[%s1506 + $0xc] sm:$0xf]
        %v1511 = vld [vmem:[%s1506 + $0x10] sm:$0xf]
        %v1512 = vld [vmem:[%s1506 + $0x14] sm:$0xf]
        %v1513 = vld [vmem:[%s1506 + $0x18] sm:$0xf]
        %v1514 = vld [vmem:[%s1506 + $0x1c] sm:$0xf]
        %v1515 = vld [vmem:[%s1506 + $0x20] sm:$0xf]
        %v1516 = vld [vmem:[%s1506 + $0x24] sm:$0xf]
        %v1517 = vld [vmem:[%s1506 + $0x28] sm:$0xf]
        %v1518 = vld [vmem:[%s1506 + $0x2c] sm:$0xf]
        %v1519 = vld [vmem:[%s1506 + $0x30] sm:$0xf]
        %v1520 = vld [vmem:[%s1506 + $0x34] sm:$0xf]
        %v1521 = vld [vmem:[%s1506 + $0x38] sm:$0xf]
        %v1522 = vld [vmem:[%s1506 + $0x3c] sm:$0xf]
        %v1523 = vld [vmem:[%s1506 + $0x40] sm:$0xf]
        %v1524 = vld [vmem:[%s1506 + $0x44] sm:$0xf]
        %v1525 = vld [vmem:[%s1506 + $0x48] sm:$0xf]
        %v1526 = vld [vmem:[%s1506 + $0x4c] sm:$0xf]
        %v1527 = vld [vmem:[%s1506 + $0x50] sm:$0xf]
        %v1528 = vld [vmem:[%s1506 + $0x54] sm:$0xf]
        %v1529 = vld [vmem:[%s1506 + $0x58] sm:$0xf]
        %v1530 = vld [vmem:[%s1506 + $0x5c] sm:$0xf]
        %v1531 = vld [vmem:[%s1506 + $0x60] sm:$0xf]
        %v1532 = vld [vmem:[%s1506 + $0x64] sm:$0xf]
        %v1533 = vld [vmem:[%s1506 + $0x68] sm:$0xf]
        %v1534 = vld [vmem:[%s1506 + $0x6c] sm:$0xf]
        %v1535 = vld [vmem:[%s1506 + $0x70] sm:$0xf]
        %v1536 = vld [vmem:[%s1506 + $0x74] sm:$0xf]
        %v1537 = vld [vmem:[%s1506 + $0x78] sm:$0xf]
        %v1538 = vld [vmem:[%s1506 + $0x7c] sm:$0xf]
        %v1539 = vld [vmem:[%s1506 + $0x80] sm:$0xf]
        %v1540 = vld [vmem:[%s1506 + $0x84] sm:$0xf]
        %v1541 = vld [vmem:[%s1506 + $0x88] sm:$0xf]
        %v1542 = vld [vmem:[%s1506 + $0x8c] sm:$0xf]
        %v1543 = vld [vmem:[%s1506 + $0x90] sm:$0xf]
        %v1544 = vld [vmem:[%s1506 + $0x94] sm:$0xf]
        %v1545 = vld [vmem:[%s1506 + $0x98] sm:$0xf]
        %v1546 = vld [vmem:[%s1506 + $0x9c] sm:$0xf]
        %v1547 = vld [vmem:[%s1506 + $0xa0] sm:$0xf]
        %v1548 = vld [vmem:[%s1506 + $0xa4] sm:$0xf]
        %v1549 = vld [vmem:[%s1506 + $0xa8] sm:$0xf]
        %v1550 = vld [vmem:[%s1506 + $0xac] sm:$0xf]
        %v1551 = vld [vmem:[%s1506 + $0xb0] sm:$0xf]
        %v1552 = vld [vmem:[%s1506 + $0xb4] sm:$0xf]
        %v1553 = vld [vmem:[%s1506 + $0xb8] sm:$0xf]
        %v1554 = vld [vmem:[%s1506 + $0xbc] sm:$0xf]
        %s1555 = scalar_lea.vmem %s4, 1
        %v1556 = vld [vmem:[%s1555] sm:$0x1]
        %v1558 = vlaneseq
        %v1559 = vshrl.u32 %v1558, 7
        %v1560 = vsub.s32 0, %v1559
        %v1561 = vrot.slane %v1556, %v1560
        %v1565 = vunpack.c.l.b16 %v1504
        %v1566 = vunpack.c.h.b16 %v1504
        %v1567 = vunpack.c.l.b16 %v1505
        %v1568 = vpack.c.b16 %v1565, %v1565
        %v1569 = vpack.c.b16 %v1566, %v1566
        %v1570 = vpack.c.b16 %v1567, %v1567
        %v1622 = vunpack.c.l.b16 %v1507
        %v1623 = vunpack.c.l.b16 %v1508
        %v1624 = vunpack.c.l.b16 %v1509
        %v1625 = vunpack.c.l.b16 %v1510
        %v1626 = vunpack.c.l.b16 %v1511
        %v1627 = vunpack.c.l.b16 %v1512
        %v1628 = vunpack.c.l.b16 %v1513
        %v1629 = vunpack.c.l.b16 %v1514
        %v1630 = vunpack.c.l.b16 %v1515
        %v1631 = vunpack.c.l.b16 %v1516
        %v1632 = vunpack.c.l.b16 %v1517
        %v1633 = vunpack.c.l.b16 %v1518
        %v1634 = vunpack.c.l.b16 %v1519
        %v1635 = vunpack.c.l.b16 %v1520
        %v1636 = vunpack.c.l.b16 %v1521
        %v1637 = vunpack.c.l.b16 %v1522
        %v1638 = vunpack.c.l.b16 %v1523
        %v1639 = vunpack.c.l.b16 %v1524
        %v1640 = vunpack.c.l.b16 %v1525
        %v1641 = vunpack.c.l.b16 %v1526
        %v1642 = vunpack.c.l.b16 %v1527
        %v1643 = vunpack.c.l.b16 %v1528
        %v1644 = vunpack.c.l.b16 %v1529
        %v1645 = vunpack.c.l.b16 %v1530
        %v1646 = vunpack.c.l.b16 %v1531
        %v1647 = vunpack.c.l.b16 %v1532
        %v1648 = vunpack.c.l.b16 %v1533
        %v1649 = vunpack.c.l.b16 %v1534
        %v1650 = vunpack.c.l.b16 %v1535
        %v1651 = vunpack.c.l.b16 %v1536
        %v1652 = vunpack.c.l.b16 %v1537
        %v1653 = vunpack.c.l.b16 %v1538
        %v1654 = vunpack.c.l.b16 %v1539
        %v1655 = vunpack.c.l.b16 %v1540
        %v1656 = vunpack.c.l.b16 %v1541
        %v1657 = vunpack.c.l.b16 %v1542
        %v1658 = vunpack.c.l.b16 %v1543
        %v1659 = vunpack.c.l.b16 %v1544
        %v1660 = vunpack.c.l.b16 %v1545
        %v1661 = vunpack.c.l.b16 %v1546
        %v1662 = vunpack.c.l.b16 %v1547
        %v1663 = vunpack.c.l.b16 %v1548
        %v1664 = vunpack.c.l.b16 %v1549
        %v1665 = vunpack.c.l.b16 %v1550
        %v1666 = vunpack.c.l.b16 %v1551
        %v1667 = vunpack.c.l.b16 %v1552
        %v1668 = vunpack.c.l.b16 %v1553
        %v1669 = vunpack.c.l.b16 %v1554
        %v1670 = vpack.c.b16 %v1623, %v1622
        %v1671 = vpack.c.b16 %v1625, %v1624
        %v1672 = vpack.c.b16 %v1627, %v1626
        %v1673 = vpack.c.b16 %v1629, %v1628
        %v1674 = vpack.c.b16 %v1631, %v1630
        %v1675 = vpack.c.b16 %v1633, %v1632
        %v1676 = vpack.c.b16 %v1635, %v1634
        %v1677 = vpack.c.b16 %v1637, %v1636
        %v1678 = vpack.c.b16 %v1639, %v1638
        %v1679 = vpack.c.b16 %v1641, %v1640
        %v1680 = vpack.c.b16 %v1643, %v1642
        %v1681 = vpack.c.b16 %v1645, %v1644
        %v1682 = vpack.c.b16 %v1647, %v1646
        %v1683 = vpack.c.b16 %v1649, %v1648
        %v1684 = vpack.c.b16 %v1651, %v1650
        %v1685 = vpack.c.b16 %v1653, %v1652
        %v1686 = vpack.c.b16 %v1655, %v1654
        %v1687 = vpack.c.b16 %v1657, %v1656
        %v1688 = vpack.c.b16 %v1659, %v1658
        %v1689 = vpack.c.b16 %v1661, %v1660
        %v1690 = vpack.c.b16 %v1663, %v1662
        %v1691 = vpack.c.b16 %v1665, %v1664
        %v1692 = vpack.c.b16 %v1667, %v1666
        %v1693 = vpack.c.b16 %v1669, %v1668
        %1718 = vmatprep.subr.bf16.mxu0 0
        %1719 = vmatpush1.bf16.msra.mxu0 %v1677
        %1720 = vmatprep.subr.bf16.mxu0 0
        %1721 = vmatpush1.bf16.msra.mxu0 %v1676
        %1722 = vmatprep.subr.bf16.mxu0 0
        %1723 = vmatpush1.bf16.msra.mxu0 %v1675
        %1724 = vmatprep.subr.bf16.mxu0 0
        %1725 = vmatpush1.bf16.msra.mxu0 %v1674
        %1726 = vmatprep.subr.bf16.mxu0 0
        %1727 = vmatpush1.bf16.msra.mxu0 %v1673
        %1728 = vmatprep.subr.bf16.mxu0 0
        %1729 = vmatpush1.bf16.msra.mxu0 %v1672
        %1730 = vmatprep.subr.bf16.mxu0 0
        %1731 = vmatpush1.bf16.msra.mxu0 %v1671
        %1732 = vmatprep.subr.bf16.mxu0 0
        %1733 = vmatpush1.bf16.msra.mxu0 %v1670
        %1734 = vmatprep.subr.bf16.mxu0 0
        %1735 = vmatpush2.bf16.msra.mxu0 %v1685
        %1736 = vmatprep.subr.bf16.mxu0 0
        %1737 = vmatpush2.bf16.msra.mxu0 %v1684
        %1738 = vmatprep.subr.bf16.mxu0 0
        %1739 = vmatpush2.bf16.msra.mxu0 %v1683
        %1740 = vmatprep.subr.bf16.mxu0 0
        %1741 = vmatpush2.bf16.msra.mxu0 %v1682
        %1742 = vmatprep.subr.bf16.mxu0 0
        %1743 = vmatpush2.bf16.msra.mxu0 %v1681
        %1744 = vmatprep.subr.bf16.mxu0 0
        %1745 = vmatpush2.bf16.msra.mxu0 %v1680
        %1746 = vmatprep.subr.bf16.mxu0 0
        %1747 = vmatpush2.bf16.msra.mxu0 %v1679
        %1748 = vmatprep.subr.bf16.mxu0 0
        %1749 = vmatpush2.bf16.msra.mxu0 %v1678
        %1750 = vmatprep.mubr.bf16.mxu0 %v1569
        %1751 = vmatmul.mubr.bf16.gmra.mxu0 %v1568
        %v1752 = vpop.f32.mrf.mxu0
        %v1753 = vadd.f32 %v1561, %v1752
        %v1754 = vpop.f32.mrf.mxu0
        %v1755 = vpop.f32.mrf.mxu0
        %v1756 = vpop.f32.mrf.mxu0
        %1757 = vdwg.mxu0
        %1758 = vmatprep.subr.bf16.mxu0 0
        %1759 = vmatpush1.bf16.msra.mxu0 %v1693
        %1760 = vmatprep.subr.bf16.mxu0 0
        %1761 = vmatpush1.bf16.msra.mxu0 %v1692
        %1762 = vmatprep.subr.bf16.mxu0 0
        %1763 = vmatpush1.bf16.msra.mxu0 %v1691
        %1764 = vmatprep.subr.bf16.mxu0 0
        %1765 = vmatpush1.bf16.msra.mxu0 %v1690
        %1766 = vmatprep.subr.bf16.mxu0 0
        %1767 = vmatpush1.bf16.msra.mxu0 %v1689
        %1768 = vmatprep.subr.bf16.mxu0 0
        %1769 = vmatpush1.bf16.msra.mxu0 %v1688
        %1770 = vmatprep.subr.bf16.mxu0 0
        %1771 = vmatpush1.bf16.msra.mxu0 %v1687
        %1772 = vmatprep.subr.bf16.mxu0 0
        %1773 = vmatpush1.bf16.msra.mxu0 %v1686
        %1774 = vmatprep.subr.bf16.mxu0 0
        %1775 = vmatpush2.bf16.msra.mxu0 0
        %1776 = vmatprep.subr.bf16.mxu0 0
        %1777 = vmatpush2.bf16.msra.mxu0 0
        %1778 = vmatprep.subr.bf16.mxu0 0
        %1779 = vmatpush2.bf16.msra.mxu0 0
        %1780 = vmatprep.subr.bf16.mxu0 0
        %1781 = vmatpush2.bf16.msra.mxu0 0
        %1782 = vmatprep.subr.bf16.mxu0 0
        %1783 = vmatpush2.bf16.msra.mxu0 0
        %1784 = vmatprep.subr.bf16.mxu0 0
        %1785 = vmatpush2.bf16.msra.mxu0 0
        %1786 = vmatprep.subr.bf16.mxu0 0
        %1787 = vmatpush2.bf16.msra.mxu0 0
        %1788 = vmatprep.subr.bf16.mxu0 0
        %1789 = vmatpush2.bf16.msra.mxu0 0
        %1790 = vmatprep.mubr.bf16.mxu0 0
        %1791 = vmatmul.mubr.bf16.gmra.mxu0 %v1570
        %v1792 = vpop.f32.mrf.mxu0
        %v1793 = vadd.f32 %v1753, %v1792
        %v1794 = vpop.f32.mrf.mxu0
        %v1795 = vpop.f32.mrf.mxu0
        %v1796 = vpop.f32.mrf.mxu0
        %1797 = vdwg.mxu0
        %vm1798 = vcmp.ge.f32.partialorder %v1793, 0.0
        %v1799 = vmul.f32 %v1793, 0.01
        %v1800 = vsel %vm1798, %v1793, %v1799
        %v1801 = vld [vmem:[#allocation2 + $0x4] sm:$0xf]
        %v1802 = vunpack.c.l.bf16 %v1801
        %v1803 = vadd.f32 %v1800, %v1802
        %v1804 = vpack.c.bf16 %v1803, %v1803
        %1805 = vst [vmem:[#allocation2 + $0x4] sm:$0xf] %v1804
        %s1806 = scalar_lea.vmem [#allocation5], 8
        %v1807 = vld [vmem:[%s1806] sm:$0xf]
        %1808 = vst [vmem:[#allocation2] sm:$0xf] %v1807
        %v1809 = vld [vmem:[#allocation2 + $0x4] sm:$0xf]
        %1810 = vst [vmem:[%s1806] sm:$0xf] %v1809
        %v1811 = vld [vmem:[#allocation2] sm:$0xf]
        %1812 = vst [vmem:[#allocation4] sm:$0xf] %v1811
        %v1813 = vld [vmem:[#allocation2] sm:$0xc]
        %v1814 = vld [vmem:[#allocation2 + $0x4] sm:$0x3]
        %v1817 = vrot.slane %v1813, 6
        %v1818 = vrot.slane %v1817, 4
        %v1819 = vrot.slane %v1814, 6
        %v1820 = vsel %vm1159, %v1818, %v1819
        %1822 = vst [vmem:[#allocation4 + $0x4] sm:$0xf] %v1820
        %v1823 = vld [vmem:[#allocation2 + $0x4] sm:$0xf]
        %1824 = vst [vmem:[#allocation4 + $0x8] sm:$0xf] %v1823
        %v1825 = vld [vmem:[#allocation4] sm:$0xff]
        %v1826 = vld [vmem:[#allocation4 + $0x8] sm:$0xf]
        %s1827 = scalar_lea.vmem [#allocation10], 384
        %v1828 = vld [vmem:[%s1827] sm:$0xf]
        %v1829 = vld [vmem:[%s1827 + $0x4] sm:$0xf]
        %v1830 = vld [vmem:[%s1827 + $0x8] sm:$0xf]
        %v1831 = vld [vmem:[%s1827 + $0xc] sm:$0xf]
        %v1832 = vld [vmem:[%s1827 + $0x10] sm:$0xf]
        %v1833 = vld [vmem:[%s1827 + $0x14] sm:$0xf]
        %v1834 = vld [vmem:[%s1827 + $0x18] sm:$0xf]
        %v1835 = vld [vmem:[%s1827 + $0x1c] sm:$0xf]
        %v1836 = vld [vmem:[%s1827 + $0x20] sm:$0xf]
        %v1837 = vld [vmem:[%s1827 + $0x24] sm:$0xf]
        %v1838 = vld [vmem:[%s1827 + $0x28] sm:$0xf]
        %v1839 = vld [vmem:[%s1827 + $0x2c] sm:$0xf]
        %v1840 = vld [vmem:[%s1827 + $0x30] sm:$0xf]
        %v1841 = vld [vmem:[%s1827 + $0x34] sm:$0xf]
        %v1842 = vld [vmem:[%s1827 + $0x38] sm:$0xf]
        %v1843 = vld [vmem:[%s1827 + $0x3c] sm:$0xf]
        %v1844 = vld [vmem:[%s1827 + $0x40] sm:$0xf]
        %v1845 = vld [vmem:[%s1827 + $0x44] sm:$0xf]
        %v1846 = vld [vmem:[%s1827 + $0x48] sm:$0xf]
        %v1847 = vld [vmem:[%s1827 + $0x4c] sm:$0xf]
        %v1848 = vld [vmem:[%s1827 + $0x50] sm:$0xf]
        %v1849 = vld [vmem:[%s1827 + $0x54] sm:$0xf]
        %v1850 = vld [vmem:[%s1827 + $0x58] sm:$0xf]
        %v1851 = vld [vmem:[%s1827 + $0x5c] sm:$0xf]
        %v1852 = vld [vmem:[%s1827 + $0x60] sm:$0xf]
        %v1853 = vld [vmem:[%s1827 + $0x64] sm:$0xf]
        %v1854 = vld [vmem:[%s1827 + $0x68] sm:$0xf]
        %v1855 = vld [vmem:[%s1827 + $0x6c] sm:$0xf]
        %v1856 = vld [vmem:[%s1827 + $0x70] sm:$0xf]
        %v1857 = vld [vmem:[%s1827 + $0x74] sm:$0xf]
        %v1858 = vld [vmem:[%s1827 + $0x78] sm:$0xf]
        %v1859 = vld [vmem:[%s1827 + $0x7c] sm:$0xf]
        %v1860 = vld [vmem:[%s1827 + $0x80] sm:$0xf]
        %v1861 = vld [vmem:[%s1827 + $0x84] sm:$0xf]
        %v1862 = vld [vmem:[%s1827 + $0x88] sm:$0xf]
        %v1863 = vld [vmem:[%s1827 + $0x8c] sm:$0xf]
        %v1864 = vld [vmem:[%s1827 + $0x90] sm:$0xf]
        %v1865 = vld [vmem:[%s1827 + $0x94] sm:$0xf]
        %v1866 = vld [vmem:[%s1827 + $0x98] sm:$0xf]
        %v1867 = vld [vmem:[%s1827 + $0x9c] sm:$0xf]
        %v1868 = vld [vmem:[%s1827 + $0xa0] sm:$0xf]
        %v1869 = vld [vmem:[%s1827 + $0xa4] sm:$0xf]
        %v1870 = vld [vmem:[%s1827 + $0xa8] sm:$0xf]
        %v1871 = vld [vmem:[%s1827 + $0xac] sm:$0xf]
        %v1872 = vld [vmem:[%s1827 + $0xb0] sm:$0xf]
        %v1873 = vld [vmem:[%s1827 + $0xb4] sm:$0xf]
        %v1874 = vld [vmem:[%s1827 + $0xb8] sm:$0xf]
        %v1875 = vld [vmem:[%s1827 + $0xbc] sm:$0xf]
        %s1876 = scalar_lea.vmem %s2, 2
        %v1877 = vld [vmem:[%s1876] sm:$0x1]
        %v1879 = vlaneseq
        %v1880 = vshrl.u32 %v1879, 7
        %v1881 = vsub.s32 0, %v1880
        %v1882 = vrot.slane %v1877, %v1881
        %v1886 = vunpack.c.l.b16 %v1825
        %v1887 = vunpack.c.h.b16 %v1825
        %v1888 = vunpack.c.l.b16 %v1826
        %v1889 = vpack.c.b16 %v1886, %v1886
        %v1890 = vpack.c.b16 %v1887, %v1887
        %v1891 = vpack.c.b16 %v1888, %v1888
        %v1943 = vunpack.c.l.b16 %v1828
        %v1944 = vunpack.c.l.b16 %v1829
        %v1945 = vunpack.c.l.b16 %v1830
        %v1946 = vunpack.c.l.b16 %v1831
        %v1947 = vunpack.c.l.b16 %v1832
        %v1948 = vunpack.c.l.b16 %v1833
        %v1949 = vunpack.c.l.b16 %v1834
        %v1950 = vunpack.c.l.b16 %v1835
        %v1951 = vunpack.c.l.b16 %v1836
        %v1952 = vunpack.c.l.b16 %v1837
        %v1953 = vunpack.c.l.b16 %v1838
        %v1954 = vunpack.c.l.b16 %v1839
        %v1955 = vunpack.c.l.b16 %v1840
        %v1956 = vunpack.c.l.b16 %v1841
        %v1957 = vunpack.c.l.b16 %v1842
        %v1958 = vunpack.c.l.b16 %v1843
        %v1959 = vunpack.c.l.b16 %v1844
        %v1960 = vunpack.c.l.b16 %v1845
        %v1961 = vunpack.c.l.b16 %v1846
        %v1962 = vunpack.c.l.b16 %v1847
        %v1963 = vunpack.c.l.b16 %v1848
        %v1964 = vunpack.c.l.b16 %v1849
        %v1965 = vunpack.c.l.b16 %v1850
        %v1966 = vunpack.c.l.b16 %v1851
        %v1967 = vunpack.c.l.b16 %v1852
        %v1968 = vunpack.c.l.b16 %v1853
        %v1969 = vunpack.c.l.b16 %v1854
        %v1970 = vunpack.c.l.b16 %v1855
        %v1971 = vunpack.c.l.b16 %v1856
        %v1972 = vunpack.c.l.b16 %v1857
        %v1973 = vunpack.c.l.b16 %v1858
        %v1974 = vunpack.c.l.b16 %v1859
        %v1975 = vunpack.c.l.b16 %v1860
        %v1976 = vunpack.c.l.b16 %v1861
        %v1977 = vunpack.c.l.b16 %v1862
        %v1978 = vunpack.c.l.b16 %v1863
        %v1979 = vunpack.c.l.b16 %v1864
        %v1980 = vunpack.c.l.b16 %v1865
        %v1981 = vunpack.c.l.b16 %v1866
        %v1982 = vunpack.c.l.b16 %v1867
        %v1983 = vunpack.c.l.b16 %v1868
        %v1984 = vunpack.c.l.b16 %v1869
        %v1985 = vunpack.c.l.b16 %v1870
        %v1986 = vunpack.c.l.b16 %v1871
        %v1987 = vunpack.c.l.b16 %v1872
        %v1988 = vunpack.c.l.b16 %v1873
        %v1989 = vunpack.c.l.b16 %v1874
        %v1990 = vunpack.c.l.b16 %v1875
        %v1991 = vpack.c.b16 %v1944, %v1943
        %v1992 = vpack.c.b16 %v1946, %v1945
        %v1993 = vpack.c.b16 %v1948, %v1947
        %v1994 = vpack.c.b16 %v1950, %v1949
        %v1995 = vpack.c.b16 %v1952, %v1951
        %v1996 = vpack.c.b16 %v1954, %v1953
        %v1997 = vpack.c.b16 %v1956, %v1955
        %v1998 = vpack.c.b16 %v1958, %v1957
        %v1999 = vpack.c.b16 %v1960, %v1959
        %v2000 = vpack.c.b16 %v1962, %v1961
        %v2001 = vpack.c.b16 %v1964, %v1963
        %v2002 = vpack.c.b16 %v1966, %v1965
        %v2003 = vpack.c.b16 %v1968, %v1967
        %v2004 = vpack.c.b16 %v1970, %v1969
        %v2005 = vpack.c.b16 %v1972, %v1971
        %v2006 = vpack.c.b16 %v1974, %v1973
        %v2007 = vpack.c.b16 %v1976, %v1975
        %v2008 = vpack.c.b16 %v1978, %v1977
        %v2009 = vpack.c.b16 %v1980, %v1979
        %v2010 = vpack.c.b16 %v1982, %v1981
        %v2011 = vpack.c.b16 %v1984, %v1983
        %v2012 = vpack.c.b16 %v1986, %v1985
        %v2013 = vpack.c.b16 %v1988, %v1987
        %v2014 = vpack.c.b16 %v1990, %v1989
        %2039 = vmatprep.subr.bf16.mxu0 0
        %2040 = vmatpush1.bf16.msra.mxu0 %v1998
        %2041 = vmatprep.subr.bf16.mxu0 0
        %2042 = vmatpush1.bf16.msra.mxu0 %v1997
        %2043 = vmatprep.subr.bf16.mxu0 0
        %2044 = vmatpush1.bf16.msra.mxu0 %v1996
        %2045 = vmatprep.subr.bf16.mxu0 0
        %2046 = vmatpush1.bf16.msra.mxu0 %v1995
        %2047 = vmatprep.subr.bf16.mxu0 0
        %2048 = vmatpush1.bf16.msra.mxu0 %v1994
        %2049 = vmatprep.subr.bf16.mxu0 0
        %2050 = vmatpush1.bf16.msra.mxu0 %v1993
        %2051 = vmatprep.subr.bf16.mxu0 0
        %2052 = vmatpush1.bf16.msra.mxu0 %v1992
        %2053 = vmatprep.subr.bf16.mxu0 0
        %2054 = vmatpush1.bf16.msra.mxu0 %v1991
        %2055 = vmatprep.subr.bf16.mxu0 0
        %2056 = vmatpush2.bf16.msra.mxu0 %v2006
        %2057 = vmatprep.subr.bf16.mxu0 0
        %2058 = vmatpush2.bf16.msra.mxu0 %v2005
        %2059 = vmatprep.subr.bf16.mxu0 0
        %2060 = vmatpush2.bf16.msra.mxu0 %v2004
        %2061 = vmatprep.subr.bf16.mxu0 0
        %2062 = vmatpush2.bf16.msra.mxu0 %v2003
        %2063 = vmatprep.subr.bf16.mxu0 0
        %2064 = vmatpush2.bf16.msra.mxu0 %v2002
        %2065 = vmatprep.subr.bf16.mxu0 0
        %2066 = vmatpush2.bf16.msra.mxu0 %v2001
        %2067 = vmatprep.subr.bf16.mxu0 0
        %2068 = vmatpush2.bf16.msra.mxu0 %v2000
        %2069 = vmatprep.subr.bf16.mxu0 0
        %2070 = vmatpush2.bf16.msra.mxu0 %v1999
        %2071 = vmatprep.mubr.bf16.mxu0 %v1890
        %2072 = vmatmul.mubr.bf16.gmra.mxu0 %v1889
        %v2073 = vpop.f32.mrf.mxu0
        %v2074 = vadd.f32 %v1882, %v2073
        %v2075 = vpop.f32.mrf.mxu0
        %v2076 = vpop.f32.mrf.mxu0
        %v2077 = vpop.f32.mrf.mxu0
        %2078 = vdwg.mxu0
        %2079 = vmatprep.subr.bf16.mxu0 0
        %2080 = vmatpush1.bf16.msra.mxu0 %v2014
        %2081 = vmatprep.subr.bf16.mxu0 0
        %2082 = vmatpush1.bf16.msra.mxu0 %v2013
        %2083 = vmatprep.subr.bf16.mxu0 0
        %2084 = vmatpush1.bf16.msra.mxu0 %v2012
        %2085 = vmatprep.subr.bf16.mxu0 0
        %2086 = vmatpush1.bf16.msra.mxu0 %v2011
        %2087 = vmatprep.subr.bf16.mxu0 0
        %2088 = vmatpush1.bf16.msra.mxu0 %v2010
        %2089 = vmatprep.subr.bf16.mxu0 0
        %2090 = vmatpush1.bf16.msra.mxu0 %v2009
        %2091 = vmatprep.subr.bf16.mxu0 0
        %2092 = vmatpush1.bf16.msra.mxu0 %v2008
        %2093 = vmatprep.subr.bf16.mxu0 0
        %2094 = vmatpush1.bf16.msra.mxu0 %v2007
        %2095 = vmatprep.subr.bf16.mxu0 0
        %2096 = vmatpush2.bf16.msra.mxu0 0
        %2097 = vmatprep.subr.bf16.mxu0 0
        %2098 = vmatpush2.bf16.msra.mxu0 0
        %2099 = vmatprep.subr.bf16.mxu0 0
        %2100 = vmatpush2.bf16.msra.mxu0 0
        %2101 = vmatprep.subr.bf16.mxu0 0
        %2102 = vmatpush2.bf16.msra.mxu0 0
        %2103 = vmatprep.subr.bf16.mxu0 0
        %2104 = vmatpush2.bf16.msra.mxu0 0
        %2105 = vmatprep.subr.bf16.mxu0 0
        %2106 = vmatpush2.bf16.msra.mxu0 0
        %2107 = vmatprep.subr.bf16.mxu0 0
        %2108 = vmatpush2.bf16.msra.mxu0 0
        %2109 = vmatprep.subr.bf16.mxu0 0
        %2110 = vmatpush2.bf16.msra.mxu0 0
        %2111 = vmatprep.mubr.bf16.mxu0 0
        %2112 = vmatmul.mubr.bf16.gmra.mxu0 %v1891
        %v2113 = vpop.f32.mrf.mxu0
        %v2114 = vadd.f32 %v2074, %v2113
        %v2115 = vpop.f32.mrf.mxu0
        %v2116 = vpop.f32.mrf.mxu0
        %v2117 = vpop.f32.mrf.mxu0
        %2118 = vdwg.mxu0
        %vm2119 = vcmp.ge.f32.partialorder %v2114, 0.0
        %v2120 = vmul.f32 %v2114, 0.01
        %v2121 = vsel %vm2119, %v2114, %v2120
        %s2122 = scalar_lea.vmem [#allocation6], 8
        %v2123 = vld [vmem:[%s2122] sm:$0xf]
        %2124 = vst [vmem:[#allocation3] sm:$0xf] %v2123
        %v2125 = vpack.c.bf16 %v2121, %v2121
        %2126 = vst [vmem:[#allocation3 + $0x4] sm:$0xf] %v2125
        %v2127 = vld [vmem:[#allocation3 + $0x4] sm:$0xf]
        %2128 = vst [vmem:[%s2122] sm:$0xf] %v2127
        %v2129 = vld [vmem:[#allocation3] sm:$0xf]
        %2130 = vst [vmem:[#allocation4] sm:$0xf] %v2129
        %v2131 = vld [vmem:[#allocation3] sm:$0xc]
        %v2132 = vld [vmem:[#allocation3 + $0x4] sm:$0x3]
        %v2135 = vrot.slane %v2131, 6
        %v2136 = vrot.slane %v2135, 4
        %v2137 = vrot.slane %v2132, 6
        %v2138 = vsel %vm1159, %v2136, %v2137
        %2140 = vst [vmem:[#allocation4 + $0x4] sm:$0xf] %v2138
        %v2141 = vld [vmem:[#allocation3 + $0x4] sm:$0xf]
        %2142 = vst [vmem:[#allocation4 + $0x8] sm:$0xf] %v2141
        %v2143 = vld [vmem:[#allocation4] sm:$0xff]
        %v2144 = vld [vmem:[#allocation4 + $0x8] sm:$0xf]
        %s2145 = scalar_lea.vmem [#allocation12], 384
        %v2146 = vld [vmem:[%s2145] sm:$0xf]
        %v2147 = vld [vmem:[%s2145 + $0x4] sm:$0xf]
        %v2148 = vld [vmem:[%s2145 + $0x8] sm:$0xf]
        %v2149 = vld [vmem:[%s2145 + $0xc] sm:$0xf]
        %v2150 = vld [vmem:[%s2145 + $0x10] sm:$0xf]
        %v2151 = vld [vmem:[%s2145 + $0x14] sm:$0xf]
        %v2152 = vld [vmem:[%s2145 + $0x18] sm:$0xf]
        %v2153 = vld [vmem:[%s2145 + $0x1c] sm:$0xf]
        %v2154 = vld [vmem:[%s2145 + $0x20] sm:$0xf]
        %v2155 = vld [vmem:[%s2145 + $0x24] sm:$0xf]
        %v2156 = vld [vmem:[%s2145 + $0x28] sm:$0xf]
        %v2157 = vld [vmem:[%s2145 + $0x2c] sm:$0xf]
        %v2158 = vld [vmem:[%s2145 + $0x30] sm:$0xf]
        %v2159 = vld [vmem:[%s2145 + $0x34] sm:$0xf]
        %v2160 = vld [vmem:[%s2145 + $0x38] sm:$0xf]
        %v2161 = vld [vmem:[%s2145 + $0x3c] sm:$0xf]
        %v2162 = vld [vmem:[%s2145 + $0x40] sm:$0xf]
        %v2163 = vld [vmem:[%s2145 + $0x44] sm:$0xf]
        %v2164 = vld [vmem:[%s2145 + $0x48] sm:$0xf]
        %v2165 = vld [vmem:[%s2145 + $0x4c] sm:$0xf]
        %v2166 = vld [vmem:[%s2145 + $0x50] sm:$0xf]
        %v2167 = vld [vmem:[%s2145 + $0x54] sm:$0xf]
        %v2168 = vld [vmem:[%s2145 + $0x58] sm:$0xf]
        %v2169 = vld [vmem:[%s2145 + $0x5c] sm:$0xf]
        %v2170 = vld [vmem:[%s2145 + $0x60] sm:$0xf]
        %v2171 = vld [vmem:[%s2145 + $0x64] sm:$0xf]
        %v2172 = vld [vmem:[%s2145 + $0x68] sm:$0xf]
        %v2173 = vld [vmem:[%s2145 + $0x6c] sm:$0xf]
        %v2174 = vld [vmem:[%s2145 + $0x70] sm:$0xf]
        %v2175 = vld [vmem:[%s2145 + $0x74] sm:$0xf]
        %v2176 = vld [vmem:[%s2145 + $0x78] sm:$0xf]
        %v2177 = vld [vmem:[%s2145 + $0x7c] sm:$0xf]
        %v2178 = vld [vmem:[%s2145 + $0x80] sm:$0xf]
        %v2179 = vld [vmem:[%s2145 + $0x84] sm:$0xf]
        %v2180 = vld [vmem:[%s2145 + $0x88] sm:$0xf]
        %v2181 = vld [vmem:[%s2145 + $0x8c] sm:$0xf]
        %v2182 = vld [vmem:[%s2145 + $0x90] sm:$0xf]
        %v2183 = vld [vmem:[%s2145 + $0x94] sm:$0xf]
        %v2184 = vld [vmem:[%s2145 + $0x98] sm:$0xf]
        %v2185 = vld [vmem:[%s2145 + $0x9c] sm:$0xf]
        %v2186 = vld [vmem:[%s2145 + $0xa0] sm:$0xf]
        %v2187 = vld [vmem:[%s2145 + $0xa4] sm:$0xf]
        %v2188 = vld [vmem:[%s2145 + $0xa8] sm:$0xf]
        %v2189 = vld [vmem:[%s2145 + $0xac] sm:$0xf]
        %v2190 = vld [vmem:[%s2145 + $0xb0] sm:$0xf]
        %v2191 = vld [vmem:[%s2145 + $0xb4] sm:$0xf]
        %v2192 = vld [vmem:[%s2145 + $0xb8] sm:$0xf]
        %v2193 = vld [vmem:[%s2145 + $0xbc] sm:$0xf]
        %s2194 = scalar_lea.vmem %s4, 2
        %v2195 = vld [vmem:[%s2194] sm:$0x1]
        %v2197 = vlaneseq
        %v2198 = vshrl.u32 %v2197, 7
        %v2199 = vsub.s32 0, %v2198
        %v2200 = vrot.slane %v2195, %v2199
        %v2204 = vunpack.c.l.b16 %v2143
        %v2205 = vunpack.c.h.b16 %v2143
        %v2206 = vunpack.c.l.b16 %v2144
        %v2207 = vpack.c.b16 %v2204, %v2204
        %v2208 = vpack.c.b16 %v2205, %v2205
        %v2209 = vpack.c.b16 %v2206, %v2206
        %v2261 = vunpack.c.l.b16 %v2146
        %v2262 = vunpack.c.l.b16 %v2147
        %v2263 = vunpack.c.l.b16 %v2148
        %v2264 = vunpack.c.l.b16 %v2149
        %v2265 = vunpack.c.l.b16 %v2150
        %v2266 = vunpack.c.l.b16 %v2151
        %v2267 = vunpack.c.l.b16 %v2152
        %v2268 = vunpack.c.l.b16 %v2153
        %v2269 = vunpack.c.l.b16 %v2154
        %v2270 = vunpack.c.l.b16 %v2155
        %v2271 = vunpack.c.l.b16 %v2156
        %v2272 = vunpack.c.l.b16 %v2157
        %v2273 = vunpack.c.l.b16 %v2158
        %v2274 = vunpack.c.l.b16 %v2159
        %v2275 = vunpack.c.l.b16 %v2160
        %v2276 = vunpack.c.l.b16 %v2161
        %v2277 = vunpack.c.l.b16 %v2162
        %v2278 = vunpack.c.l.b16 %v2163
        %v2279 = vunpack.c.l.b16 %v2164
        %v2280 = vunpack.c.l.b16 %v2165
        %v2281 = vunpack.c.l.b16 %v2166
        %v2282 = vunpack.c.l.b16 %v2167
        %v2283 = vunpack.c.l.b16 %v2168
        %v2284 = vunpack.c.l.b16 %v2169
        %v2285 = vunpack.c.l.b16 %v2170
        %v2286 = vunpack.c.l.b16 %v2171
        %v2287 = vunpack.c.l.b16 %v2172
        %v2288 = vunpack.c.l.b16 %v2173
        %v2289 = vunpack.c.l.b16 %v2174
        %v2290 = vunpack.c.l.b16 %v2175
        %v2291 = vunpack.c.l.b16 %v2176
        %v2292 = vunpack.c.l.b16 %v2177
        %v2293 = vunpack.c.l.b16 %v2178
        %v2294 = vunpack.c.l.b16 %v2179
        %v2295 = vunpack.c.l.b16 %v2180
        %v2296 = vunpack.c.l.b16 %v2181
        %v2297 = vunpack.c.l.b16 %v2182
        %v2298 = vunpack.c.l.b16 %v2183
        %v2299 = vunpack.c.l.b16 %v2184
        %v2300 = vunpack.c.l.b16 %v2185
        %v2301 = vunpack.c.l.b16 %v2186
        %v2302 = vunpack.c.l.b16 %v2187
        %v2303 = vunpack.c.l.b16 %v2188
        %v2304 = vunpack.c.l.b16 %v2189
        %v2305 = vunpack.c.l.b16 %v2190
        %v2306 = vunpack.c.l.b16 %v2191
        %v2307 = vunpack.c.l.b16 %v2192
        %v2308 = vunpack.c.l.b16 %v2193
        %v2309 = vpack.c.b16 %v2262, %v2261
        %v2310 = vpack.c.b16 %v2264, %v2263
        %v2311 = vpack.c.b16 %v2266, %v2265
        %v2312 = vpack.c.b16 %v2268, %v2267
        %v2313 = vpack.c.b16 %v2270, %v2269
        %v2314 = vpack.c.b16 %v2272, %v2271
        %v2315 = vpack.c.b16 %v2274, %v2273
        %v2316 = vpack.c.b16 %v2276, %v2275
        %v2317 = vpack.c.b16 %v2278, %v2277
        %v2318 = vpack.c.b16 %v2280, %v2279
        %v2319 = vpack.c.b16 %v2282, %v2281
        %v2320 = vpack.c.b16 %v2284, %v2283
        %v2321 = vpack.c.b16 %v2286, %v2285
        %v2322 = vpack.c.b16 %v2288, %v2287
        %v2323 = vpack.c.b16 %v2290, %v2289
        %v2324 = vpack.c.b16 %v2292, %v2291
        %v2325 = vpack.c.b16 %v2294, %v2293
        %v2326 = vpack.c.b16 %v2296, %v2295
        %v2327 = vpack.c.b16 %v2298, %v2297
        %v2328 = vpack.c.b16 %v2300, %v2299
        %v2329 = vpack.c.b16 %v2302, %v2301
        %v2330 = vpack.c.b16 %v2304, %v2303
        %v2331 = vpack.c.b16 %v2306, %v2305
        %v2332 = vpack.c.b16 %v2308, %v2307
        %2357 = vmatprep.subr.bf16.mxu0 0
        %2358 = vmatpush1.bf16.msra.mxu0 %v2316
        %2359 = vmatprep.subr.bf16.mxu0 0
        %2360 = vmatpush1.bf16.msra.mxu0 %v2315
        %2361 = vmatprep.subr.bf16.mxu0 0
        %2362 = vmatpush1.bf16.msra.mxu0 %v2314
        %2363 = vmatprep.subr.bf16.mxu0 0
        %2364 = vmatpush1.bf16.msra.mxu0 %v2313
        %2365 = vmatprep.subr.bf16.mxu0 0
        %2366 = vmatpush1.bf16.msra.mxu0 %v2312
        %2367 = vmatprep.subr.bf16.mxu0 0
        %2368 = vmatpush1.bf16.msra.mxu0 %v2311
        %2369 = vmatprep.subr.bf16.mxu0 0
        %2370 = vmatpush1.bf16.msra.mxu0 %v2310
        %2371 = vmatprep.subr.bf16.mxu0 0
        %2372 = vmatpush1.bf16.msra.mxu0 %v2309
        %2373 = vmatprep.subr.bf16.mxu0 0
        %2374 = vmatpush2.bf16.msra.mxu0 %v2324
        %2375 = vmatprep.subr.bf16.mxu0 0
        %2376 = vmatpush2.bf16.msra.mxu0 %v2323
        %2377 = vmatprep.subr.bf16.mxu0 0
        %2378 = vmatpush2.bf16.msra.mxu0 %v2322
        %2379 = vmatprep.subr.bf16.mxu0 0
        %2380 = vmatpush2.bf16.msra.mxu0 %v2321
        %2381 = vmatprep.subr.bf16.mxu0 0
        %2382 = vmatpush2.bf16.msra.mxu0 %v2320
        %2383 = vmatprep.subr.bf16.mxu0 0
        %2384 = vmatpush2.bf16.msra.mxu0 %v2319
        %2385 = vmatprep.subr.bf16.mxu0 0
        %2386 = vmatpush2.bf16.msra.mxu0 %v2318
        %2387 = vmatprep.subr.bf16.mxu0 0
        %2388 = vmatpush2.bf16.msra.mxu0 %v2317
        %2389 = vmatprep.mubr.bf16.mxu0 %v2208
        %2390 = vmatmul.mubr.bf16.gmra.mxu0 %v2207
        %v2391 = vpop.f32.mrf.mxu0
        %v2392 = vadd.f32 %v2200, %v2391
        %v2393 = vpop.f32.mrf.mxu0
        %v2394 = vpop.f32.mrf.mxu0
        %v2395 = vpop.f32.mrf.mxu0
        %2396 = vdwg.mxu0
        %2397 = vmatprep.subr.bf16.mxu0 0
        %2398 = vmatpush1.bf16.msra.mxu0 %v2332
        %2399 = vmatprep.subr.bf16.mxu0 0
        %2400 = vmatpush1.bf16.msra.mxu0 %v2331
        %2401 = vmatprep.subr.bf16.mxu0 0
        %2402 = vmatpush1.bf16.msra.mxu0 %v2330
        %2403 = vmatprep.subr.bf16.mxu0 0
        %2404 = vmatpush1.bf16.msra.mxu0 %v2329
        %2405 = vmatprep.subr.bf16.mxu0 0
        %2406 = vmatpush1.bf16.msra.mxu0 %v2328
        %2407 = vmatprep.subr.bf16.mxu0 0
        %2408 = vmatpush1.bf16.msra.mxu0 %v2327
        %2409 = vmatprep.subr.bf16.mxu0 0
        %2410 = vmatpush1.bf16.msra.mxu0 %v2326
        %2411 = vmatprep.subr.bf16.mxu0 0
        %2412 = vmatpush1.bf16.msra.mxu0 %v2325
        %2413 = vmatprep.subr.bf16.mxu0 0
        %2414 = vmatpush2.bf16.msra.mxu0 0
        %2415 = vmatprep.subr.bf16.mxu0 0
        %2416 = vmatpush2.bf16.msra.mxu0 0
        %2417 = vmatprep.subr.bf16.mxu0 0
        %2418 = vmatpush2.bf16.msra.mxu0 0
        %2419 = vmatprep.subr.bf16.mxu0 0
        %2420 = vmatpush2.bf16.msra.mxu0 0
        %2421 = vmatprep.subr.bf16.mxu0 0
        %2422 = vmatpush2.bf16.msra.mxu0 0
        %2423 = vmatprep.subr.bf16.mxu0 0
        %2424 = vmatpush2.bf16.msra.mxu0 0
        %2425 = vmatprep.subr.bf16.mxu0 0
        %2426 = vmatpush2.bf16.msra.mxu0 0
        %2427 = vmatprep.subr.bf16.mxu0 0
        %2428 = vmatpush2.bf16.msra.mxu0 0
        %2429 = vmatprep.mubr.bf16.mxu0 0
        %2430 = vmatmul.mubr.bf16.gmra.mxu0 %v2209
        %v2431 = vpop.f32.mrf.mxu0
        %v2432 = vadd.f32 %v2392, %v2431
        %v2433 = vpop.f32.mrf.mxu0
        %v2434 = vpop.f32.mrf.mxu0
        %v2435 = vpop.f32.mrf.mxu0
        %2436 = vdwg.mxu0
        %vm2437 = vcmp.ge.f32.partialorder %v2432, 0.0
        %v2438 = vmul.f32 %v2432, 0.01
        %v2439 = vsel %vm2437, %v2432, %v2438
        %v2440 = vld [vmem:[#allocation2 + $0x4] sm:$0xf]
        %s2441 = scalar_lea.vmem [#allocation13], 64
        %v2442 = vld [vmem:[%s2441] sm:$0xf]
        %v2443 = vld [vmem:[%s2441 + $0x4] sm:$0xf]
        %v2444 = vld [vmem:[%s2441 + $0x8] sm:$0xf]
        %v2445 = vld [vmem:[%s2441 + $0xc] sm:$0xf]
        %v2446 = vld [vmem:[%s2441 + $0x10] sm:$0xf]
        %v2447 = vld [vmem:[%s2441 + $0x14] sm:$0xf]
        %v2448 = vld [vmem:[%s2441 + $0x18] sm:$0xf]
        %v2449 = vld [vmem:[%s2441 + $0x1c] sm:$0xf]
        %v2450 = vld [vmem:[%s2441 + $0x20] sm:$0xf]
        %v2451 = vld [vmem:[%s2441 + $0x24] sm:$0xf]
        %v2452 = vld [vmem:[%s2441 + $0x28] sm:$0xf]
        %v2453 = vld [vmem:[%s2441 + $0x2c] sm:$0xf]
        %v2454 = vld [vmem:[%s2441 + $0x30] sm:$0xf]
        %v2455 = vld [vmem:[%s2441 + $0x34] sm:$0xf]
        %v2456 = vld [vmem:[%s2441 + $0x38] sm:$0xf]
        %v2457 = vld [vmem:[%s2441 + $0x3c] sm:$0xf]
        %s2458 = scalar_lea.vmem %s6, 1
        %v2459 = vld [vmem:[%s2458] sm:$0x1]
        %v2461 = vlaneseq
        %v2462 = vshrl.u32 %v2461, 7
        %v2463 = vsub.s32 0, %v2462
        %v2464 = vrot.slane %v2459, %v2463
        %v2482 = vunpack.c.l.b16 %v2442
        %v2483 = vunpack.c.l.b16 %v2443
        %v2484 = vunpack.c.l.b16 %v2444
        %v2485 = vunpack.c.l.b16 %v2445
        %v2486 = vunpack.c.l.b16 %v2446
        %v2487 = vunpack.c.l.b16 %v2447
        %v2488 = vunpack.c.l.b16 %v2448
        %v2489 = vunpack.c.l.b16 %v2449
        %v2490 = vunpack.c.l.b16 %v2450
        %v2491 = vunpack.c.l.b16 %v2451
        %v2492 = vunpack.c.l.b16 %v2452
        %v2493 = vunpack.c.l.b16 %v2453
        %v2494 = vunpack.c.l.b16 %v2454
        %v2495 = vunpack.c.l.b16 %v2455
        %v2496 = vunpack.c.l.b16 %v2456
        %v2497 = vunpack.c.l.b16 %v2457
        %v2498 = vpack.c.b16 %v2483, %v2482
        %v2499 = vpack.c.b16 %v2485, %v2484
        %v2500 = vpack.c.b16 %v2487, %v2486
        %v2501 = vpack.c.b16 %v2489, %v2488
        %v2502 = vpack.c.b16 %v2491, %v2490
        %v2503 = vpack.c.b16 %v2493, %v2492
        %v2504 = vpack.c.b16 %v2495, %v2494
        %v2505 = vpack.c.b16 %v2497, %v2496
        %2514 = vmatprep.subr.bf16.mxu0 0
        %2515 = vmatpush1.bf16.msra.mxu0 %v2505
        %2516 = vmatprep.subr.bf16.mxu0 0
        %2517 = vmatpush1.bf16.msra.mxu0 %v2504
        %2518 = vmatprep.subr.bf16.mxu0 0
        %2519 = vmatpush1.bf16.msra.mxu0 %v2503
        %2520 = vmatprep.subr.bf16.mxu0 0
        %2521 = vmatpush1.bf16.msra.mxu0 %v2502
        %2522 = vmatprep.subr.bf16.mxu0 0
        %2523 = vmatpush1.bf16.msra.mxu0 %v2501
        %2524 = vmatprep.subr.bf16.mxu0 0
        %2525 = vmatpush1.bf16.msra.mxu0 %v2500
        %2526 = vmatprep.subr.bf16.mxu0 0
        %2527 = vmatpush1.bf16.msra.mxu0 %v2499
        %2528 = vmatprep.subr.bf16.mxu0 0
        %2529 = vmatpush1.bf16.msra.mxu0 %v2498
        %2530 = vmatprep.subr.bf16.mxu0 0
        %2531 = vmatpush2.bf16.msra.mxu0 0
        %2532 = vmatprep.subr.bf16.mxu0 0
        %2533 = vmatpush2.bf16.msra.mxu0 0
        %2534 = vmatprep.subr.bf16.mxu0 0
        %2535 = vmatpush2.bf16.msra.mxu0 0
        %2536 = vmatprep.subr.bf16.mxu0 0
        %2537 = vmatpush2.bf16.msra.mxu0 0
        %2538 = vmatprep.subr.bf16.mxu0 0
        %2539 = vmatpush2.bf16.msra.mxu0 0
        %2540 = vmatprep.subr.bf16.mxu0 0
        %2541 = vmatpush2.bf16.msra.mxu0 0
        %2542 = vmatprep.subr.bf16.mxu0 0
        %2543 = vmatpush2.bf16.msra.mxu0 0
        %2544 = vmatprep.subr.bf16.mxu0 0
        %2545 = vmatpush2.bf16.msra.mxu0 0
        %2546 = vmatprep.mubr.bf16.mxu0 0
        %2547 = vmatmul.mubr.bf16.gmra.mxu0 %v2440
        %v2548 = vpop.f32.mrf.mxu0
        %v2549 = vadd.f32 %v2464, %v2548
        %v2550 = vpop.f32.mrf.mxu0
        %v2551 = vpop.f32.mrf.mxu0
        %v2552 = vpop.f32.mrf.mxu0
        %2553 = vdwg.mxu0
        %v2554 = vadd.f32 %v2439, %v2549
        %v2555 = vpack.c.bf16 %v2554, %v2554
        %2556 = vst [vmem:[%s355] sm:$0xf] %v2555
        %s2557 = sand.u32 %s202, 1
        %s2558 = scalar_lea.sflag [#allocation9], %s2557
        %s2559 = sand.u32 %s202, 1
        %s2560 = smul.addr %s2559, 4
        %s2561 = scalar_lea.vmem [#allocation15], %s2560
        // Predicated region
        $region69: #{tpu_custom_call.1} parent=47 // pred_check
          %p2562 = pneg %p212
        $region70: #{tpu_custom_call.1} parent=47 // pred_check_branch
          %2564 = sbr.rel (%p2562) target = $region72
        $region71: #{tpu_custom_call.1} parent=47 // pred_region
          %s2566 = ssub.s32 64, 64
          %2567 = vsyncadd %s2558, %s2566
          %s2568 = smul.addr %s30, 2
          %s2569 = sadd.s32 %s31, %s2568
          %s2570 = smul.addr %s2569, 64
          %s2571 = scalar_lea.hbm %s7, %s2570
          %s2573 = sshll.u32 %s2561, 4
          %s2574 = int_to_ptr.vmem [resolvable:$true] %s2573
          %2576 = dma.vmem_to_hbm [thread:$0]  %s2574, 64, %s2571, %s2558
        $region72: #{tpu_custom_call.1} parent=47 // pred_fallthru
          _
      $region48: #{tpu_custom_call.1} parent=5 // pred_fallthru
        _
      %p2577 = scmp.le.s32.totalorder 2, %s21
      // Predicated region
      $region73: #{tpu_custom_call.1} parent=5 // pred_check
        %p2578 = pneg %p2577
      $region74: #{tpu_custom_call.1} parent=5 // pred_check_branch
        %2580 = sbr.rel (%p2578) target = $region76
      $region75: #{tpu_custom_call.1} parent=5 // pred_region
        %s2581 = ssub.s32 %s21, 2
        // Predicated region
        $region77: #{tpu_custom_call.1} parent=75 // pred_check
          %p2582 = pneg %p218
        $region78: #{tpu_custom_call.1} parent=75 // pred_check_branch
          %2584 = sbr.rel (%p2582) target = $region80
        $region79: #{tpu_custom_call.1} parent=75 // pred_region
          %s2585 = sand.u32 %s203, 1
          %s2586 = scalar_lea.sflag [#allocation9], %s2585
          %s2587 = sand.u32 %s203, 1
          %s2588 = smul.addr %s2587, 4
          %s2589 = scalar_lea.vmem [#allocation15], %s2588
          %2590 = dma.done %s2586, 64
        $region80: #{tpu_custom_call.1} parent=75 // pred_fallthru
          _
      $region76: #{tpu_custom_call.1} parent=5 // pred_fallthru
        _
    $region6: #{tpu_custom_call.1} parent=1 // loop_footer
      %s25 = sadd.s32 1, %s21
    $region7: #{tpu_custom_call.1} parent=1 // loop_footer_branch
      %20 = sbr.rel target = $region3
    $region8: #{tpu_custom_call.1} parent=1 // loop_exit
      _
    %2591 = vsyncpa [#allocation8], 1
    %s2592 = scalar_lea.sflag [#allocation8], 1
    %2593 = vsyncpa %s2592, 1
    %2594 = vsyncpa [#allocation11], 1
    %2595 = vsyncpa [#allocation14], 1
    %2596 = vsyncpa [#allocation9], 1
    %s2597 = scalar_lea.sflag [#allocation9], 1
    %2598 = vsyncpa %s2597, 1

// kernel: tpu_custom_call.1
$region0: #{tpu_custom_call.1}
  #allocation0 [shape = 'u32[]', space=smem, size = 0x4, offset = 0x4, fixed_abs, tag = 'smem constant byte address 0x4 - core index']
  #allocation1 [shape = 'u32[144,128]{1,0:T(1,128)}', space=vmem, size = 0x12000, scoped, tag = 'internal scratch']
  #allocation2 [shape = 'bf16[16,128]{1,0:T(8,128)(2,1)}', space=vmem, size = 0x1000, scoped, tag = 'scratch operand']
  #allocation3 [shape = 'bf16[16,128]{1,0:T(8,128)(2,1)}', space=vmem, size = 0x1000, scoped, tag = 'scratch operand']
  #allocation4 [shape = 'bf16[8,384]{1,0:T(8,128)(2,1)}', space=vmem, size = 0x1800, scoped, tag = 'scratch operand']
  #allocation5 [shape = 'bf16[3,8,128]{2,1,0:T(8,128)(2,1)}', space=vmem, size = 0x1800, scoped, tag = 'scratch operand']
  #allocation6 [shape = 'bf16[3,8,128]{2,1,0:T(8,128)(2,1)}', space=vmem, size = 0x1800, scoped, tag = 'scratch operand']
  %s0 = inlined_call_operand.hbm [shape: bf16[2,16,128], index: 0, kind: input, shape index: {}]
  %s1 = inlined_call_operand.hbm [shape: bf16[3,384,128], index: 1, kind: input, shape index: {}]
  %s2 = inlined_call_operand.vmem [shape: f32[3,1,128], index: 2, kind: input, shape index: {}]
  %s3 = inlined_call_operand.hbm [shape: bf16[3,384,128], index: 3, kind: input, shape index: {}]
  %s4 = inlined_call_operand.vmem [shape: f32[3,1,128], index: 4, kind: input, shape index: {}]
  %s5 = inlined_call_operand.hbm [shape: bf16[2,128,128], index: 5, kind: input, shape index: {}]
  %s6 = inlined_call_operand.vmem [shape: f32[2,1,128], index: 6, kind: input, shape index: {}]
  %s7 = inlined_call_operand.hbm [shape: bf16[2,16,128], index: 7, kind: output, shape index: {}]
  %s8 = sld [smem:[#allocation0]]
  $region81: #{tpu_custom_call.1} parent=0
    _
  %s10 = ssub.s32 1, %s8
  %s11 = scalar_select 0, %s10, %s8
  $region1: #{tpu_custom_call.1} parent=0
    #allocation7 [shape = 'u8[4096]{0}', space=vmem, size = 0x1000, scoped, tag = 'input window, operand 0']
    #allocation8 [shape = 's32[2]{0}', space=sflag, size = 0x8, scoped, tag = 'scoped memory for tpu_custom_call.1']
    #allocation9 [shape = 's32[2]{0}', space=sflag, size = 0x8, scoped, tag = 'scoped memory for tpu_custom_call.1']
    #allocation10 [shape = 'u8[294912]{0}', space=vmem, size = 0x48000, scoped, tag = 'input window, operand 1, single buffered']
    #allocation11 [shape = 's32[1]{0}', space=sflag, size = 0x4, scoped, tag = 'scoped memory for tpu_custom_call.1']
    #allocation12 [shape = 'u8[294912]{0}', space=vmem, size = 0x48000, scoped, tag = 'input window, operand 3, single buffered']
    #allocation13 [shape = 'u8[65536]{0}', space=vmem, size = 0x10000, scoped, tag = 'input window, operand 5, single buffered']
    #allocation14 [shape = 's32[1]{0}', space=sflag, size = 0x4, scoped, tag = 'scoped memory for tpu_custom_call.1']
    #allocation15 [shape = 'u8[4096]{0}', space=vmem, size = 0x1000, scoped, tag = 'output window, operand 0']
    %12 = vsyncpa [#allocation8], 0
    %s13 = scalar_lea.sflag [#allocation8], 1
    %14 = vsyncpa %s13, 0
    %15 = vsyncpa [#allocation11], 0
    %16 = vsyncpa [#allocation14], 0
    %17 = vsyncpa [#allocation9], 0
    %s18 = scalar_lea.sflag [#allocation9], 1
    %19 = vsyncpa %s18, 0
    loop: start=0, step=1, limit=6
    $region2: #{tpu_custom_call.1} parent=1 // loop_pre_header
      _
    $region3: #{tpu_custom_call.1} parent=1 // loop_header
      %s21 = sphi 0, %s25
      %p22 = scmp.ge.s32.totalorder %s21, 6
      %s28 = sphi 0, %s40
      %s29 = sphi 0, %s36
      %s30 = sphi 0, %s28
      %s31 = sphi 0, %s29
      %s32 = sphi 0, %s30
      %s33 = sphi 0, %s31
      %s45 = sphi 0, %s47
      %s48 = sphi 0, %s45
      %s49 = sphi 0, %s48
      %s65 = sphi 0, %s49
      %s69 = sphi 0, %s69
      %s71 = sphi 0, %s69
      %s72 = sphi 0, %s71
      %s86 = sphi 0, %s72
      %s90 = sphi 0, %s90
      %s92 = sphi 0, %s90
      %s93 = sphi 0, %s92
      %s107 = sphi 0, %s93
      %s111 = sphi 0, %s111
      %s113 = sphi 0, %s111
      %s114 = sphi 0, %s113
      %s128 = sphi 0, %s114
      %s132 = sphi 0, %s132
      %s134 = sphi 0, %s132
      %s135 = sphi 0, %s134
      %s149 = sphi 0, %s135
      %s153 = sphi 0, %s153
      %s155 = sphi 0, %s153
      %s156 = sphi 0, %s155
      %s170 = sphi 0, %s156
      %s174 = sphi 0, %s174
      %s176 = sphi 0, %s174
      %s177 = sphi 0, %s176
      %s191 = sphi 0, %s177
      %s199 = sphi 0, %s201
      %s202 = sphi 0, %s199
      %s203 = sphi 0, %s202
      %s219 = sphi 0, %s203
    $region4: #{tpu_custom_call.1} parent=1 // loop_header_branch
      %24 = sbr.rel (%p22) target = $region8
    $region5: #{tpu_custom_call.1} parent=1 // loop_body
      %s26 = ssub.s32 %s21, 1
      %s27 = ssub.s32 %s21, 2
      %s34 = sadd.s32 1, %s29
      %p35 = scmp.ge.s32.totalorder %s34, 2
      %s36 = scalar_select %p35, 0, %s34
      %s37 = sadd.s32 1, %s28
      %s38 = scalar_select %p35, %s37, %s28
      %p39 = scmp.ge.s32.totalorder %s38, 2
      %s40 = scalar_select %p39, 0, %s38
      %s41 = ssub.s32 %s28, %s40
      %s42 = ssub.s32 %s29, %s36
      %s43 = sor.u32 %s41, %s42
      %p44 = scmp.eq.s32.totalorder %s43, 0
      %s46 = sadd.s32 %s45, 1
      %s47 = scalar_select %p44, %s45, %s46
      %p50 = pneg %p44
      %p51 = scmp.eq.s32.totalorder %s21, 3
      %p52 = por %p50, %p51
      %p53 = scmp.ne.s32.totalorder %s45, %s48
      %p54 = scmp.eq.s32.totalorder %s21, 0
      %p55 = por %p53, %p54
      %p56 = scmp.ne.s32.totalorder %s45, %s48
      %p57 = scmp.eq.s32.totalorder %s26, 3
      %p58 = por %p56, %p57
      %p59 = scmp.ne.s32.totalorder %s48, %s49
      %p60 = scmp.eq.s32.totalorder %s26, 0
      %p61 = por %p59, %p60
      %p62 = scmp.ne.s32.totalorder %s48, %s49
      %p63 = scmp.eq.s32.totalorder %s27, 3
      %p64 = por %p62, %p63
      %p66 = scmp.ne.s32.totalorder %s49, %s65
      %p67 = scmp.eq.s32.totalorder %s27, 0
      %p68 = por %p66, %p67
      %s70 = sadd.s32 %s69, 1
      %p73 = scmp.eq.s32.totalorder %s21, 3
      %p74 = scmp.ne.s32.totalorder %s69, %s71
      %p75 = scmp.eq.s32.totalorder %s21, 0
      %p76 = por %p74, %p75
      %p77 = scmp.ne.s32.totalorder %s69, %s71
      %p78 = scmp.eq.s32.totalorder %s26, 3
      %p79 = por %p77, %p78
      %p80 = scmp.ne.s32.totalorder %s71, %s72
      %p81 = scmp.eq.s32.totalorder %s26, 0
      %p82 = por %p80, %p81
      %p83 = scmp.ne.s32.totalorder %s71, %s72
      %p84 = scmp.eq.s32.totalorder %s27, 3
      %p85 = por %p83, %p84
      %p87 = scmp.ne.s32.totalorder %s72, %s86
      %p88 = scmp.eq.s32.totalorder %s27, 0
      %p89 = por %p87, %p88
      %s91 = sadd.s32 %s90, 1
      %p94 = scmp.eq.s32.totalorder %s21, 3
      %p95 = scmp.ne.s32.totalorder %s90, %s92
      %p96 = scmp.eq.s32.totalorder %s21, 0
      %p97 = por %p95, %p96
      %p98 = scmp.ne.s32.totalorder %s90, %s92
      %p99 = scmp.eq.s32.totalorder %s26, 3
      %p100 = por %p98, %p99
      %p101 = scmp.ne.s32.totalorder %s92, %s93
      %p102 = scmp.eq.s32.totalorder %s26, 0
      %p103 = por %p101, %p102
      %p104 = scmp.ne.s32.totalorder %s92, %s93
      %p105 = scmp.eq.s32.totalorder %s27, 3
      %p106 = por %p104, %p105
      %p108 = scmp.ne.s32.totalorder %s93, %s107
      %p109 = scmp.eq.s32.totalorder %s27, 0
      %p110 = por %p108, %p109
      %s112 = sadd.s32 %s111, 1
      %p115 = scmp.eq.s32.totalorder %s21, 3
      %p116 = scmp.ne.s32.totalorder %s111, %s113
      %p117 = scmp.eq.s32.totalorder %s21, 0
      %p118 = por %p116, %p117
      %p119 = scmp.ne.s32.totalorder %s111, %s113
      %p120 = scmp.eq.s32.totalorder %s26, 3
      %p121 = por %p119, %p120
      %p122 = scmp.ne.s32.totalorder %s113, %s114
      %p123 = scmp.eq.s32.totalorder %s26, 0
      %p124 = por %p122, %p123
      %p125 = scmp.ne.s32.totalorder %s113, %s114
      %p126 = scmp.eq.s32.totalorder %s27, 3
      %p127 = por %p125, %p126
      %p129 = scmp.ne.s32.totalorder %s114, %s128
      %p130 = scmp.eq.s32.totalorder %s27, 0
      %p131 = por %p129, %p130
      %s133 = sadd.s32 %s132, 1
      %p136 = scmp.eq.s32.totalorder %s21, 3
      %p137 = scmp.ne.s32.totalorder %s132, %s134
      %p138 = scmp.eq.s32.totalorder %s21, 0
      %p139 = por %p137, %p138
      %p140 = scmp.ne.s32.totalorder %s132, %s134
      %p141 = scmp.eq.s32.totalorder %s26, 3
      %p142 = por %p140, %p141
      %p143 = scmp.ne.s32.totalorder %s134, %s135
      %p144 = scmp.eq.s32.totalorder %s26, 0
      %p145 = por %p143, %p144
      %p146 = scmp.ne.s32.totalorder %s134, %s135
      %p147 = scmp.eq.s32.totalorder %s27, 3
      %p148 = por %p146, %p147
      %p150 = scmp.ne.s32.totalorder %s135, %s149
      %p151 = scmp.eq.s32.totalorder %s27, 0
      %p152 = por %p150, %p151
      %s154 = sadd.s32 %s153, 1
      %p157 = scmp.eq.s32.totalorder %s21, 3
      %p158 = scmp.ne.s32.totalorder %s153, %s155
      %p159 = scmp.eq.s32.totalorder %s21, 0
      %p160 = por %p158, %p159
      %p161 = scmp.ne.s32.totalorder %s153, %s155
      %p162 = scmp.eq.s32.totalorder %s26, 3
      %p163 = por %p161, %p162
      %p164 = scmp.ne.s32.totalorder %s155, %s156
      %p165 = scmp.eq.s32.totalorder %s26, 0
      %p166 = por %p164, %p165
      %p167 = scmp.ne.s32.totalorder %s155, %s156
      %p168 = scmp.eq.s32.totalorder %s27, 3
      %p169 = por %p167, %p168
      %p171 = scmp.ne.s32.totalorder %s156, %s170
      %p172 = scmp.eq.s32.totalorder %s27, 0
      %p173 = por %p171, %p172
      %s175 = sadd.s32 %s174, 1
      %p178 = scmp.eq.s32.totalorder %s21, 3
      %p179 = scmp.ne.s32.totalorder %s174, %s176
      %p180 = scmp.eq.s32.totalorder %s21, 0
      %p181 = por %p179, %p180
      %p182 = scmp.ne.s32.totalorder %s174, %s176
      %p183 = scmp.eq.s32.totalorder %s26, 3
      %p184 = por %p182, %p183
      %p185 = scmp.ne.s32.totalorder %s176, %s177
      %p186 = scmp.eq.s32.totalorder %s26, 0
      %p187 = por %p185, %p186
      %p188 = scmp.ne.s32.totalorder %s176, %s177
      %p189 = scmp.eq.s32.totalorder %s27, 3
      %p190 = por %p188, %p189
      %p192 = scmp.ne.s32.totalorder %s177, %s191
      %p193 = scmp.eq.s32.totalorder %s27, 0
      %p194 = por %p192, %p193
      %s195 = ssub.s32 %s28, %s40
      %s196 = ssub.s32 %s29, %s36
      %s197 = sor.u32 %s195, %s196
      %p198 = scmp.eq.s32.totalorder %s197, 0
      %s200 = sadd.s32 %s199, 1
      %s201 = scalar_select %p198, %s199, %s200
      %p204 = pneg %p198
      %p205 = scmp.eq.s32.totalorder %s21, 3
      %p206 = por %p204, %p205
      %p207 = scmp.ne.s32.totalorder %s199, %s202
      %p208 = scmp.eq.s32.totalorder %s21, 0
      %p209 = por %p207, %p208
      %p210 = scmp.ne.s32.totalorder %s199, %s202
      %p211 = scmp.eq.s32.totalorder %s26, 3
      %p212 = por %p210, %p211
      %p213 = scmp.ne.s32.totalorder %s202, %s203
      %p214 = scmp.eq.s32.totalorder %s26, 0
      %p215 = por %p213, %p214
      %p216 = scmp.ne.s32.totalorder %s202, %s203
      %p217 = scmp.eq.s32.totalorder %s27, 3
      %p218 = por %p216, %p217
      %p220 = scmp.ne.s32.totalorder %s203, %s219
      %p221 = scmp.eq.s32.totalorder %s27, 0
      %p222 = por %p220, %p221
      %p223 = scmp.le.s32.totalorder 1, %s21
      %p224 = scmp.lt.s32.totalorder %s21, 5
      %p225 = pnand %p223, %p224
      %p226 = pneg %p225
      // Predicated region
      $region9: #{tpu_custom_call.1} parent=5 // pred_check
        _
      $region10: #{tpu_custom_call.1} parent=5 // pred_check_branch
        %228 = sbr.rel (%p225) target = $region12
      $region11: #{tpu_custom_call.1} parent=5 // pred_region
        %s229 = ssub.s32 %s21, 1
        // Predicated region
        $region13: #{tpu_custom_call.1} parent=11 // pred_check
          %p230 = pneg %p82
        $region14: #{tpu_custom_call.1} parent=11 // pred_check_branch
          %232 = sbr.rel (%p230) target = $region16
        $region15: #{tpu_custom_call.1} parent=11 // pred_region
          %s234 = ssub.s32 9216, 9216
          %235 = vsyncadd [#allocation11], %s234
          %s236 = sshll.u32 [#allocation10], 4
          %s237 = int_to_ptr.vmem [resolvable:$true] %s236
          %242 = dma.hbm_to_vmem [thread:$0]  %s1, 9216, %s237, [#allocation11], 64, 64, 4
        $region16: #{tpu_custom_call.1} parent=11 // pred_fallthru
          _
        // Predicated region
        $region17: #{tpu_custom_call.1} parent=11 // pred_check
          %p243 = pneg %p103
        $region18: #{tpu_custom_call.1} parent=11 // pred_check_branch
          %245 = sbr.rel (%p243) target = $region20
        $region19: #{tpu_custom_call.1} parent=11 // pred_region
          _
        $region20: #{tpu_custom_call.1} parent=11 // pred_fallthru
          _
        // Predicated region
        $region21: #{tpu_custom_call.1} parent=11 // pred_check
          %p246 = pneg %p124
        $region22: #{tpu_custom_call.1} parent=11 // pred_check_branch
          %248 = sbr.rel (%p246) target = $region24
        $region23: #{tpu_custom_call.1} parent=11 // pred_region
          %s250 = ssub.s32 9216, 9216
          %251 = vsyncadd [#allocation11], %s250
          %s252 = sshll.u32 [#allocation12], 4
          %s253 = int_to_ptr.vmem [resolvable:$true] %s252
          %258 = dma.hbm_to_vmem [thread:$0]  %s3, 9216, %s253, [#allocation11], 64, 64, 4
        $region24: #{tpu_custom_call.1} parent=11 // pred_fallthru
          _
        // Predicated region
        $region25: #{tpu_custom_call.1} parent=11 // pred_check
          %p259 = pneg %p145
        $region26: #{tpu_custom_call.1} parent=11 // pred_check_branch
          %261 = sbr.rel (%p259) target = $region28
        $region27: #{tpu_custom_call.1} parent=11 // pred_region
          _
        $region28: #{tpu_custom_call.1} parent=11 // pred_fallthru
          _
        // Predicated region
        $region29: #{tpu_custom_call.1} parent=11 // pred_check
          %p262 = pneg %p166
        $region30: #{tpu_custom_call.1} parent=11 // pred_check_branch
          %264 = sbr.rel (%p262) target = $region32
        $region31: #{tpu_custom_call.1} parent=11 // pred_region
          %s266 = ssub.s32 2048, 2048
          %267 = vsyncadd [#allocation14], %s266
          %s268 = sshll.u32 [#allocation13], 4
          %s269 = int_to_ptr.vmem [resolvable:$true] %s268
          %274 = dma.hbm_to_vmem [thread:$0]  %s5, 2048, %s269, [#allocation14], 64, 64, 4
        $region32: #{tpu_custom_call.1} parent=11 // pred_fallthru
          _
        // Predicated region
        $region33: #{tpu_custom_call.1} parent=11 // pred_check
          %p275 = pneg %p187
        $region34: #{tpu_custom_call.1} parent=11 // pred_check_branch
          %277 = sbr.rel (%p275) target = $region36
        $region35: #{tpu_custom_call.1} parent=11 // pred_region
          _
        $region36: #{tpu_custom_call.1} parent=11 // pred_fallthru
          _
      $region12: #{tpu_custom_call.1} parent=5 // pred_fallthru
        _
      %p278 = scmp.lt.s32.totalorder %s21, 4
      // Predicated region
      $region37: #{tpu_custom_call.1} parent=5 // pred_check
        %p279 = pneg %p278
      $region38: #{tpu_custom_call.1} parent=5 // pred_check_branch
        %281 = sbr.rel (%p279) target = $region40
      $region39: #{tpu_custom_call.1} parent=5 // pred_region
        // Predicated region
        $region41: #{tpu_custom_call.1} parent=39 // pred_check
          %p282 = pneg %p55
        $region42: #{tpu_custom_call.1} parent=39 // pred_check_branch
          %284 = sbr.rel (%p282) target = $region44
        $region43: #{tpu_custom_call.1} parent=39 // pred_region
          %s285 = sand.u32 %s45, 1
          %s286 = scalar_lea.sflag [#allocation8], %s285
          %s287 = sand.u32 %s45, 1
          %s288 = smul.addr %s287, 4
          %s289 = scalar_lea.vmem [#allocation7], %s288
          %s291 = ssub.s32 64, 64
          %292 = vsyncadd %s286, %s291
          %s293 = smul.addr %s28, 2
          %s294 = sadd.s32 %s29, %s293
          %s295 = smul.addr %s294, 64
          %s296 = scalar_lea.hbm %s0, %s295
          %s298 = sshll.u32 %s289, 4
          %s299 = int_to_ptr.vmem [resolvable:$true] %s298
          %301 = dma.hbm_to_vmem [thread:$0]  %s296, 64, %s299, %s286
        $region44: #{tpu_custom_call.1} parent=39 // pred_fallthru
          _
      $region40: #{tpu_custom_call.1} parent=5 // pred_fallthru
        _
      %p302 = scmp.le.s32.totalorder 1, %s21
      %p303 = scmp.lt.s32.totalorder %s21, 5
      %p304 = pnand %p302, %p303
      %p305 = pneg %p304
      // Predicated region
      $region45: #{tpu_custom_call.1} parent=5 // pred_check
        _
      $region46: #{tpu_custom_call.1} parent=5 // pred_check_branch
        %307 = sbr.rel (%p304) target = $region48
      $region47: #{tpu_custom_call.1} parent=5 // pred_region
        %s308 = ssub.s32 %s21, 1
        %s309 = sand.u32 %s48, 1
        %s310 = scalar_lea.sflag [#allocation8], %s309
        %s311 = sand.u32 %s48, 1
        %s312 = smul.addr %s311, 4
        %s313 = scalar_lea.vmem [#allocation7], %s312
        // Predicated region
        $region49: #{tpu_custom_call.1} parent=47 // pred_check
          %p314 = pneg %p61
        $region50: #{tpu_custom_call.1} parent=47 // pred_check_branch
          %316 = sbr.rel (%p314) target = $region52
        $region51: #{tpu_custom_call.1} parent=47 // pred_region
          %317 = dma.done %s310, 64
        $region52: #{tpu_custom_call.1} parent=47 // pred_fallthru
          _
        // Predicated region
        $region53: #{tpu_custom_call.1} parent=47 // pred_check
          %p318 = pneg %p82
        $region54: #{tpu_custom_call.1} parent=47 // pred_check_branch
          %320 = sbr.rel (%p318) target = $region56
        $region55: #{tpu_custom_call.1} parent=47 // pred_region
          %321 = dma.done [#allocation11], 9216
        $region56: #{tpu_custom_call.1} parent=47 // pred_fallthru
          _
        // Predicated region
        $region57: #{tpu_custom_call.1} parent=47 // pred_check
          %p322 = pneg %p124
        $region58: #{tpu_custom_call.1} parent=47 // pred_check_branch
          %324 = sbr.rel (%p322) target = $region60
        $region59: #{tpu_custom_call.1} parent=47 // pred_region
          %325 = dma.done [#allocation11], 9216
        $region60: #{tpu_custom_call.1} parent=47 // pred_fallthru
          _
        // Predicated region
        $region61: #{tpu_custom_call.1} parent=47 // pred_check
          %p326 = pneg %p166
        $region62: #{tpu_custom_call.1} parent=47 // pred_check_branch
          %328 = sbr.rel (%p326) target = $region64
        $region63: #{tpu_custom_call.1} parent=47 // pred_region
          %329 = dma.done [#allocation14], 2048
        $region64: #{tpu_custom_call.1} parent=47 // pred_fallthru
          _
        %s330 = sand.u32 %s48, 1
        %s331 = scalar_lea.sflag [#allocation8], %s330
        %s332 = sand.u32 %s48, 1
        %s333 = smul.addr %s332, 4
        %s334 = scalar_lea.vmem [#allocation7], %s333
        %p335 = pneg %p61
        %p336 = pneg %p58
        %p337 = pneg %p82
        %p338 = pneg %p79
        %p339 = pneg %p103
        %p340 = pneg %p100
        %p341 = pneg %p124
        %p342 = pneg %p121
        %p343 = pneg %p145
        %p344 = pneg %p142
        %p345 = pneg %p166
        %p346 = pneg %p163
        %p347 = pneg %p187
        %p348 = pneg %p184
        %p349 = pneg %p215
        %p350 = pneg %p212
        %s351 = sand.u32 %s202, 1
        %s352 = scalar_lea.sflag [#allocation9], %s351
        %s353 = sand.u32 %s202, 1
        %s354 = smul.addr %s353, 4
        %s355 = scalar_lea.vmem [#allocation15], %s354
        %p357 = scmp.eq.s32.totalorder %s31, 0
        // Predicated region
        $region65: #{tpu_custom_call.1} parent=47 // pred_check
          %p358 = pneg %p357
        $region66: #{tpu_custom_call.1} parent=47 // pred_check_branch
          %360 = sbr.rel (%p358) target = $region68
        $region67: #{tpu_custom_call.1} parent=47 // pred_region
          %361 = vst [vmem:[#allocation5] sm:$0xf] 0
          %362 = vst [vmem:[#allocation5 + $0x4] sm:$0xf] 0
          %363 = vst [vmem:[#allocation5 + $0x8] sm:$0xf] 0
          %364 = vst [vmem:[#allocation6] sm:$0xf] 0
          %365 = vst [vmem:[#allocation6 + $0x4] sm:$0xf] 0
          %366 = vst [vmem:[#allocation6 + $0x8] sm:$0xf] 0
        $region68: #{tpu_custom_call.1} parent=47 // pred_fallthru
          _
        %v367 = vld [vmem:[%s313] sm:$0xf]
        %368 = vst [vmem:[#allocation2 + $0x4] sm:$0xf] %v367
        %v369 = vld [vmem:[#allocation5] sm:$0xf]
        %370 = vst [vmem:[#allocation2] sm:$0xf] %v369
        %v371 = vld [vmem:[#allocation2 + $0x4] sm:$0xf]
        %372 = vst [vmem:[#allocation5] sm:$0xf] %v371
        %v373 = vld [vmem:[#allocation2] sm:$0x8]
        %v374 = vld [vmem:[#allocation2 + $0x4] sm:$0x7]
        %vm377 = vcmask 1040384
        %vm378 = vcmask 1044484
        %vm379 = vmor %vm377, %vm378
        %v380 = vrot.slane %v373, 7
        %v381 = vrot.slane %v380, 4
        %v382 = vrot.slane %v374, 7
        %v383 = vsel %vm379, %v381, %v382
        %385 = vst [vmem:[#allocation4] sm:$0xf] %v383
        %v386 = vld [vmem:[#allocation2] sm:$0x8]
        %v387 = vld [vmem:[#allocation2 + $0x4] sm:$0xf]
        %vm388 = vsmask.f32 256
        %vm389 = vsmask.f32 4368
        %vm390 = vmor %vm388, %vm389
        %v392 = vshrl.u32 %v386, 16
        %v394 = vrot.slane %v392, 7
        %v395 = vrot.slane %v394, 4
        %v397 = vshrl.u32 %v387, 16
        %v399 = vrot.slane %v397, 7
        %v400 = vshll.u32 %v387, 16
        %v402 = vor.u32 %v399, %v400
        %v403 = vsel %vm390, %v395, %v402
        %405 = vst [vmem:[#allocation4 + $0x4] sm:$0xf] %v403
        %v406 = vld [vmem:[#allocation2 + $0x4] sm:$0xf]
        %407 = vst [vmem:[#allocation4 + $0x8] sm:$0xf] %v406
        %v408 = vld [vmem:[#allocation4] sm:$0xff]
        %v409 = vld [vmem:[#allocation4 + $0x8] sm:$0xf]
        %v410 = vld [vmem:[#allocation10] sm:$0xf]
        %v411 = vld [vmem:[#allocation10 + $0x4] sm:$0xf]
        %v412 = vld [vmem:[#allocation10 + $0x8] sm:$0xf]
        %v413 = vld [vmem:[#allocation10 + $0xc] sm:$0xf]
        %v414 = vld [vmem:[#allocation10 + $0x10] sm:$0xf]
        %v415 = vld [vmem:[#allocation10 + $0x14] sm:$0xf]
        %v416 = vld [vmem:[#allocation10 + $0x18] sm:$0xf]
        %v417 = vld [vmem:[#allocation10 + $0x1c] sm:$0xf]
        %v418 = vld [vmem:[#allocation10 + $0x20] sm:$0xf]
        %v419 = vld [vmem:[#allocation10 + $0x24] sm:$0xf]
        %v420 = vld [vmem:[#allocation10 + $0x28] sm:$0xf]
        %v421 = vld [vmem:[#allocation10 + $0x2c] sm:$0xf]
        %v422 = vld [vmem:[#allocation10 + $0x30] sm:$0xf]
        %v423 = vld [vmem:[#allocation10 + $0x34] sm:$0xf]
        %v424 = vld [vmem:[#allocation10 + $0x38] sm:$0xf]
        %v425 = vld [vmem:[#allocation10 + $0x3c] sm:$0xf]
        %v426 = vld [vmem:[#allocation10 + $0x40] sm:$0xf]
        %v427 = vld [vmem:[#allocation10 + $0x44] sm:$0xf]
        %v428 = vld [vmem:[#allocation10 + $0x48] sm:$0xf]
        %v429 = vld [vmem:[#allocation10 + $0x4c] sm:$0xf]
        %v430 = vld [vmem:[#allocation10 + $0x50] sm:$0xf]
        %v431 = vld [vmem:[#allocation10 + $0x54] sm:$0xf]
        %v432 = vld [vmem:[#allocation10 + $0x58] sm:$0xf]
        %v433 = vld [vmem:[#allocation10 + $0x5c] sm:$0xf]
        %v434 = vld [vmem:[#allocation10 + $0x60] sm:$0xf]
        %v435 = vld [vmem:[#allocation10 + $0x64] sm:$0xf]
        %v436 = vld [vmem:[#allocation10 + $0x68] sm:$0xf]
        %v437 = vld [vmem:[#allocation10 + $0x6c] sm:$0xf]
        %v438 = vld [vmem:[#allocation10 + $0x70] sm:$0xf]
        %v439 = vld [vmem:[#allocation10 + $0x74] sm:$0xf]
        %v440 = vld [vmem:[#allocation10 + $0x78] sm:$0xf]
        %v441 = vld [vmem:[#allocation10 + $0x7c] sm:$0xf]
        %v442 = vld [vmem:[#allocation10 + $0x80] sm:$0xf]
        %v443 = vld [vmem:[#allocation10 + $0x84] sm:$0xf]
        %v444 = vld [vmem:[#allocation10 + $0x88] sm:$0xf]
        %v445 = vld [vmem:[#allocation10 + $0x8c] sm:$0xf]
        %v446 = vld [vmem:[#allocation10 + $0x90] sm:$0xf]
        %v447 = vld [vmem:[#allocation10 + $0x94] sm:$0xf]
        %v448 = vld [vmem:[#allocation10 + $0x98] sm:$0xf]
        %v449 = vld [vmem:[#allocation10 + $0x9c] sm:$0xf]
        %v450 = vld [vmem:[#allocation10 + $0xa0] sm:$0xf]
        %v451 = vld [vmem:[#allocation10 + $0xa4] sm:$0xf]
        %v452 = vld [vmem:[#allocation10 + $0xa8] sm:$0xf]
        %v453 = vld [vmem:[#allocation10 + $0xac] sm:$0xf]
        %v454 = vld [vmem:[#allocation10 + $0xb0] sm:$0xf]
        %v455 = vld [vmem:[#allocation10 + $0xb4] sm:$0xf]
        %v456 = vld [vmem:[#allocation10 + $0xb8] sm:$0xf]
        %v457 = vld [vmem:[#allocation10 + $0xbc] sm:$0xf]
        %v458 = vld [vmem:[%s2] sm:$0x1]
        %v460 = vlaneseq
        %v461 = vshrl.u32 %v460, 7
        %v462 = vsub.s32 0, %v461
        %v463 = vrot.slane %v458, %v462
        %v467 = vunpack.c.l.b16 %v408
        %v468 = vunpack.c.h.b16 %v408
        %v469 = vunpack.c.l.b16 %v409
        %v470 = vpack.c.b16 %v467, %v467
        %v471 = vpack.c.b16 %v468, %v468
        %v472 = vpack.c.b16 %v469, %v469
        %v524 = vunpack.c.l.b16 %v410
        %v525 = vunpack.c.l.b16 %v411
        %v526 = vunpack.c.l.b16 %v412
        %v527 = vunpack.c.l.b16 %v413
        %v528 = vunpack.c.l.b16 %v414
        %v529 = vunpack.c.l.b16 %v415
        %v530 = vunpack.c.l.b16 %v416
        %v531 = vunpack.c.l.b16 %v417
        %v532 = vunpack.c.l.b16 %v418
        %v533 = vunpack.c.l.b16 %v419
        %v534 = vunpack.c.l.b16 %v420
        %v535 = vunpack.c.l.b16 %v421
        %v536 = vunpack.c.l.b16 %v422
        %v537 = vunpack.c.l.b16 %v423
        %v538 = vunpack.c.l.b16 %v424
        %v539 = vunpack.c.l.b16 %v425
        %v540 = vunpack.c.l.b16 %v426
        %v541 = vunpack.c.l.b16 %v427
        %v542 = vunpack.c.l.b16 %v428
        %v543 = vunpack.c.l.b16 %v429
        %v544 = vunpack.c.l.b16 %v430
        %v545 = vunpack.c.l.b16 %v431
        %v546 = vunpack.c.l.b16 %v432
        %v547 = vunpack.c.l.b16 %v433
        %v548 = vunpack.c.l.b16 %v434
        %v549 = vunpack.c.l.b16 %v435
        %v550 = vunpack.c.l.b16 %v436
        %v551 = vunpack.c.l.b16 %v437
        %v552 = vunpack.c.l.b16 %v438
        %v553 = vunpack.c.l.b16 %v439
        %v554 = vunpack.c.l.b16 %v440
        %v555 = vunpack.c.l.b16 %v441
        %v556 = vunpack.c.l.b16 %v442
        %v557 = vunpack.c.l.b16 %v443
        %v558 = vunpack.c.l.b16 %v444
        %v559 = vunpack.c.l.b16 %v445
        %v560 = vunpack.c.l.b16 %v446
        %v561 = vunpack.c.l.b16 %v447
        %v562 = vunpack.c.l.b16 %v448
        %v563 = vunpack.c.l.b16 %v449
        %v564 = vunpack.c.l.b16 %v450
        %v565 = vunpack.c.l.b16 %v451
        %v566 = vunpack.c.l.b16 %v452
        %v567 = vunpack.c.l.b16 %v453
        %v568 = vunpack.c.l.b16 %v454
        %v569 = vunpack.c.l.b16 %v455
        %v570 = vunpack.c.l.b16 %v456
        %v571 = vunpack.c.l.b16 %v457
        %v572 = vpack.c.b16 %v525, %v524
        %v573 = vpack.c.b16 %v527, %v526
        %v574 = vpack.c.b16 %v529, %v528
        %v575 = vpack.c.b16 %v531, %v530
        %v576 = vpack.c.b16 %v533, %v532
        %v577 = vpack.c.b16 %v535, %v534
        %v578 = vpack.c.b16 %v537, %v536
        %v579 = vpack.c.b16 %v539, %v538
        %v580 = vpack.c.b16 %v541, %v540
        %v581 = vpack.c.b16 %v543, %v542
        %v582 = vpack.c.b16 %v545, %v544
        %v583 = vpack.c.b16 %v547, %v546
        %v584 = vpack.c.b16 %v549, %v548
        %v585 = vpack.c.b16 %v551, %v550
        %v586 = vpack.c.b16 %v553, %v552
        %v587 = vpack.c.b16 %v555, %v554
        %v588 = vpack.c.b16 %v557, %v556
        %v589 = vpack.c.b16 %v559, %v558
        %v590 = vpack.c.b16 %v561, %v560
        %v591 = vpack.c.b16 %v563, %v562
        %v592 = vpack.c.b16 %v565, %v564
        %v593 = vpack.c.b16 %v567, %v566
        %v594 = vpack.c.b16 %v569, %v568
        %v595 = vpack.c.b16 %v571, %v570
        %620 = vmatprep.subr.bf16.mxu0 0
        %621 = vmatpush1.bf16.msra.mxu0 %v579
        %622 = vmatprep.subr.bf16.mxu0 0
        %623 = vmatpush1.bf16.msra.mxu0 %v578
        %624 = vmatprep.subr.bf16.mxu0 0
        %625 = vmatpush1.bf16.msra.mxu0 %v577
        %626 = vmatprep.subr.bf16.mxu0 0
        %627 = vmatpush1.bf16.msra.mxu0 %v576
        %628 = vmatprep.subr.bf16.mxu0 0
        %629 = vmatpush1.bf16.msra.mxu0 %v575
        %630 = vmatprep.subr.bf16.mxu0 0
        %631 = vmatpush1.bf16.msra.mxu0 %v574
        %632 = vmatprep.subr.bf16.mxu0 0
        %633 = vmatpush1.bf16.msra.mxu0 %v573
        %634 = vmatprep.subr.bf16.mxu0 0
        %635 = vmatpush1.bf16.msra.mxu0 %v572
        %636 = vmatprep.subr.bf16.mxu0 0
        %637 = vmatpush2.bf16.msra.mxu0 %v587
        %638 = vmatprep.subr.bf16.mxu0 0
        %639 = vmatpush2.bf16.msra.mxu0 %v586
        %640 = vmatprep.subr.bf16.mxu0 0
        %641 = vmatpush2.bf16.msra.mxu0 %v585
        %642 = vmatprep.subr.bf16.mxu0 0
        %643 = vmatpush2.bf16.msra.mxu0 %v584
        %644 = vmatprep.subr.bf16.mxu0 0
        %645 = vmatpush2.bf16.msra.mxu0 %v583
        %646 = vmatprep.subr.bf16.mxu0 0
        %647 = vmatpush2.bf16.msra.mxu0 %v582
        %648 = vmatprep.subr.bf16.mxu0 0
        %649 = vmatpush2.bf16.msra.mxu0 %v581
        %650 = vmatprep.subr.bf16.mxu0 0
        %651 = vmatpush2.bf16.msra.mxu0 %v580
        %652 = vmatprep.mubr.bf16.mxu0 %v471
        %653 = vmatmul.mubr.bf16.gmra.mxu0 %v470
        %v654 = vpop.f32.mrf.mxu0
        %v655 = vadd.f32 %v463, %v654
        %v656 = vpop.f32.mrf.mxu0
        %v657 = vpop.f32.mrf.mxu0
        %v658 = vpop.f32.mrf.mxu0
        %659 = vdwg.mxu0
        %660 = vmatprep.subr.bf16.mxu0 0
        %661 = vmatpush1.bf16.msra.mxu0 %v595
        %662 = vmatprep.subr.bf16.mxu0 0
        %663 = vmatpush1.bf16.msra.mxu0 %v594
        %664 = vmatprep.subr.bf16.mxu0 0
        %665 = vmatpush1.bf16.msra.mxu0 %v593
        %666 = vmatprep.subr.bf16.mxu0 0
        %667 = vmatpush1.bf16.msra.mxu0 %v592
        %668 = vmatprep.subr.bf16.mxu0 0
        %669 = vmatpush1.bf16.msra.mxu0 %v591
        %670 = vmatprep.subr.bf16.mxu0 0
        %671 = vmatpush1.bf16.msra.mxu0 %v590
        %672 = vmatprep.subr.bf16.mxu0 0
        %673 = vmatpush1.bf16.msra.mxu0 %v589
        %674 = vmatprep.subr.bf16.mxu0 0
        %675 = vmatpush1.bf16.msra.mxu0 %v588
        %676 = vmatprep.subr.bf16.mxu0 0
        %677 = vmatpush2.bf16.msra.mxu0 0
        %678 = vmatprep.subr.bf16.mxu0 0
        %679 = vmatpush2.bf16.msra.mxu0 0
        %680 = vmatprep.subr.bf16.mxu0 0
        %681 = vmatpush2.bf16.msra.mxu0 0
        %682 = vmatprep.subr.bf16.mxu0 0
        %683 = vmatpush2.bf16.msra.mxu0 0
        %684 = vmatprep.subr.bf16.mxu0 0
        %685 = vmatpush2.bf16.msra.mxu0 0
        %686 = vmatprep.subr.bf16.mxu0 0
        %687 = vmatpush2.bf16.msra.mxu0 0
        %688 = vmatprep.subr.bf16.mxu0 0
        %689 = vmatpush2.bf16.msra.mxu0 0
        %690 = vmatprep.subr.bf16.mxu0 0
        %691 = vmatpush2.bf16.msra.mxu0 0
        %692 = vmatprep.mubr.bf16.mxu0 0
        %693 = vmatmul.mubr.bf16.gmra.mxu0 %v472
        %v694 = vpop.f32.mrf.mxu0
        %v695 = vadd.f32 %v655, %v694
        %v696 = vpop.f32.mrf.mxu0
        %v697 = vpop.f32.mrf.mxu0
        %v698 = vpop.f32.mrf.mxu0
        %699 = vdwg.mxu0
        %vm700 = vcmp.ge.f32.partialorder %v695, 0.0
        %v701 = vmul.f32 %v695, 0.01
        %v702 = vsel %vm700, %v695, %v701
        %v703 = vld [vmem:[#allocation6] sm:$0xf]
        %704 = vst [vmem:[#allocation3] sm:$0xf] %v703
        %v705 = vpack.c.bf16 %v702, %v702
        %706 = vst [vmem:[#allocation3 + $0x4] sm:$0xf] %v705
        %v707 = vld [vmem:[#allocation3 + $0x4] sm:$0xf]
        %708 = vst [vmem:[#allocation6] sm:$0xf] %v707
        %v709 = vld [vmem:[#allocation3] sm:$0x8]
        %v710 = vld [vmem:[#allocation3 + $0x4] sm:$0x7]
        %v713 = vrot.slane %v709, 7
        %v714 = vrot.slane %v713, 4
        %v715 = vrot.slane %v710, 7
        %v716 = vsel %vm379, %v714, %v715
        %718 = vst [vmem:[#allocation4] sm:$0xf] %v716
        %v719 = vld [vmem:[#allocation3] sm:$0x8]
        %v720 = vld [vmem:[#allocation3 + $0x4] sm:$0xf]
        %v722 = vshrl.u32 %v719, 16
        %v724 = vrot.slane %v722, 7
        %v725 = vrot.slane %v724, 4
        %v727 = vshrl.u32 %v720, 16
        %v729 = vrot.slane %v727, 7
        %v730 = vshll.u32 %v720, 16
        %v732 = vor.u32 %v729, %v730
        %v733 = vsel %vm390, %v725, %v732
        %735 = vst [vmem:[#allocation4 + $0x4] sm:$0xf] %v733
        %v736 = vld [vmem:[#allocation3 + $0x4] sm:$0xf]
        %737 = vst [vmem:[#allocation4 + $0x8] sm:$0xf] %v736
        %v738 = vld [vmem:[#allocation4] sm:$0xff]
        %v739 = vld [vmem:[#allocation4 + $0x8] sm:$0xf]
        %v740 = vld [vmem:[#allocation12] sm:$0xf]
        %v741 = vld [vmem:[#allocation12 + $0x4] sm:$0xf]
        %v742 = vld [vmem:[#allocation12 + $0x8] sm:$0xf]
        %v743 = vld [vmem:[#allocation12 + $0xc] sm:$0xf]
        %v744 = vld [vmem:[#allocation12 + $0x10] sm:$0xf]
        %v745 = vld [vmem:[#allocation12 + $0x14] sm:$0xf]
        %v746 = vld [vmem:[#allocation12 + $0x18] sm:$0xf]
        %v747 = vld [vmem:[#allocation12 + $0x1c] sm:$0xf]
        %v748 = vld [vmem:[#allocation12 + $0x20] sm:$0xf]
        %v749 = vld [vmem:[#allocation12 + $0x24] sm:$0xf]
        %v750 = vld [vmem:[#allocation12 + $0x28] sm:$0xf]
        %v751 = vld [vmem:[#allocation12 + $0x2c] sm:$0xf]
        %v752 = vld [vmem:[#allocation12 + $0x30] sm:$0xf]
        %v753 = vld [vmem:[#allocation12 + $0x34] sm:$0xf]
        %v754 = vld [vmem:[#allocation12 + $0x38] sm:$0xf]
        %v755 = vld [vmem:[#allocation12 + $0x3c] sm:$0xf]
        %v756 = vld [vmem:[#allocation12 + $0x40] sm:$0xf]
        %v757 = vld [vmem:[#allocation12 + $0x44] sm:$0xf]
        %v758 = vld [vmem:[#allocation12 + $0x48] sm:$0xf]
        %v759 = vld [vmem:[#allocation12 + $0x4c] sm:$0xf]
        %v760 = vld [vmem:[#allocation12 + $0x50] sm:$0xf]
        %v761 = vld [vmem:[#allocation12 + $0x54] sm:$0xf]
        %v762 = vld [vmem:[#allocation12 + $0x58] sm:$0xf]
        %v763 = vld [vmem:[#allocation12 + $0x5c] sm:$0xf]
        %v764 = vld [vmem:[#allocation12 + $0x60] sm:$0xf]
        %v765 = vld [vmem:[#allocation12 + $0x64] sm:$0xf]
        %v766 = vld [vmem:[#allocation12 + $0x68] sm:$0xf]
        %v767 = vld [vmem:[#allocation12 + $0x6c] sm:$0xf]
        %v768 = vld [vmem:[#allocation12 + $0x70] sm:$0xf]
        %v769 = vld [vmem:[#allocation12 + $0x74] sm:$0xf]
        %v770 = vld [vmem:[#allocation12 + $0x78] sm:$0xf]
        %v771 = vld [vmem:[#allocation12 + $0x7c] sm:$0xf]
        %v772 = vld [vmem:[#allocation12 + $0x80] sm:$0xf]
        %v773 = vld [vmem:[#allocation12 + $0x84] sm:$0xf]
        %v774 = vld [vmem:[#allocation12 + $0x88] sm:$0xf]
        %v775 = vld [vmem:[#allocation12 + $0x8c] sm:$0xf]
        %v776 = vld [vmem:[#allocation12 + $0x90] sm:$0xf]
        %v777 = vld [vmem:[#allocation12 + $0x94] sm:$0xf]
        %v778 = vld [vmem:[#allocation12 + $0x98] sm:$0xf]
        %v779 = vld [vmem:[#allocation12 + $0x9c] sm:$0xf]
        %v780 = vld [vmem:[#allocation12 + $0xa0] sm:$0xf]
        %v781 = vld [vmem:[#allocation12 + $0xa4] sm:$0xf]
        %v782 = vld [vmem:[#allocation12 + $0xa8] sm:$0xf]
        %v783 = vld [vmem:[#allocation12 + $0xac] sm:$0xf]
        %v784 = vld [vmem:[#allocation12 + $0xb0] sm:$0xf]
        %v785 = vld [vmem:[#allocation12 + $0xb4] sm:$0xf]
        %v786 = vld [vmem:[#allocation12 + $0xb8] sm:$0xf]
        %v787 = vld [vmem:[#allocation12 + $0xbc] sm:$0xf]
        %v788 = vld [vmem:[%s4] sm:$0x1]
        %v790 = vlaneseq
        %v791 = vshrl.u32 %v790, 7
        %v792 = vsub.s32 0, %v791
        %v793 = vrot.slane %v788, %v792
        %v797 = vunpack.c.l.b16 %v738
        %v798 = vunpack.c.h.b16 %v738
        %v799 = vunpack.c.l.b16 %v739
        %v800 = vpack.c.b16 %v797, %v797
        %v801 = vpack.c.b16 %v798, %v798
        %v802 = vpack.c.b16 %v799, %v799
        %v854 = vunpack.c.l.b16 %v740
        %v855 = vunpack.c.l.b16 %v741
        %v856 = vunpack.c.l.b16 %v742
        %v857 = vunpack.c.l.b16 %v743
        %v858 = vunpack.c.l.b16 %v744
        %v859 = vunpack.c.l.b16 %v745
        %v860 = vunpack.c.l.b16 %v746
        %v861 = vunpack.c.l.b16 %v747
        %v862 = vunpack.c.l.b16 %v748
        %v863 = vunpack.c.l.b16 %v749
        %v864 = vunpack.c.l.b16 %v750
        %v865 = vunpack.c.l.b16 %v751
        %v866 = vunpack.c.l.b16 %v752
        %v867 = vunpack.c.l.b16 %v753
        %v868 = vunpack.c.l.b16 %v754
        %v869 = vunpack.c.l.b16 %v755
        %v870 = vunpack.c.l.b16 %v756
        %v871 = vunpack.c.l.b16 %v757
        %v872 = vunpack.c.l.b16 %v758
        %v873 = vunpack.c.l.b16 %v759
        %v874 = vunpack.c.l.b16 %v760
        %v875 = vunpack.c.l.b16 %v761
        %v876 = vunpack.c.l.b16 %v762
        %v877 = vunpack.c.l.b16 %v763
        %v878 = vunpack.c.l.b16 %v764
        %v879 = vunpack.c.l.b16 %v765
        %v880 = vunpack.c.l.b16 %v766
        %v881 = vunpack.c.l.b16 %v767
        %v882 = vunpack.c.l.b16 %v768
        %v883 = vunpack.c.l.b16 %v769
        %v884 = vunpack.c.l.b16 %v770
        %v885 = vunpack.c.l.b16 %v771
        %v886 = vunpack.c.l.b16 %v772
        %v887 = vunpack.c.l.b16 %v773
        %v888 = vunpack.c.l.b16 %v774
        %v889 = vunpack.c.l.b16 %v775
        %v890 = vunpack.c.l.b16 %v776
        %v891 = vunpack.c.l.b16 %v777
        %v892 = vunpack.c.l.b16 %v778
        %v893 = vunpack.c.l.b16 %v779
        %v894 = vunpack.c.l.b16 %v780
        %v895 = vunpack.c.l.b16 %v781
        %v896 = vunpack.c.l.b16 %v782
        %v897 = vunpack.c.l.b16 %v783
        %v898 = vunpack.c.l.b16 %v784
        %v899 = vunpack.c.l.b16 %v785
        %v900 = vunpack.c.l.b16 %v786
        %v901 = vunpack.c.l.b16 %v787
        %v902 = vpack.c.b16 %v855, %v854
        %v903 = vpack.c.b16 %v857, %v856
        %v904 = vpack.c.b16 %v859, %v858
        %v905 = vpack.c.b16 %v861, %v860
        %v906 = vpack.c.b16 %v863, %v862
        %v907 = vpack.c.b16 %v865, %v864
        %v908 = vpack.c.b16 %v867, %v866
        %v909 = vpack.c.b16 %v869, %v868
        %v910 = vpack.c.b16 %v871, %v870
        %v911 = vpack.c.b16 %v873, %v872
        %v912 = vpack.c.b16 %v875, %v874
        %v913 = vpack.c.b16 %v877, %v876
        %v914 = vpack.c.b16 %v879, %v878
        %v915 = vpack.c.b16 %v881, %v880
        %v916 = vpack.c.b16 %v883, %v882
        %v917 = vpack.c.b16 %v885, %v884
        %v918 = vpack.c.b16 %v887, %v886
        %v919 = vpack.c.b16 %v889, %v888
        %v920 = vpack.c.b16 %v891, %v890
        %v921 = vpack.c.b16 %v893, %v892
        %v922 = vpack.c.b16 %v895, %v894
        %v923 = vpack.c.b16 %v897, %v896
        %v924 = vpack.c.b16 %v899, %v898
        %v925 = vpack.c.b16 %v901, %v900
        %950 = vmatprep.subr.bf16.mxu0 0
        %951 = vmatpush1.bf16.msra.mxu0 %v909
        %952 = vmatprep.subr.bf16.mxu0 0
        %953 = vmatpush1.bf16.msra.mxu0 %v908
        %954 = vmatprep.subr.bf16.mxu0 0
        %955 = vmatpush1.bf16.msra.mxu0 %v907
        %956 = vmatprep.subr.bf16.mxu0 0
        %957 = vmatpush1.bf16.msra.mxu0 %v906
        %958 = vmatprep.subr.bf16.mxu0 0
        %959 = vmatpush1.bf16.msra.mxu0 %v905
        %960 = vmatprep.subr.bf16.mxu0 0
        %961 = vmatpush1.bf16.msra.mxu0 %v904
        %962 = vmatprep.subr.bf16.mxu0 0
        %963 = vmatpush1.bf16.msra.mxu0 %v903
        %964 = vmatprep.subr.bf16.mxu0 0
        %965 = vmatpush1.bf16.msra.mxu0 %v902
        %966 = vmatprep.subr.bf16.mxu0 0
        %967 = vmatpush2.bf16.msra.mxu0 %v917
        %968 = vmatprep.subr.bf16.mxu0 0
        %969 = vmatpush2.bf16.msra.mxu0 %v916
        %970 = vmatprep.subr.bf16.mxu0 0
        %971 = vmatpush2.bf16.msra.mxu0 %v915
        %972 = vmatprep.subr.bf16.mxu0 0
        %973 = vmatpush2.bf16.msra.mxu0 %v914
        %974 = vmatprep.subr.bf16.mxu0 0
        %975 = vmatpush2.bf16.msra.mxu0 %v913
        %976 = vmatprep.subr.bf16.mxu0 0
        %977 = vmatpush2.bf16.msra.mxu0 %v912
        %978 = vmatprep.subr.bf16.mxu0 0
        %979 = vmatpush2.bf16.msra.mxu0 %v911
        %980 = vmatprep.subr.bf16.mxu0 0
        %981 = vmatpush2.bf16.msra.mxu0 %v910
        %982 = vmatprep.mubr.bf16.mxu0 %v801
        %983 = vmatmul.mubr.bf16.gmra.mxu0 %v800
        %v984 = vpop.f32.mrf.mxu0
        %v985 = vadd.f32 %v793, %v984
        %v986 = vpop.f32.mrf.mxu0
        %v987 = vpop.f32.mrf.mxu0
        %v988 = vpop.f32.mrf.mxu0
        %989 = vdwg.mxu0
        %990 = vmatprep.subr.bf16.mxu0 0
        %991 = vmatpush1.bf16.msra.mxu0 %v925
        %992 = vmatprep.subr.bf16.mxu0 0
        %993 = vmatpush1.bf16.msra.mxu0 %v924
        %994 = vmatprep.subr.bf16.mxu0 0
        %995 = vmatpush1.bf16.msra.mxu0 %v923
        %996 = vmatprep.subr.bf16.mxu0 0
        %997 = vmatpush1.bf16.msra.mxu0 %v922
        %998 = vmatprep.subr.bf16.mxu0 0
        %999 = vmatpush1.bf16.msra.mxu0 %v921
        %1000 = vmatprep.subr.bf16.mxu0 0
        %1001 = vmatpush1.bf16.msra.mxu0 %v920
        %1002 = vmatprep.subr.bf16.mxu0 0
        %1003 = vmatpush1.bf16.msra.mxu0 %v919
        %1004 = vmatprep.subr.bf16.mxu0 0
        %1005 = vmatpush1.bf16.msra.mxu0 %v918
        %1006 = vmatprep.subr.bf16.mxu0 0
        %1007 = vmatpush2.bf16.msra.mxu0 0
        %1008 = vmatprep.subr.bf16.mxu0 0
        %1009 = vmatpush2.bf16.msra.mxu0 0
        %1010 = vmatprep.subr.bf16.mxu0 0
        %1011 = vmatpush2.bf16.msra.mxu0 0
        %1012 = vmatprep.subr.bf16.mxu0 0
        %1013 = vmatpush2.bf16.msra.mxu0 0
        %1014 = vmatprep.subr.bf16.mxu0 0
        %1015 = vmatpush2.bf16.msra.mxu0 0
        %1016 = vmatprep.subr.bf16.mxu0 0
        %1017 = vmatpush2.bf16.msra.mxu0 0
        %1018 = vmatprep.subr.bf16.mxu0 0
        %1019 = vmatpush2.bf16.msra.mxu0 0
        %1020 = vmatprep.subr.bf16.mxu0 0
        %1021 = vmatpush2.bf16.msra.mxu0 0
        %1022 = vmatprep.mubr.bf16.mxu0 0
        %1023 = vmatmul.mubr.bf16.gmra.mxu0 %v802
        %v1024 = vpop.f32.mrf.mxu0
        %v1025 = vadd.f32 %v985, %v1024
        %v1026 = vpop.f32.mrf.mxu0
        %v1027 = vpop.f32.mrf.mxu0
        %v1028 = vpop.f32.mrf.mxu0
        %1029 = vdwg.mxu0
        %vm1030 = vcmp.ge.f32.partialorder %v1025, 0.0
        %v1031 = vmul.f32 %v1025, 0.01
        %v1032 = vsel %vm1030, %v1025, %v1031
        %v1033 = vld [vmem:[#allocation2 + $0x4] sm:$0xf]
        %v1034 = vld [vmem:[#allocation13] sm:$0xf]
        %v1035 = vld [vmem:[#allocation13 + $0x4] sm:$0xf]
        %v1036 = vld [vmem:[#allocation13 + $0x8] sm:$0xf]
        %v1037 = vld [vmem:[#allocation13 + $0xc] sm:$0xf]
        %v1038 = vld [vmem:[#allocation13 + $0x10] sm:$0xf]
        %v1039 = vld [vmem:[#allocation13 + $0x14] sm:$0xf]
        %v1040 = vld [vmem:[#allocation13 + $0x18] sm:$0xf]
        %v1041 = vld [vmem:[#allocation13 + $0x1c] sm:$0xf]
        %v1042 = vld [vmem:[#allocation13 + $0x20] sm:$0xf]
        %v1043 = vld [vmem:[#allocation13 + $0x24] sm:$0xf]
        %v1044 = vld [vmem:[#allocation13 + $0x28] sm:$0xf]
        %v1045 = vld [vmem:[#allocation13 + $0x2c] sm:$0xf]
        %v1046 = vld [vmem:[#allocation13 + $0x30] sm:$0xf]
        %v1047 = vld [vmem:[#allocation13 + $0x34] sm:$0xf]
        %v1048 = vld [vmem:[#allocation13 + $0x38] sm:$0xf]
        %v1049 = vld [vmem:[#allocation13 + $0x3c] sm:$0xf]
        %v1050 = vld [vmem:[%s6] sm:$0x1]
        %v1052 = vlaneseq
        %v1053 = vshrl.u32 %v1052, 7
        %v1054 = vsub.s32 0, %v1053
        %v1055 = vrot.slane %v1050, %v1054
        %v1073 = vunpack.c.l.b16 %v1034
        %v1074 = vunpack.c.l.b16 %v1035
        %v1075 = vunpack.c.l.b16 %v1036
        %v1076 = vunpack.c.l.b16 %v1037
        %v1077 = vunpack.c.l.b16 %v1038
        %v1078 = vunpack.c.l.b16 %v1039
        %v1079 = vunpack.c.l.b16 %v1040
        %v1080 = vunpack.c.l.b16 %v1041
        %v1081 = vunpack.c.l.b16 %v1042
        %v1082 = vunpack.c.l.b16 %v1043
        %v1083 = vunpack.c.l.b16 %v1044
        %v1084 = vunpack.c.l.b16 %v1045
        %v1085 = vunpack.c.l.b16 %v1046
        %v1086 = vunpack.c.l.b16 %v1047
        %v1087 = vunpack.c.l.b16 %v1048
        %v1088 = vunpack.c.l.b16 %v1049
        %v1089 = vpack.c.b16 %v1074, %v1073
        %v1090 = vpack.c.b16 %v1076, %v1075
        %v1091 = vpack.c.b16 %v1078, %v1077
        %v1092 = vpack.c.b16 %v1080, %v1079
        %v1093 = vpack.c.b16 %v1082, %v1081
        %v1094 = vpack.c.b16 %v1084, %v1083
        %v1095 = vpack.c.b16 %v1086, %v1085
        %v1096 = vpack.c.b16 %v1088, %v1087
        %1105 = vmatprep.subr.bf16.mxu0 0
        %1106 = vmatpush1.bf16.msra.mxu0 %v1096
        %1107 = vmatprep.subr.bf16.mxu0 0
        %1108 = vmatpush1.bf16.msra.mxu0 %v1095
        %1109 = vmatprep.subr.bf16.mxu0 0
        %1110 = vmatpush1.bf16.msra.mxu0 %v1094
        %1111 = vmatprep.subr.bf16.mxu0 0
        %1112 = vmatpush1.bf16.msra.mxu0 %v1093
        %1113 = vmatprep.subr.bf16.mxu0 0
        %1114 = vmatpush1.bf16.msra.mxu0 %v1092
        %1115 = vmatprep.subr.bf16.mxu0 0
        %1116 = vmatpush1.bf16.msra.mxu0 %v1091
        %1117 = vmatprep.subr.bf16.mxu0 0
        %1118 = vmatpush1.bf16.msra.mxu0 %v1090
        %1119 = vmatprep.subr.bf16.mxu0 0
        %1120 = vmatpush1.bf16.msra.mxu0 %v1089
        %1121 = vmatprep.subr.bf16.mxu0 0
        %1122 = vmatpush2.bf16.msra.mxu0 0
        %1123 = vmatprep.subr.bf16.mxu0 0
        %1124 = vmatpush2.bf16.msra.mxu0 0
        %1125 = vmatprep.subr.bf16.mxu0 0
        %1126 = vmatpush2.bf16.msra.mxu0 0
        %1127 = vmatprep.subr.bf16.mxu0 0
        %1128 = vmatpush2.bf16.msra.mxu0 0
        %1129 = vmatprep.subr.bf16.mxu0 0
        %1130 = vmatpush2.bf16.msra.mxu0 0
        %1131 = vmatprep.subr.bf16.mxu0 0
        %1132 = vmatpush2.bf16.msra.mxu0 0
        %1133 = vmatprep.subr.bf16.mxu0 0
        %1134 = vmatpush2.bf16.msra.mxu0 0
        %1135 = vmatprep.subr.bf16.mxu0 0
        %1136 = vmatpush2.bf16.msra.mxu0 0
        %1137 = vmatprep.mubr.bf16.mxu0 0
        %1138 = vmatmul.mubr.bf16.gmra.mxu0 %v1033
        %v1139 = vpop.f32.mrf.mxu0
        %v1140 = vadd.f32 %v1055, %v1139
        %v1141 = vpop.f32.mrf.mxu0
        %v1142 = vpop.f32.mrf.mxu0
        %v1143 = vpop.f32.mrf.mxu0
        %1144 = vdwg.mxu0
        %v1145 = vadd.f32 %v1032, %v1140
        %v1146 = vpack.c.bf16 %v1145, %v1145
        %1147 = vst [vmem:[#allocation2 + $0x4] sm:$0xf] %v1146
        %s1148 = scalar_lea.vmem [#allocation5], 4
        %v1149 = vld [vmem:[%s1148] sm:$0xf]
        %1150 = vst [vmem:[#allocation2] sm:$0xf] %v1149
        %v1151 = vld [vmem:[#allocation2 + $0x4] sm:$0xf]
        %1152 = vst [vmem:[%s1148] sm:$0xf] %v1151
        %v1153 = vld [vmem:[#allocation2] sm:$0xc]
        %v1154 = vld [vmem:[#allocation2 + $0x4] sm:$0x3]
        %vm1157 = vcmask 1041408
        %vm1158 = vcmask 1045508
        %vm1159 = vmor %vm1157, %vm1158
        %v1160 = vrot.slane %v1153, 6
        %v1161 = vrot.slane %v1160, 4
        %v1162 = vrot.slane %v1154, 6
        %v1163 = vsel %vm1159, %v1161, %v1162
        %1165 = vst [vmem:[#allocation4] sm:$0xf] %v1163
        %v1166 = vld [vmem:[#allocation2] sm:$0x8]
        %v1167 = vld [vmem:[#allocation2 + $0x4] sm:$0x7]
        %v1170 = vrot.slane %v1166, 7
        %v1171 = vrot.slane %v1170, 4
        %v1172 = vrot.slane %v1167, 7
        %v1173 = vsel %vm379, %v1171, %v1172
        %1175 = vst [vmem:[#allocation4 + $0x4] sm:$0xf] %v1173
        %v1176 = vld [vmem:[#allocation2 + $0x4] sm:$0xf]
        %1177 = vst [vmem:[#allocation4 + $0x8] sm:$0xf] %v1176
        %v1178 = vld [vmem:[#allocation4] sm:$0xff]
        %v1179 = vld [vmem:[#allocation4 + $0x8] sm:$0xf]
        %s1180 = scalar_lea.vmem [#allocation10], 192
        %v1181 = vld [vmem:[%s1180] sm:$0xf]
        %v1182 = vld [vmem:[%s1180 + $0x4] sm:$0xf]
        %v1183 = vld [vmem:[%s1180 + $0x8] sm:$0xf]
        %v1184 = vld [vmem:[%s1180 + $0xc] sm:$0xf]
        %v1185 = vld [vmem:[%s1180 + $0x10] sm:$0xf]
        %v1186 = vld [vmem:[%s1180 + $0x14] sm:$0xf]
        %v1187 = vld [vmem:[%s1180 + $0x18] sm:$0xf]
        %v1188 = vld [vmem:[%s1180 + $0x1c] sm:$0xf]
        %v1189 = vld [vmem:[%s1180 + $0x20] sm:$0xf]
        %v1190 = vld [vmem:[%s1180 + $0x24] sm:$0xf]
        %v1191 = vld [vmem:[%s1180 + $0x28] sm:$0xf]
        %v1192 = vld [vmem:[%s1180 + $0x2c] sm:$0xf]
        %v1193 = vld [vmem:[%s1180 + $0x30] sm:$0xf]
        %v1194 = vld [vmem:[%s1180 + $0x34] sm:$0xf]
        %v1195 = vld [vmem:[%s1180 + $0x38] sm:$0xf]
        %v1196 = vld [vmem:[%s1180 + $0x3c] sm:$0xf]
        %v1197 = vld [vmem:[%s1180 + $0x40] sm:$0xf]
        %v1198 = vld [vmem:[%s1180 + $0x44] sm:$0xf]
        %v1199 = vld [vmem:[%s1180 + $0x48] sm:$0xf]
        %v1200 = vld [vmem:[%s1180 + $0x4c] sm:$0xf]
        %v1201 = vld [vmem:[%s1180 + $0x50] sm:$0xf]
        %v1202 = vld [vmem:[%s1180 + $0x54] sm:$0xf]
        %v1203 = vld [vmem:[%s1180 + $0x58] sm:$0xf]
        %v1204 = vld [vmem:[%s1180 + $0x5c] sm:$0xf]
        %v1205 = vld [vmem:[%s1180 + $0x60] sm:$0xf]
        %v1206 = vld [vmem:[%s1180 + $0x64] sm:$0xf]
        %v1207 = vld [vmem:[%s1180 + $0x68] sm:$0xf]
        %v1208 = vld [vmem:[%s1180 + $0x6c] sm:$0xf]
        %v1209 = vld [vmem:[%s1180 + $0x70] sm:$0xf]
        %v1210 = vld [vmem:[%s1180 + $0x74] sm:$0xf]
        %v1211 = vld [vmem:[%s1180 + $0x78] sm:$0xf]
        %v1212 = vld [vmem:[%s1180 + $0x7c] sm:$0xf]
        %v1213 = vld [vmem:[%s1180 + $0x80] sm:$0xf]
        %v1214 = vld [vmem:[%s1180 + $0x84] sm:$0xf]
        %v1215 = vld [vmem:[%s1180 + $0x88] sm:$0xf]
        %v1216 = vld [vmem:[%s1180 + $0x8c] sm:$0xf]
        %v1217 = vld [vmem:[%s1180 + $0x90] sm:$0xf]
        %v1218 = vld [vmem:[%s1180 + $0x94] sm:$0xf]
        %v1219 = vld [vmem:[%s1180 + $0x98] sm:$0xf]
        %v1220 = vld [vmem:[%s1180 + $0x9c] sm:$0xf]
        %v1221 = vld [vmem:[%s1180 + $0xa0] sm:$0xf]
        %v1222 = vld [vmem:[%s1180 + $0xa4] sm:$0xf]
        %v1223 = vld [vmem:[%s1180 + $0xa8] sm:$0xf]
        %v1224 = vld [vmem:[%s1180 + $0xac] sm:$0xf]
        %v1225 = vld [vmem:[%s1180 + $0xb0] sm:$0xf]
        %v1226 = vld [vmem:[%s1180 + $0xb4] sm:$0xf]
        %v1227 = vld [vmem:[%s1180 + $0xb8] sm:$0xf]
        %v1228 = vld [vmem:[%s1180 + $0xbc] sm:$0xf]
        %s1229 = scalar_lea.vmem %s2, 1
        %v1230 = vld [vmem:[%s1229] sm:$0x1]
        %v1232 = vlaneseq
        %v1233 = vshrl.u32 %v1232, 7
        %v1234 = vsub.s32 0, %v1233
        %v1235 = vrot.slane %v1230, %v1234
        %v1239 = vunpack.c.l.b16 %v1178
        %v1240 = vunpack.c.h.b16 %v1178
        %v1241 = vunpack.c.l.b16 %v1179
        %v1242 = vpack.c.b16 %v1239, %v1239
        %v1243 = vpack.c.b16 %v1240, %v1240
        %v1244 = vpack.c.b16 %v1241, %v1241
        %v1296 = vunpack.c.l.b16 %v1181
        %v1297 = vunpack.c.l.b16 %v1182
        %v1298 = vunpack.c.l.b16 %v1183
        %v1299 = vunpack.c.l.b16 %v1184
        %v1300 = vunpack.c.l.b16 %v1185
        %v1301 = vunpack.c.l.b16 %v1186
        %v1302 = vunpack.c.l.b16 %v1187
        %v1303 = vunpack.c.l.b16 %v1188
        %v1304 = vunpack.c.l.b16 %v1189
        %v1305 = vunpack.c.l.b16 %v1190
        %v1306 = vunpack.c.l.b16 %v1191
        %v1307 = vunpack.c.l.b16 %v1192
        %v1308 = vunpack.c.l.b16 %v1193
        %v1309 = vunpack.c.l.b16 %v1194
        %v1310 = vunpack.c.l.b16 %v1195
        %v1311 = vunpack.c.l.b16 %v1196
        %v1312 = vunpack.c.l.b16 %v1197
        %v1313 = vunpack.c.l.b16 %v1198
        %v1314 = vunpack.c.l.b16 %v1199
        %v1315 = vunpack.c.l.b16 %v1200
        %v1316 = vunpack.c.l.b16 %v1201
        %v1317 = vunpack.c.l.b16 %v1202
        %v1318 = vunpack.c.l.b16 %v1203
        %v1319 = vunpack.c.l.b16 %v1204
        %v1320 = vunpack.c.l.b16 %v1205
        %v1321 = vunpack.c.l.b16 %v1206
        %v1322 = vunpack.c.l.b16 %v1207
        %v1323 = vunpack.c.l.b16 %v1208
        %v1324 = vunpack.c.l.b16 %v1209
        %v1325 = vunpack.c.l.b16 %v1210
        %v1326 = vunpack.c.l.b16 %v1211
        %v1327 = vunpack.c.l.b16 %v1212
        %v1328 = vunpack.c.l.b16 %v1213
        %v1329 = vunpack.c.l.b16 %v1214
        %v1330 = vunpack.c.l.b16 %v1215
        %v1331 = vunpack.c.l.b16 %v1216
        %v1332 = vunpack.c.l.b16 %v1217
        %v1333 = vunpack.c.l.b16 %v1218
        %v1334 = vunpack.c.l.b16 %v1219
        %v1335 = vunpack.c.l.b16 %v1220
        %v1336 = vunpack.c.l.b16 %v1221
        %v1337 = vunpack.c.l.b16 %v1222
        %v1338 = vunpack.c.l.b16 %v1223
        %v1339 = vunpack.c.l.b16 %v1224
        %v1340 = vunpack.c.l.b16 %v1225
        %v1341 = vunpack.c.l.b16 %v1226
        %v1342 = vunpack.c.l.b16 %v1227
        %v1343 = vunpack.c.l.b16 %v1228
        %v1344 = vpack.c.b16 %v1297, %v1296
        %v1345 = vpack.c.b16 %v1299, %v1298
        %v1346 = vpack.c.b16 %v1301, %v1300
        %v1347 = vpack.c.b16 %v1303, %v1302
        %v1348 = vpack.c.b16 %v1305, %v1304
        %v1349 = vpack.c.b16 %v1307, %v1306
        %v1350 = vpack.c.b16 %v1309, %v1308
        %v1351 = vpack.c.b16 %v1311, %v1310
        %v1352 = vpack.c.b16 %v1313, %v1312
        %v1353 = vpack.c.b16 %v1315, %v1314
        %v1354 = vpack.c.b16 %v1317, %v1316
        %v1355 = vpack.c.b16 %v1319, %v1318
        %v1356 = vpack.c.b16 %v1321, %v1320
        %v1357 = vpack.c.b16 %v1323, %v1322
        %v1358 = vpack.c.b16 %v1325, %v1324
        %v1359 = vpack.c.b16 %v1327, %v1326
        %v1360 = vpack.c.b16 %v1329, %v1328
        %v1361 = vpack.c.b16 %v1331, %v1330
        %v1362 = vpack.c.b16 %v1333, %v1332
        %v1363 = vpack.c.b16 %v1335, %v1334
        %v1364 = vpack.c.b16 %v1337, %v1336
        %v1365 = vpack.c.b16 %v1339, %v1338
        %v1366 = vpack.c.b16 %v1341, %v1340
        %v1367 = vpack.c.b16 %v1343, %v1342
        %1392 = vmatprep.subr.bf16.mxu0 0
        %1393 = vmatpush1.bf16.msra.mxu0 %v1351
        %1394 = vmatprep.subr.bf16.mxu0 0
        %1395 = vmatpush1.bf16.msra.mxu0 %v1350
        %1396 = vmatprep.subr.bf16.mxu0 0
        %1397 = vmatpush1.bf16.msra.mxu0 %v1349
        %1398 = vmatprep.subr.bf16.mxu0 0
        %1399 = vmatpush1.bf16.msra.mxu0 %v1348
        %1400 = vmatprep.subr.bf16.mxu0 0
        %1401 = vmatpush1.bf16.msra.mxu0 %v1347
        %1402 = vmatprep.subr.bf16.mxu0 0
        %1403 = vmatpush1.bf16.msra.mxu0 %v1346
        %1404 = vmatprep.subr.bf16.mxu0 0
        %1405 = vmatpush1.bf16.msra.mxu0 %v1345
        %1406 = vmatprep.subr.bf16.mxu0 0
        %1407 = vmatpush1.bf16.msra.mxu0 %v1344
        %1408 = vmatprep.subr.bf16.mxu0 0
        %1409 = vmatpush2.bf16.msra.mxu0 %v1359
        %1410 = vmatprep.subr.bf16.mxu0 0
        %1411 = vmatpush2.bf16.msra.mxu0 %v1358
        %1412 = vmatprep.subr.bf16.mxu0 0
        %1413 = vmatpush2.bf16.msra.mxu0 %v1357
        %1414 = vmatprep.subr.bf16.mxu0 0
        %1415 = vmatpush2.bf16.msra.mxu0 %v1356
        %1416 = vmatprep.subr.bf16.mxu0 0
        %1417 = vmatpush2.bf16.msra.mxu0 %v1355
        %1418 = vmatprep.subr.bf16.mxu0 0
        %1419 = vmatpush2.bf16.msra.mxu0 %v1354
        %1420 = vmatprep.subr.bf16.mxu0 0
        %1421 = vmatpush2.bf16.msra.mxu0 %v1353
        %1422 = vmatprep.subr.bf16.mxu0 0
        %1423 = vmatpush2.bf16.msra.mxu0 %v1352
        %1424 = vmatprep.mubr.bf16.mxu0 %v1243
        %1425 = vmatmul.mubr.bf16.gmra.mxu0 %v1242
        %v1426 = vpop.f32.mrf.mxu0
        %v1427 = vadd.f32 %v1235, %v1426
        %v1428 = vpop.f32.mrf.mxu0
        %v1429 = vpop.f32.mrf.mxu0
        %v1430 = vpop.f32.mrf.mxu0
        %1431 = vdwg.mxu0
        %1432 = vmatprep.subr.bf16.mxu0 0
        %1433 = vmatpush1.bf16.msra.mxu0 %v1367
        %1434 = vmatprep.subr.bf16.mxu0 0
        %1435 = vmatpush1.bf16.msra.mxu0 %v1366
        %1436 = vmatprep.subr.bf16.mxu0 0
        %1437 = vmatpush1.bf16.msra.mxu0 %v1365
        %1438 = vmatprep.subr.bf16.mxu0 0
        %1439 = vmatpush1.bf16.msra.mxu0 %v1364
        %1440 = vmatprep.subr.bf16.mxu0 0
        %1441 = vmatpush1.bf16.msra.mxu0 %v1363
        %1442 = vmatprep.subr.bf16.mxu0 0
        %1443 = vmatpush1.bf16.msra.mxu0 %v1362
        %1444 = vmatprep.subr.bf16.mxu0 0
        %1445 = vmatpush1.bf16.msra.mxu0 %v1361
        %1446 = vmatprep.subr.bf16.mxu0 0
        %1447 = vmatpush1.bf16.msra.mxu0 %v1360
        %1448 = vmatprep.subr.bf16.mxu0 0
        %1449 = vmatpush2.bf16.msra.mxu0 0
        %1450 = vmatprep.subr.bf16.mxu0 0
        %1451 = vmatpush2.bf16.msra.mxu0 0
        %1452 = vmatprep.subr.bf16.mxu0 0
        %1453 = vmatpush2.bf16.msra.mxu0 0
        %1454 = vmatprep.subr.bf16.mxu0 0
        %1455 = vmatpush2.bf16.msra.mxu0 0
        %1456 = vmatprep.subr.bf16.mxu0 0
        %1457 = vmatpush2.bf16.msra.mxu0 0
        %1458 = vmatprep.subr.bf16.mxu0 0
        %1459 = vmatpush2.bf16.msra.mxu0 0
        %1460 = vmatprep.subr.bf16.mxu0 0
        %1461 = vmatpush2.bf16.msra.mxu0 0
        %1462 = vmatprep.subr.bf16.mxu0 0
        %1463 = vmatpush2.bf16.msra.mxu0 0
        %1464 = vmatprep.mubr.bf16.mxu0 0
        %1465 = vmatmul.mubr.bf16.gmra.mxu0 %v1244
        %v1466 = vpop.f32.mrf.mxu0
        %v1467 = vadd.f32 %v1427, %v1466
        %v1468 = vpop.f32.mrf.mxu0
        %v1469 = vpop.f32.mrf.mxu0
        %v1470 = vpop.f32.mrf.mxu0
        %1471 = vdwg.mxu0
        %vm1472 = vcmp.ge.f32.partialorder %v1467, 0.0
        %v1473 = vmul.f32 %v1467, 0.01
        %v1474 = vsel %vm1472, %v1467, %v1473
        %s1475 = scalar_lea.vmem [#allocation6], 4
        %v1476 = vld [vmem:[%s1475] sm:$0xf]
        %1477 = vst [vmem:[#allocation3] sm:$0xf] %v1476
        %v1478 = vpack.c.bf16 %v1474, %v1474
        %1479 = vst [vmem:[#allocation3 + $0x4] sm:$0xf] %v1478
        %v1480 = vld [vmem:[#allocation3 + $0x4] sm:$0xf]
        %1481 = vst [vmem:[%s1475] sm:$0xf] %v1480
        %v1482 = vld [vmem:[#allocation3] sm:$0xc]
        %v1483 = vld [vmem:[#allocation3 + $0x4] sm:$0x3]
        %v1486 = vrot.slane %v1482, 6
        %v1487 = vrot.slane %v1486, 4
        %v1488 = vrot.slane %v1483, 6
        %v1489 = vsel %vm1159, %v1487, %v1488
        %1491 = vst [vmem:[#allocation4] sm:$0xf] %v1489
        %v1492 = vld [vmem:[#allocation3] sm:$0x8]
        %v1493 = vld [vmem:[#allocation3 + $0x4] sm:$0x7]
        %v1496 = vrot.slane %v1492, 7
        %v1497 = vrot.slane %v1496, 4
        %v1498 = vrot.slane %v1493, 7
        %v1499 = vsel %vm379, %v1497, %v1498
        %1501 = vst [vmem:[#allocation4 + $0x4] sm:$0xf] %v1499
        %v1502 = vld [vmem:[#allocation3 + $0x4] sm:$0xf]
        %1503 = vst [vmem:[#allocation4 + $0x8] sm:$0xf] %v1502
        %v1504 = vld [vmem:[#allocation4] sm:$0xff]
        %v1505 = vld [vmem:[#allocation4 + $0x8] sm:$0xf]
        %s1506 = scalar_lea.vmem [#allocation12], 192
        %v1507 = vld [vmem:[%s1506] sm:$0xf]
        %v1508 = vld [vmem:[%s1506 + $0x4] sm:$0xf]
        %v1509 = vld [vmem:[%s1506 + $0x8] sm:$0xf]
        %v1510 = vld [vmem:[%s1506 + $0xc] sm:$0xf]
        %v1511 = vld [vmem:[%s1506 + $0x10] sm:$0xf]
        %v1512 = vld [vmem:[%s1506 + $0x14] sm:$0xf]
        %v1513 = vld [vmem:[%s1506 + $0x18] sm:$0xf]
        %v1514 = vld [vmem:[%s1506 + $0x1c] sm:$0xf]
        %v1515 = vld [vmem:[%s1506 + $0x20] sm:$0xf]
        %v1516 = vld [vmem:[%s1506 + $0x24] sm:$0xf]
        %v1517 = vld [vmem:[%s1506 + $0x28] sm:$0xf]
        %v1518 = vld [vmem:[%s1506 + $0x2c] sm:$0xf]
        %v1519 = vld [vmem:[%s1506 + $0x30] sm:$0xf]
        %v1520 = vld [vmem:[%s1506 + $0x34] sm:$0xf]
        %v1521 = vld [vmem:[%s1506 + $0x38] sm:$0xf]
        %v1522 = vld [vmem:[%s1506 + $0x3c] sm:$0xf]
        %v1523 = vld [vmem:[%s1506 + $0x40] sm:$0xf]
        %v1524 = vld [vmem:[%s1506 + $0x44] sm:$0xf]
        %v1525 = vld [vmem:[%s1506 + $0x48] sm:$0xf]
        %v1526 = vld [vmem:[%s1506 + $0x4c] sm:$0xf]
        %v1527 = vld [vmem:[%s1506 + $0x50] sm:$0xf]
        %v1528 = vld [vmem:[%s1506 + $0x54] sm:$0xf]
        %v1529 = vld [vmem:[%s1506 + $0x58] sm:$0xf]
        %v1530 = vld [vmem:[%s1506 + $0x5c] sm:$0xf]
        %v1531 = vld [vmem:[%s1506 + $0x60] sm:$0xf]
        %v1532 = vld [vmem:[%s1506 + $0x64] sm:$0xf]
        %v1533 = vld [vmem:[%s1506 + $0x68] sm:$0xf]
        %v1534 = vld [vmem:[%s1506 + $0x6c] sm:$0xf]
        %v1535 = vld [vmem:[%s1506 + $0x70] sm:$0xf]
        %v1536 = vld [vmem:[%s1506 + $0x74] sm:$0xf]
        %v1537 = vld [vmem:[%s1506 + $0x78] sm:$0xf]
        %v1538 = vld [vmem:[%s1506 + $0x7c] sm:$0xf]
        %v1539 = vld [vmem:[%s1506 + $0x80] sm:$0xf]
        %v1540 = vld [vmem:[%s1506 + $0x84] sm:$0xf]
        %v1541 = vld [vmem:[%s1506 + $0x88] sm:$0xf]
        %v1542 = vld [vmem:[%s1506 + $0x8c] sm:$0xf]
        %v1543 = vld [vmem:[%s1506 + $0x90] sm:$0xf]
        %v1544 = vld [vmem:[%s1506 + $0x94] sm:$0xf]
        %v1545 = vld [vmem:[%s1506 + $0x98] sm:$0xf]
        %v1546 = vld [vmem:[%s1506 + $0x9c] sm:$0xf]
        %v1547 = vld [vmem:[%s1506 + $0xa0] sm:$0xf]
        %v1548 = vld [vmem:[%s1506 + $0xa4] sm:$0xf]
        %v1549 = vld [vmem:[%s1506 + $0xa8] sm:$0xf]
        %v1550 = vld [vmem:[%s1506 + $0xac] sm:$0xf]
        %v1551 = vld [vmem:[%s1506 + $0xb0] sm:$0xf]
        %v1552 = vld [vmem:[%s1506 + $0xb4] sm:$0xf]
        %v1553 = vld [vmem:[%s1506 + $0xb8] sm:$0xf]
        %v1554 = vld [vmem:[%s1506 + $0xbc] sm:$0xf]
        %s1555 = scalar_lea.vmem %s4, 1
        %v1556 = vld [vmem:[%s1555] sm:$0x1]
        %v1558 = vlaneseq
        %v1559 = vshrl.u32 %v1558, 7
        %v1560 = vsub.s32 0, %v1559
        %v1561 = vrot.slane %v1556, %v1560
        %v1565 = vunpack.c.l.b16 %v1504
        %v1566 = vunpack.c.h.b16 %v1504
        %v1567 = vunpack.c.l.b16 %v1505
        %v1568 = vpack.c.b16 %v1565, %v1565
        %v1569 = vpack.c.b16 %v1566, %v1566
        %v1570 = vpack.c.b16 %v1567, %v1567
        %v1622 = vunpack.c.l.b16 %v1507
        %v1623 = vunpack.c.l.b16 %v1508
        %v1624 = vunpack.c.l.b16 %v1509
        %v1625 = vunpack.c.l.b16 %v1510
        %v1626 = vunpack.c.l.b16 %v1511
        %v1627 = vunpack.c.l.b16 %v1512
        %v1628 = vunpack.c.l.b16 %v1513
        %v1629 = vunpack.c.l.b16 %v1514
        %v1630 = vunpack.c.l.b16 %v1515
        %v1631 = vunpack.c.l.b16 %v1516
        %v1632 = vunpack.c.l.b16 %v1517
        %v1633 = vunpack.c.l.b16 %v1518
        %v1634 = vunpack.c.l.b16 %v1519
        %v1635 = vunpack.c.l.b16 %v1520
        %v1636 = vunpack.c.l.b16 %v1521
        %v1637 = vunpack.c.l.b16 %v1522
        %v1638 = vunpack.c.l.b16 %v1523
        %v1639 = vunpack.c.l.b16 %v1524
        %v1640 = vunpack.c.l.b16 %v1525
        %v1641 = vunpack.c.l.b16 %v1526
        %v1642 = vunpack.c.l.b16 %v1527
        %v1643 = vunpack.c.l.b16 %v1528
        %v1644 = vunpack.c.l.b16 %v1529
        %v1645 = vunpack.c.l.b16 %v1530
        %v1646 = vunpack.c.l.b16 %v1531
        %v1647 = vunpack.c.l.b16 %v1532
        %v1648 = vunpack.c.l.b16 %v1533
        %v1649 = vunpack.c.l.b16 %v1534
        %v1650 = vunpack.c.l.b16 %v1535
        %v1651 = vunpack.c.l.b16 %v1536
        %v1652 = vunpack.c.l.b16 %v1537
        %v1653 = vunpack.c.l.b16 %v1538
        %v1654 = vunpack.c.l.b16 %v1539
        %v1655 = vunpack.c.l.b16 %v1540
        %v1656 = vunpack.c.l.b16 %v1541
        %v1657 = vunpack.c.l.b16 %v1542
        %v1658 = vunpack.c.l.b16 %v1543
        %v1659 = vunpack.c.l.b16 %v1544
        %v1660 = vunpack.c.l.b16 %v1545
        %v1661 = vunpack.c.l.b16 %v1546
        %v1662 = vunpack.c.l.b16 %v1547
        %v1663 = vunpack.c.l.b16 %v1548
        %v1664 = vunpack.c.l.b16 %v1549
        %v1665 = vunpack.c.l.b16 %v1550
        %v1666 = vunpack.c.l.b16 %v1551
        %v1667 = vunpack.c.l.b16 %v1552
        %v1668 = vunpack.c.l.b16 %v1553
        %v1669 = vunpack.c.l.b16 %v1554
        %v1670 = vpack.c.b16 %v1623, %v1622
        %v1671 = vpack.c.b16 %v1625, %v1624
        %v1672 = vpack.c.b16 %v1627, %v1626
        %v1673 = vpack.c.b16 %v1629, %v1628
        %v1674 = vpack.c.b16 %v1631, %v1630
        %v1675 = vpack.c.b16 %v1633, %v1632
        %v1676 = vpack.c.b16 %v1635, %v1634
        %v1677 = vpack.c.b16 %v1637, %v1636
        %v1678 = vpack.c.b16 %v1639, %v1638
        %v1679 = vpack.c.b16 %v1641, %v1640
        %v1680 = vpack.c.b16 %v1643, %v1642
        %v1681 = vpack.c.b16 %v1645, %v1644
        %v1682 = vpack.c.b16 %v1647, %v1646
        %v1683 = vpack.c.b16 %v1649, %v1648
        %v1684 = vpack.c.b16 %v1651, %v1650
        %v1685 = vpack.c.b16 %v1653, %v1652
        %v1686 = vpack.c.b16 %v1655, %v1654
        %v1687 = vpack.c.b16 %v1657, %v1656
        %v1688 = vpack.c.b16 %v1659, %v1658
        %v1689 = vpack.c.b16 %v1661, %v1660
        %v1690 = vpack.c.b16 %v1663, %v1662
        %v1691 = vpack.c.b16 %v1665, %v1664
        %v1692 = vpack.c.b16 %v1667, %v1666
        %v1693 = vpack.c.b16 %v1669, %v1668
        %1718 = vmatprep.subr.bf16.mxu0 0
        %1719 = vmatpush1.bf16.msra.mxu0 %v1677
        %1720 = vmatprep.subr.bf16.mxu0 0
        %1721 = vmatpush1.bf16.msra.mxu0 %v1676
        %1722 = vmatprep.subr.bf16.mxu0 0
        %1723 = vmatpush1.bf16.msra.mxu0 %v1675
        %1724 = vmatprep.subr.bf16.mxu0 0
        %1725 = vmatpush1.bf16.msra.mxu0 %v1674
        %1726 = vmatprep.subr.bf16.mxu0 0
        %1727 = vmatpush1.bf16.msra.mxu0 %v1673
        %1728 = vmatprep.subr.bf16.mxu0 0
        %1729 = vmatpush1.bf16.msra.mxu0 %v1672
        %1730 = vmatprep.subr.bf16.mxu0 0
        %1731 = vmatpush1.bf16.msra.mxu0 %v1671
        %1732 = vmatprep.subr.bf16.mxu0 0
        %1733 = vmatpush1.bf16.msra.mxu0 %v1670
        %1734 = vmatprep.subr.bf16.mxu0 0
        %1735 = vmatpush2.bf16.msra.mxu0 %v1685
        %1736 = vmatprep.subr.bf16.mxu0 0
        %1737 = vmatpush2.bf16.msra.mxu0 %v1684
        %1738 = vmatprep.subr.bf16.mxu0 0
        %1739 = vmatpush2.bf16.msra.mxu0 %v1683
        %1740 = vmatprep.subr.bf16.mxu0 0
        %1741 = vmatpush2.bf16.msra.mxu0 %v1682
        %1742 = vmatprep.subr.bf16.mxu0 0
        %1743 = vmatpush2.bf16.msra.mxu0 %v1681
        %1744 = vmatprep.subr.bf16.mxu0 0
        %1745 = vmatpush2.bf16.msra.mxu0 %v1680
        %1746 = vmatprep.subr.bf16.mxu0 0
        %1747 = vmatpush2.bf16.msra.mxu0 %v1679
        %1748 = vmatprep.subr.bf16.mxu0 0
        %1749 = vmatpush2.bf16.msra.mxu0 %v1678
        %1750 = vmatprep.mubr.bf16.mxu0 %v1569
        %1751 = vmatmul.mubr.bf16.gmra.mxu0 %v1568
        %v1752 = vpop.f32.mrf.mxu0
        %v1753 = vadd.f32 %v1561, %v1752
        %v1754 = vpop.f32.mrf.mxu0
        %v1755 = vpop.f32.mrf.mxu0
        %v1756 = vpop.f32.mrf.mxu0
        %1757 = vdwg.mxu0
        %1758 = vmatprep.subr.bf16.mxu0 0
        %1759 = vmatpush1.bf16.msra.mxu0 %v1693
        %1760 = vmatprep.subr.bf16.mxu0 0
        %1761 = vmatpush1.bf16.msra.mxu0 %v1692
        %1762 = vmatprep.subr.bf16.mxu0 0
        %1763 = vmatpush1.bf16.msra.mxu0 %v1691
        %1764 = vmatprep.subr.bf16.mxu0 0
        %1765 = vmatpush1.bf16.msra.mxu0 %v1690
        %1766 = vmatprep.subr.bf16.mxu0 0
        %1767 = vmatpush1.bf16.msra.mxu0 %v1689
        %1768 = vmatprep.subr.bf16.mxu0 0
        %1769 = vmatpush1.bf16.msra.mxu0 %v1688
        %1770 = vmatprep.subr.bf16.mxu0 0
        %1771 = vmatpush1.bf16.msra.mxu0 %v1687
        %1772 = vmatprep.subr.bf16.mxu0 0
        %1773 = vmatpush1.bf16.msra.mxu0 %v1686
        %1774 = vmatprep.subr.bf16.mxu0 0
        %1775 = vmatpush2.bf16.msra.mxu0 0
        %1776 = vmatprep.subr.bf16.mxu0 0
        %1777 = vmatpush2.bf16.msra.mxu0 0
        %1778 = vmatprep.subr.bf16.mxu0 0
        %1779 = vmatpush2.bf16.msra.mxu0 0
        %1780 = vmatprep.subr.bf16.mxu0 0
        %1781 = vmatpush2.bf16.msra.mxu0 0
        %1782 = vmatprep.subr.bf16.mxu0 0
        %1783 = vmatpush2.bf16.msra.mxu0 0
        %1784 = vmatprep.subr.bf16.mxu0 0
        %1785 = vmatpush2.bf16.msra.mxu0 0
        %1786 = vmatprep.subr.bf16.mxu0 0
        %1787 = vmatpush2.bf16.msra.mxu0 0
        %1788 = vmatprep.subr.bf16.mxu0 0
        %1789 = vmatpush2.bf16.msra.mxu0 0
        %1790 = vmatprep.mubr.bf16.mxu0 0
        %1791 = vmatmul.mubr.bf16.gmra.mxu0 %v1570
        %v1792 = vpop.f32.mrf.mxu0
        %v1793 = vadd.f32 %v1753, %v1792
        %v1794 = vpop.f32.mrf.mxu0
        %v1795 = vpop.f32.mrf.mxu0
        %v1796 = vpop.f32.mrf.mxu0
        %1797 = vdwg.mxu0
        %vm1798 = vcmp.ge.f32.partialorder %v1793, 0.0
        %v1799 = vmul.f32 %v1793, 0.01
        %v1800 = vsel %vm1798, %v1793, %v1799
        %v1801 = vld [vmem:[#allocation2 + $0x4] sm:$0xf]
        %v1802 = vunpack.c.l.bf16 %v1801
        %v1803 = vadd.f32 %v1800, %v1802
        %v1804 = vpack.c.bf16 %v1803, %v1803
        %1805 = vst [vmem:[#allocation2 + $0x4] sm:$0xf] %v1804
        %s1806 = scalar_lea.vmem [#allocation5], 8
        %v1807 = vld [vmem:[%s1806] sm:$0xf]
        %1808 = vst [vmem:[#allocation2] sm:$0xf] %v1807
        %v1809 = vld [vmem:[#allocation2 + $0x4] sm:$0xf]
        %1810 = vst [vmem:[%s1806] sm:$0xf] %v1809
        %v1811 = vld [vmem:[#allocation2] sm:$0xf]
        %1812 = vst [vmem:[#allocation4] sm:$0xf] %v1811
        %v1813 = vld [vmem:[#allocation2] sm:$0xc]
        %v1814 = vld [vmem:[#allocation2 + $0x4] sm:$0x3]
        %v1817 = vrot.slane %v1813, 6
        %v1818 = vrot.slane %v1817, 4
        %v1819 = vrot.slane %v1814, 6
        %v1820 = vsel %vm1159, %v1818, %v1819
        %1822 = vst [vmem:[#allocation4 + $0x4] sm:$0xf] %v1820
        %v1823 = vld [vmem:[#allocation2 + $0x4] sm:$0xf]
        %1824 = vst [vmem:[#allocation4 + $0x8] sm:$0xf] %v1823
        %v1825 = vld [vmem:[#allocation4] sm:$0xff]
        %v1826 = vld [vmem:[#allocation4 + $0x8] sm:$0xf]
        %s1827 = scalar_lea.vmem [#allocation10], 384
        %v1828 = vld [vmem:[%s1827] sm:$0xf]
        %v1829 = vld [vmem:[%s1827 + $0x4] sm:$0xf]
        %v1830 = vld [vmem:[%s1827 + $0x8] sm:$0xf]
        %v1831 = vld [vmem:[%s1827 + $0xc] sm:$0xf]
        %v1832 = vld [vmem:[%s1827 + $0x10] sm:$0xf]
        %v1833 = vld [vmem:[%s1827 + $0x14] sm:$0xf]
        %v1834 = vld [vmem:[%s1827 + $0x18] sm:$0xf]
        %v1835 = vld [vmem:[%s1827 + $0x1c] sm:$0xf]
        %v1836 = vld [vmem:[%s1827 + $0x20] sm:$0xf]
        %v1837 = vld [vmem:[%s1827 + $0x24] sm:$0xf]
        %v1838 = vld [vmem:[%s1827 + $0x28] sm:$0xf]
        %v1839 = vld [vmem:[%s1827 + $0x2c] sm:$0xf]
        %v1840 = vld [vmem:[%s1827 + $0x30] sm:$0xf]
        %v1841 = vld [vmem:[%s1827 + $0x34] sm:$0xf]
        %v1842 = vld [vmem:[%s1827 + $0x38] sm:$0xf]
        %v1843 = vld [vmem:[%s1827 + $0x3c] sm:$0xf]
        %v1844 = vld [vmem:[%s1827 + $0x40] sm:$0xf]
        %v1845 = vld [vmem:[%s1827 + $0x44] sm:$0xf]
        %v1846 = vld [vmem:[%s1827 + $0x48] sm:$0xf]
        %v1847 = vld [vmem:[%s1827 + $0x4c] sm:$0xf]
        %v1848 = vld [vmem:[%s1827 + $0x50] sm:$0xf]
        %v1849 = vld [vmem:[%s1827 + $0x54] sm:$0xf]
        %v1850 = vld [vmem:[%s1827 + $0x58] sm:$0xf]
        %v1851 = vld [vmem:[%s1827 + $0x5c] sm:$0xf]
        %v1852 = vld [vmem:[%s1827 + $0x60] sm:$0xf]
        %v1853 = vld [vmem:[%s1827 + $0x64] sm:$0xf]
        %v1854 = vld [vmem:[%s1827 + $0x68] sm:$0xf]
        %v1855 = vld [vmem:[%s1827 + $0x6c] sm:$0xf]
        %v1856 = vld [vmem:[%s1827 + $0x70] sm:$0xf]
        %v1857 = vld [vmem:[%s1827 + $0x74] sm:$0xf]
        %v1858 = vld [vmem:[%s1827 + $0x78] sm:$0xf]
        %v1859 = vld [vmem:[%s1827 + $0x7c] sm:$0xf]
        %v1860 = vld [vmem:[%s1827 + $0x80] sm:$0xf]
        %v1861 = vld [vmem:[%s1827 + $0x84] sm:$0xf]
        %v1862 = vld [vmem:[%s1827 + $0x88] sm:$0xf]
        %v1863 = vld [vmem:[%s1827 + $0x8c] sm:$0xf]
        %v1864 = vld [vmem:[%s1827 + $0x90] sm:$0xf]
        %v1865 = vld [vmem:[%s1827 + $0x94] sm:$0xf]
        %v1866 = vld [vmem:[%s1827 + $0x98] sm:$0xf]
        %v1867 = vld [vmem:[%s1827 + $0x9c] sm:$0xf]
        %v1868 = vld [vmem:[%s1827 + $0xa0] sm:$0xf]
        %v1869 = vld [vmem:[%s1827 + $0xa4] sm:$0xf]
        %v1870 = vld [vmem:[%s1827 + $0xa8] sm:$0xf]
        %v1871 = vld [vmem:[%s1827 + $0xac] sm:$0xf]
        %v1872 = vld [vmem:[%s1827 + $0xb0] sm:$0xf]
        %v1873 = vld [vmem:[%s1827 + $0xb4] sm:$0xf]
        %v1874 = vld [vmem:[%s1827 + $0xb8] sm:$0xf]
        %v1875 = vld [vmem:[%s1827 + $0xbc] sm:$0xf]
        %s1876 = scalar_lea.vmem %s2, 2
        %v1877 = vld [vmem:[%s1876] sm:$0x1]
        %v1879 = vlaneseq
        %v1880 = vshrl.u32 %v1879, 7
        %v1881 = vsub.s32 0, %v1880
        %v1882 = vrot.slane %v1877, %v1881
        %v1886 = vunpack.c.l.b16 %v1825
        %v1887 = vunpack.c.h.b16 %v1825
        %v1888 = vunpack.c.l.b16 %v1826
        %v1889 = vpack.c.b16 %v1886, %v1886
        %v1890 = vpack.c.b16 %v1887, %v1887
        %v1891 = vpack.c.b16 %v1888, %v1888
        %v1943 = vunpack.c.l.b16 %v1828
        %v1944 = vunpack.c.l.b16 %v1829
        %v1945 = vunpack.c.l.b16 %v1830
        %v1946 = vunpack.c.l.b16 %v1831
        %v1947 = vunpack.c.l.b16 %v1832
        %v1948 = vunpack.c.l.b16 %v1833
        %v1949 = vunpack.c.l.b16 %v1834
        %v1950 = vunpack.c.l.b16 %v1835
        %v1951 = vunpack.c.l.b16 %v1836
        %v1952 = vunpack.c.l.b16 %v1837
        %v1953 = vunpack.c.l.b16 %v1838
        %v1954 = vunpack.c.l.b16 %v1839
        %v1955 = vunpack.c.l.b16 %v1840
        %v1956 = vunpack.c.l.b16 %v1841
        %v1957 = vunpack.c.l.b16 %v1842
        %v1958 = vunpack.c.l.b16 %v1843
        %v1959 = vunpack.c.l.b16 %v1844
        %v1960 = vunpack.c.l.b16 %v1845
        %v1961 = vunpack.c.l.b16 %v1846
        %v1962 = vunpack.c.l.b16 %v1847
        %v1963 = vunpack.c.l.b16 %v1848
        %v1964 = vunpack.c.l.b16 %v1849
        %v1965 = vunpack.c.l.b16 %v1850
        %v1966 = vunpack.c.l.b16 %v1851
        %v1967 = vunpack.c.l.b16 %v1852
        %v1968 = vunpack.c.l.b16 %v1853
        %v1969 = vunpack.c.l.b16 %v1854
        %v1970 = vunpack.c.l.b16 %v1855
        %v1971 = vunpack.c.l.b16 %v1856
        %v1972 = vunpack.c.l.b16 %v1857
        %v1973 = vunpack.c.l.b16 %v1858
        %v1974 = vunpack.c.l.b16 %v1859
        %v1975 = vunpack.c.l.b16 %v1860
        %v1976 = vunpack.c.l.b16 %v1861
        %v1977 = vunpack.c.l.b16 %v1862
        %v1978 = vunpack.c.l.b16 %v1863
        %v1979 = vunpack.c.l.b16 %v1864
        %v1980 = vunpack.c.l.b16 %v1865
        %v1981 = vunpack.c.l.b16 %v1866
        %v1982 = vunpack.c.l.b16 %v1867
        %v1983 = vunpack.c.l.b16 %v1868
        %v1984 = vunpack.c.l.b16 %v1869
        %v1985 = vunpack.c.l.b16 %v1870
        %v1986 = vunpack.c.l.b16 %v1871
        %v1987 = vunpack.c.l.b16 %v1872
        %v1988 = vunpack.c.l.b16 %v1873
        %v1989 = vunpack.c.l.b16 %v1874
        %v1990 = vunpack.c.l.b16 %v1875
        %v1991 = vpack.c.b16 %v1944, %v1943
        %v1992 = vpack.c.b16 %v1946, %v1945
        %v1993 = vpack.c.b16 %v1948, %v1947
        %v1994 = vpack.c.b16 %v1950, %v1949
        %v1995 = vpack.c.b16 %v1952, %v1951
        %v1996 = vpack.c.b16 %v1954, %v1953
        %v1997 = vpack.c.b16 %v1956, %v1955
        %v1998 = vpack.c.b16 %v1958, %v1957
        %v1999 = vpack.c.b16 %v1960, %v1959
        %v2000 = vpack.c.b16 %v1962, %v1961
        %v2001 = vpack.c.b16 %v1964, %v1963
        %v2002 = vpack.c.b16 %v1966, %v1965
        %v2003 = vpack.c.b16 %v1968, %v1967
        %v2004 = vpack.c.b16 %v1970, %v1969
        %v2005 = vpack.c.b16 %v1972, %v1971
        %v2006 = vpack.c.b16 %v1974, %v1973
        %v2007 = vpack.c.b16 %v1976, %v1975
        %v2008 = vpack.c.b16 %v1978, %v1977
        %v2009 = vpack.c.b16 %v1980, %v1979
        %v2010 = vpack.c.b16 %v1982, %v1981
        %v2011 = vpack.c.b16 %v1984, %v1983
        %v2012 = vpack.c.b16 %v1986, %v1985
        %v2013 = vpack.c.b16 %v1988, %v1987
        %v2014 = vpack.c.b16 %v1990, %v1989
        %2039 = vmatprep.subr.bf16.mxu0 0
        %2040 = vmatpush1.bf16.msra.mxu0 %v1998
        %2041 = vmatprep.subr.bf16.mxu0 0
        %2042 = vmatpush1.bf16.msra.mxu0 %v1997
        %2043 = vmatprep.subr.bf16.mxu0 0
        %2044 = vmatpush1.bf16.msra.mxu0 %v1996
        %2045 = vmatprep.subr.bf16.mxu0 0
        %2046 = vmatpush1.bf16.msra.mxu0 %v1995
        %2047 = vmatprep.subr.bf16.mxu0 0
        %2048 = vmatpush1.bf16.msra.mxu0 %v1994
        %2049 = vmatprep.subr.bf16.mxu0 0
        %2050 = vmatpush1.bf16.msra.mxu0 %v1993
        %2051 = vmatprep.subr.bf16.mxu0 0
        %2052 = vmatpush1.bf16.msra.mxu0 %v1992
        %2053 = vmatprep.subr.bf16.mxu0 0
        %2054 = vmatpush1.bf16.msra.mxu0 %v1991
        %2055 = vmatprep.subr.bf16.mxu0 0
        %2056 = vmatpush2.bf16.msra.mxu0 %v2006
        %2057 = vmatprep.subr.bf16.mxu0 0
        %2058 = vmatpush2.bf16.msra.mxu0 %v2005
        %2059 = vmatprep.subr.bf16.mxu0 0
        %2060 = vmatpush2.bf16.msra.mxu0 %v2004
        %2061 = vmatprep.subr.bf16.mxu0 0
        %2062 = vmatpush2.bf16.msra.mxu0 %v2003
        %2063 = vmatprep.subr.bf16.mxu0 0
        %2064 = vmatpush2.bf16.msra.mxu0 %v2002
        %2065 = vmatprep.subr.bf16.mxu0 0
        %2066 = vmatpush2.bf16.msra.mxu0 %v2001
        %2067 = vmatprep.subr.bf16.mxu0 0
        %2068 = vmatpush2.bf16.msra.mxu0 %v2000
        %2069 = vmatprep.subr.bf16.mxu0 0
        %2070 = vmatpush2.bf16.msra.mxu0 %v1999
        %2071 = vmatprep.mubr.bf16.mxu0 %v1890
        %2072 = vmatmul.mubr.bf16.gmra.mxu0 %v1889
        %v2073 = vpop.f32.mrf.mxu0
        %v2074 = vadd.f32 %v1882, %v2073
        %v2075 = vpop.f32.mrf.mxu0
        %v2076 = vpop.f32.mrf.mxu0
        %v2077 = vpop.f32.mrf.mxu0
        %2078 = vdwg.mxu0
        %2079 = vmatprep.subr.bf16.mxu0 0
        %2080 = vmatpush1.bf16.msra.mxu0 %v2014
        %2081 = vmatprep.subr.bf16.mxu0 0
        %2082 = vmatpush1.bf16.msra.mxu0 %v2013
        %2083 = vmatprep.subr.bf16.mxu0 0
        %2084 = vmatpush1.bf16.msra.mxu0 %v2012
        %2085 = vmatprep.subr.bf16.mxu0 0
        %2086 = vmatpush1.bf16.msra.mxu0 %v2011
        %2087 = vmatprep.subr.bf16.mxu0 0
        %2088 = vmatpush1.bf16.msra.mxu0 %v2010
        %2089 = vmatprep.subr.bf16.mxu0 0
        %2090 = vmatpush1.bf16.msra.mxu0 %v2009
        %2091 = vmatprep.subr.bf16.mxu0 0
        %2092 = vmatpush1.bf16.msra.mxu0 %v2008
        %2093 = vmatprep.subr.bf16.mxu0 0
        %2094 = vmatpush1.bf16.msra.mxu0 %v2007
        %2095 = vmatprep.subr.bf16.mxu0 0
        %2096 = vmatpush2.bf16.msra.mxu0 0
        %2097 = vmatprep.subr.bf16.mxu0 0
        %2098 = vmatpush2.bf16.msra.mxu0 0
        %2099 = vmatprep.subr.bf16.mxu0 0
        %2100 = vmatpush2.bf16.msra.mxu0 0
        %2101 = vmatprep.subr.bf16.mxu0 0
        %2102 = vmatpush2.bf16.msra.mxu0 0
        %2103 = vmatprep.subr.bf16.mxu0 0
        %2104 = vmatpush2.bf16.msra.mxu0 0
        %2105 = vmatprep.subr.bf16.mxu0 0
        %2106 = vmatpush2.bf16.msra.mxu0 0
        %2107 = vmatprep.subr.bf16.mxu0 0
        %2108 = vmatpush2.bf16.msra.mxu0 0
        %2109 = vmatprep.subr.bf16.mxu0 0
        %2110 = vmatpush2.bf16.msra.mxu0 0
        %2111 = vmatprep.mubr.bf16.mxu0 0
        %2112 = vmatmul.mubr.bf16.gmra.mxu0 %v1891
        %v2113 = vpop.f32.mrf.mxu0
        %v2114 = vadd.f32 %v2074, %v2113
        %v2115 = vpop.f32.mrf.mxu0
        %v2116 = vpop.f32.mrf.mxu0
        %v2117 = vpop.f32.mrf.mxu0
        %2118 = vdwg.mxu0
        %vm2119 = vcmp.ge.f32.partialorder %v2114, 0.0
        %v2120 = vmul.f32 %v2114, 0.01
        %v2121 = vsel %vm2119, %v2114, %v2120
        %s2122 = scalar_lea.vmem [#allocation6], 8
        %v2123 = vld [vmem:[%s2122] sm:$0xf]
        %2124 = vst [vmem:[#allocation3] sm:$0xf] %v2123
        %v2125 = vpack.c.bf16 %v2121, %v2121
        %2126 = vst [vmem:[#allocation3 + $0x4] sm:$0xf] %v2125
        %v2127 = vld [vmem:[#allocation3 + $0x4] sm:$0xf]
        %2128 = vst [vmem:[%s2122] sm:$0xf] %v2127
        %v2129 = vld [vmem:[#allocation3] sm:$0xf]
        %2130 = vst [vmem:[#allocation4] sm:$0xf] %v2129
        %v2131 = vld [vmem:[#allocation3] sm:$0xc]
        %v2132 = vld [vmem:[#allocation3 + $0x4] sm:$0x3]
        %v2135 = vrot.slane %v2131, 6
        %v2136 = vrot.slane %v2135, 4
        %v2137 = vrot.slane %v2132, 6
        %v2138 = vsel %vm1159, %v2136, %v2137
        %2140 = vst [vmem:[#allocation4 + $0x4] sm:$0xf] %v2138
        %v2141 = vld [vmem:[#allocation3 + $0x4] sm:$0xf]
        %2142 = vst [vmem:[#allocation4 + $0x8] sm:$0xf] %v2141
        %v2143 = vld [vmem:[#allocation4] sm:$0xff]
        %v2144 = vld [vmem:[#allocation4 + $0x8] sm:$0xf]
        %s2145 = scalar_lea.vmem [#allocation12], 384
        %v2146 = vld [vmem:[%s2145] sm:$0xf]
        %v2147 = vld [vmem:[%s2145 + $0x4] sm:$0xf]
        %v2148 = vld [vmem:[%s2145 + $0x8] sm:$0xf]
        %v2149 = vld [vmem:[%s2145 + $0xc] sm:$0xf]
        %v2150 = vld [vmem:[%s2145 + $0x10] sm:$0xf]
        %v2151 = vld [vmem:[%s2145 + $0x14] sm:$0xf]
        %v2152 = vld [vmem:[%s2145 + $0x18] sm:$0xf]
        %v2153 = vld [vmem:[%s2145 + $0x1c] sm:$0xf]
        %v2154 = vld [vmem:[%s2145 + $0x20] sm:$0xf]
        %v2155 = vld [vmem:[%s2145 + $0x24] sm:$0xf]
        %v2156 = vld [vmem:[%s2145 + $0x28] sm:$0xf]
        %v2157 = vld [vmem:[%s2145 + $0x2c] sm:$0xf]
        %v2158 = vld [vmem:[%s2145 + $0x30] sm:$0xf]
        %v2159 = vld [vmem:[%s2145 + $0x34] sm:$0xf]
        %v2160 = vld [vmem:[%s2145 + $0x38] sm:$0xf]
        %v2161 = vld [vmem:[%s2145 + $0x3c] sm:$0xf]
        %v2162 = vld [vmem:[%s2145 + $0x40] sm:$0xf]
        %v2163 = vld [vmem:[%s2145 + $0x44] sm:$0xf]
        %v2164 = vld [vmem:[%s2145 + $0x48] sm:$0xf]
        %v2165 = vld [vmem:[%s2145 + $0x4c] sm:$0xf]
        %v2166 = vld [vmem:[%s2145 + $0x50] sm:$0xf]
        %v2167 = vld [vmem:[%s2145 + $0x54] sm:$0xf]
        %v2168 = vld [vmem:[%s2145 + $0x58] sm:$0xf]
        %v2169 = vld [vmem:[%s2145 + $0x5c] sm:$0xf]
        %v2170 = vld [vmem:[%s2145 + $0x60] sm:$0xf]
        %v2171 = vld [vmem:[%s2145 + $0x64] sm:$0xf]
        %v2172 = vld [vmem:[%s2145 + $0x68] sm:$0xf]
        %v2173 = vld [vmem:[%s2145 + $0x6c] sm:$0xf]
        %v2174 = vld [vmem:[%s2145 + $0x70] sm:$0xf]
        %v2175 = vld [vmem:[%s2145 + $0x74] sm:$0xf]
        %v2176 = vld [vmem:[%s2145 + $0x78] sm:$0xf]
        %v2177 = vld [vmem:[%s2145 + $0x7c] sm:$0xf]
        %v2178 = vld [vmem:[%s2145 + $0x80] sm:$0xf]
        %v2179 = vld [vmem:[%s2145 + $0x84] sm:$0xf]
        %v2180 = vld [vmem:[%s2145 + $0x88] sm:$0xf]
        %v2181 = vld [vmem:[%s2145 + $0x8c] sm:$0xf]
        %v2182 = vld [vmem:[%s2145 + $0x90] sm:$0xf]
        %v2183 = vld [vmem:[%s2145 + $0x94] sm:$0xf]
        %v2184 = vld [vmem:[%s2145 + $0x98] sm:$0xf]
        %v2185 = vld [vmem:[%s2145 + $0x9c] sm:$0xf]
        %v2186 = vld [vmem:[%s2145 + $0xa0] sm:$0xf]
        %v2187 = vld [vmem:[%s2145 + $0xa4] sm:$0xf]
        %v2188 = vld [vmem:[%s2145 + $0xa8] sm:$0xf]
        %v2189 = vld [vmem:[%s2145 + $0xac] sm:$0xf]
        %v2190 = vld [vmem:[%s2145 + $0xb0] sm:$0xf]
        %v2191 = vld [vmem:[%s2145 + $0xb4] sm:$0xf]
        %v2192 = vld [vmem:[%s2145 + $0xb8] sm:$0xf]
        %v2193 = vld [vmem:[%s2145 + $0xbc] sm:$0xf]
        %s2194 = scalar_lea.vmem %s4, 2
        %v2195 = vld [vmem:[%s2194] sm:$0x1]
        %v2197 = vlaneseq
        %v2198 = vshrl.u32 %v2197, 7
        %v2199 = vsub.s32 0, %v2198
        %v2200 = vrot.slane %v2195, %v2199
        %v2204 = vunpack.c.l.b16 %v2143
        %v2205 = vunpack.c.h.b16 %v2143
        %v2206 = vunpack.c.l.b16 %v2144
        %v2207 = vpack.c.b16 %v2204, %v2204
        %v2208 = vpack.c.b16 %v2205, %v2205
        %v2209 = vpack.c.b16 %v2206, %v2206
        %v2261 = vunpack.c.l.b16 %v2146
        %v2262 = vunpack.c.l.b16 %v2147
        %v2263 = vunpack.c.l.b16 %v2148
        %v2264 = vunpack.c.l.b16 %v2149
        %v2265 = vunpack.c.l.b16 %v2150
        %v2266 = vunpack.c.l.b16 %v2151
        %v2267 = vunpack.c.l.b16 %v2152
        %v2268 = vunpack.c.l.b16 %v2153
        %v2269 = vunpack.c.l.b16 %v2154
        %v2270 = vunpack.c.l.b16 %v2155
        %v2271 = vunpack.c.l.b16 %v2156
        %v2272 = vunpack.c.l.b16 %v2157
        %v2273 = vunpack.c.l.b16 %v2158
        %v2274 = vunpack.c.l.b16 %v2159
        %v2275 = vunpack.c.l.b16 %v2160
        %v2276 = vunpack.c.l.b16 %v2161
        %v2277 = vunpack.c.l.b16 %v2162
        %v2278 = vunpack.c.l.b16 %v2163
        %v2279 = vunpack.c.l.b16 %v2164
        %v2280 = vunpack.c.l.b16 %v2165
        %v2281 = vunpack.c.l.b16 %v2166
        %v2282 = vunpack.c.l.b16 %v2167
        %v2283 = vunpack.c.l.b16 %v2168
        %v2284 = vunpack.c.l.b16 %v2169
        %v2285 = vunpack.c.l.b16 %v2170
        %v2286 = vunpack.c.l.b16 %v2171
        %v2287 = vunpack.c.l.b16 %v2172
        %v2288 = vunpack.c.l.b16 %v2173
        %v2289 = vunpack.c.l.b16 %v2174
        %v2290 = vunpack.c.l.b16 %v2175
        %v2291 = vunpack.c.l.b16 %v2176
        %v2292 = vunpack.c.l.b16 %v2177
        %v2293 = vunpack.c.l.b16 %v2178
        %v2294 = vunpack.c.l.b16 %v2179
        %v2295 = vunpack.c.l.b16 %v2180
        %v2296 = vunpack.c.l.b16 %v2181
        %v2297 = vunpack.c.l.b16 %v2182
        %v2298 = vunpack.c.l.b16 %v2183
        %v2299 = vunpack.c.l.b16 %v2184
        %v2300 = vunpack.c.l.b16 %v2185
        %v2301 = vunpack.c.l.b16 %v2186
        %v2302 = vunpack.c.l.b16 %v2187
        %v2303 = vunpack.c.l.b16 %v2188
        %v2304 = vunpack.c.l.b16 %v2189
        %v2305 = vunpack.c.l.b16 %v2190
        %v2306 = vunpack.c.l.b16 %v2191
        %v2307 = vunpack.c.l.b16 %v2192
        %v2308 = vunpack.c.l.b16 %v2193
        %v2309 = vpack.c.b16 %v2262, %v2261
        %v2310 = vpack.c.b16 %v2264, %v2263
        %v2311 = vpack.c.b16 %v2266, %v2265
        %v2312 = vpack.c.b16 %v2268, %v2267
        %v2313 = vpack.c.b16 %v2270, %v2269
        %v2314 = vpack.c.b16 %v2272, %v2271
        %v2315 = vpack.c.b16 %v2274, %v2273
        %v2316 = vpack.c.b16 %v2276, %v2275
        %v2317 = vpack.c.b16 %v2278, %v2277
        %v2318 = vpack.c.b16 %v2280, %v2279
        %v2319 = vpack.c.b16 %v2282, %v2281
        %v2320 = vpack.c.b16 %v2284, %v2283
        %v2321 = vpack.c.b16 %v2286, %v2285
        %v2322 = vpack.c.b16 %v2288, %v2287
        %v2323 = vpack.c.b16 %v2290, %v2289
        %v2324 = vpack.c.b16 %v2292, %v2291
        %v2325 = vpack.c.b16 %v2294, %v2293
        %v2326 = vpack.c.b16 %v2296, %v2295
        %v2327 = vpack.c.b16 %v2298, %v2297
        %v2328 = vpack.c.b16 %v2300, %v2299
        %v2329 = vpack.c.b16 %v2302, %v2301
        %v2330 = vpack.c.b16 %v2304, %v2303
        %v2331 = vpack.c.b16 %v2306, %v2305
        %v2332 = vpack.c.b16 %v2308, %v2307
        %2357 = vmatprep.subr.bf16.mxu0 0
        %2358 = vmatpush1.bf16.msra.mxu0 %v2316
        %2359 = vmatprep.subr.bf16.mxu0 0
        %2360 = vmatpush1.bf16.msra.mxu0 %v2315
        %2361 = vmatprep.subr.bf16.mxu0 0
        %2362 = vmatpush1.bf16.msra.mxu0 %v2314
        %2363 = vmatprep.subr.bf16.mxu0 0
        %2364 = vmatpush1.bf16.msra.mxu0 %v2313
        %2365 = vmatprep.subr.bf16.mxu0 0
        %2366 = vmatpush1.bf16.msra.mxu0 %v2312
        %2367 = vmatprep.subr.bf16.mxu0 0
        %2368 = vmatpush1.bf16.msra.mxu0 %v2311
        %2369 = vmatprep.subr.bf16.mxu0 0
        %2370 = vmatpush1.bf16.msra.mxu0 %v2310
        %2371 = vmatprep.subr.bf16.mxu0 0
        %2372 = vmatpush1.bf16.msra.mxu0 %v2309
        %2373 = vmatprep.subr.bf16.mxu0 0
        %2374 = vmatpush2.bf16.msra.mxu0 %v2324
        %2375 = vmatprep.subr.bf16.mxu0 0
        %2376 = vmatpush2.bf16.msra.mxu0 %v2323
        %2377 = vmatprep.subr.bf16.mxu0 0
        %2378 = vmatpush2.bf16.msra.mxu0 %v2322
        %2379 = vmatprep.subr.bf16.mxu0 0
        %2380 = vmatpush2.bf16.msra.mxu0 %v2321
        %2381 = vmatprep.subr.bf16.mxu0 0
        %2382 = vmatpush2.bf16.msra.mxu0 %v2320
        %2383 = vmatprep.subr.bf16.mxu0 0
        %2384 = vmatpush2.bf16.msra.mxu0 %v2319
        %2385 = vmatprep.subr.bf16.mxu0 0
        %2386 = vmatpush2.bf16.msra.mxu0 %v2318
        %2387 = vmatprep.subr.bf16.mxu0 0
        %2388 = vmatpush2.bf16.msra.mxu0 %v2317
        %2389 = vmatprep.mubr.bf16.mxu0 %v2208
        %2390 = vmatmul.mubr.bf16.gmra.mxu0 %v2207
        %v2391 = vpop.f32.mrf.mxu0
        %v2392 = vadd.f32 %v2200, %v2391
        %v2393 = vpop.f32.mrf.mxu0
        %v2394 = vpop.f32.mrf.mxu0
        %v2395 = vpop.f32.mrf.mxu0
        %2396 = vdwg.mxu0
        %2397 = vmatprep.subr.bf16.mxu0 0
        %2398 = vmatpush1.bf16.msra.mxu0 %v2332
        %2399 = vmatprep.subr.bf16.mxu0 0
        %2400 = vmatpush1.bf16.msra.mxu0 %v2331
        %2401 = vmatprep.subr.bf16.mxu0 0
        %2402 = vmatpush1.bf16.msra.mxu0 %v2330
        %2403 = vmatprep.subr.bf16.mxu0 0
        %2404 = vmatpush1.bf16.msra.mxu0 %v2329
        %2405 = vmatprep.subr.bf16.mxu0 0
        %2406 = vmatpush1.bf16.msra.mxu0 %v2328
        %2407 = vmatprep.subr.bf16.mxu0 0
        %2408 = vmatpush1.bf16.msra.mxu0 %v2327
        %2409 = vmatprep.subr.bf16.mxu0 0
        %2410 = vmatpush1.bf16.msra.mxu0 %v2326
        %2411 = vmatprep.subr.bf16.mxu0 0
        %2412 = vmatpush1.bf16.msra.mxu0 %v2325
        %2413 = vmatprep.subr.bf16.mxu0 0
        %2414 = vmatpush2.bf16.msra.mxu0 0
        %2415 = vmatprep.subr.bf16.mxu0 0
        %2416 = vmatpush2.bf16.msra.mxu0 0
        %2417 = vmatprep.subr.bf16.mxu0 0
        %2418 = vmatpush2.bf16.msra.mxu0 0
        %2419 = vmatprep.subr.bf16.mxu0 0
        %2420 = vmatpush2.bf16.msra.mxu0 0
        %2421 = vmatprep.subr.bf16.mxu0 0
        %2422 = vmatpush2.bf16.msra.mxu0 0
        %2423 = vmatprep.subr.bf16.mxu0 0
        %2424 = vmatpush2.bf16.msra.mxu0 0
        %2425 = vmatprep.subr.bf16.mxu0 0
        %2426 = vmatpush2.bf16.msra.mxu0 0
        %2427 = vmatprep.subr.bf16.mxu0 0
        %2428 = vmatpush2.bf16.msra.mxu0 0
        %2429 = vmatprep.mubr.bf16.mxu0 0
        %2430 = vmatmul.mubr.bf16.gmra.mxu0 %v2209
        %v2431 = vpop.f32.mrf.mxu0
        %v2432 = vadd.f32 %v2392, %v2431
        %v2433 = vpop.f32.mrf.mxu0
        %v2434 = vpop.f32.mrf.mxu0
        %v2435 = vpop.f32.mrf.mxu0
        %2436 = vdwg.mxu0
        %vm2437 = vcmp.ge.f32.partialorder %v2432, 0.0
        %v2438 = vmul.f32 %v2432, 0.01
        %v2439 = vsel %vm2437, %v2432, %v2438
        %v2440 = vld [vmem:[#allocation2 + $0x4] sm:$0xf]
        %s2441 = scalar_lea.vmem [#allocation13], 64
        %v2442 = vld [vmem:[%s2441] sm:$0xf]
        %v2443 = vld [vmem:[%s2441 + $0x4] sm:$0xf]
        %v2444 = vld [vmem:[%s2441 + $0x8] sm:$0xf]
        %v2445 = vld [vmem:[%s2441 + $0xc] sm:$0xf]
        %v2446 = vld [vmem:[%s2441 + $0x10] sm:$0xf]
        %v2447 = vld [vmem:[%s2441 + $0x14] sm:$0xf]
        %v2448 = vld [vmem:[%s2441 + $0x18] sm:$0xf]
        %v2449 = vld [vmem:[%s2441 + $0x1c] sm:$0xf]
        %v2450 = vld [vmem:[%s2441 + $0x20] sm:$0xf]
        %v2451 = vld [vmem:[%s2441 + $0x24] sm:$0xf]
        %v2452 = vld [vmem:[%s2441 + $0x28] sm:$0xf]
        %v2453 = vld [vmem:[%s2441 + $0x2c] sm:$0xf]
        %v2454 = vld [vmem:[%s2441 + $0x30] sm:$0xf]
        %v2455 = vld [vmem:[%s2441 + $0x34] sm:$0xf]
        %v2456 = vld [vmem:[%s2441 + $0x38] sm:$0xf]
        %v2457 = vld [vmem:[%s2441 + $0x3c] sm:$0xf]
        %s2458 = scalar_lea.vmem %s6, 1
        %v2459 = vld [vmem:[%s2458] sm:$0x1]
        %v2461 = vlaneseq
        %v2462 = vshrl.u32 %v2461, 7
        %v2463 = vsub.s32 0, %v2462
        %v2464 = vrot.slane %v2459, %v2463
        %v2482 = vunpack.c.l.b16 %v2442
        %v2483 = vunpack.c.l.b16 %v2443
        %v2484 = vunpack.c.l.b16 %v2444
        %v2485 = vunpack.c.l.b16 %v2445
        %v2486 = vunpack.c.l.b16 %v2446
        %v2487 = vunpack.c.l.b16 %v2447
        %v2488 = vunpack.c.l.b16 %v2448
        %v2489 = vunpack.c.l.b16 %v2449
        %v2490 = vunpack.c.l.b16 %v2450
        %v2491 = vunpack.c.l.b16 %v2451
        %v2492 = vunpack.c.l.b16 %v2452
        %v2493 = vunpack.c.l.b16 %v2453
        %v2494 = vunpack.c.l.b16 %v2454
        %v2495 = vunpack.c.l.b16 %v2455
        %v2496 = vunpack.c.l.b16 %v2456
        %v2497 = vunpack.c.l.b16 %v2457
        %v2498 = vpack.c.b16 %v2483, %v2482
        %v2499 = vpack.c.b16 %v2485, %v2484
        %v2500 = vpack.c.b16 %v2487, %v2486
        %v2501 = vpack.c.b16 %v2489, %v2488
        %v2502 = vpack.c.b16 %v2491, %v2490
        %v2503 = vpack.c.b16 %v2493, %v2492
        %v2504 = vpack.c.b16 %v2495, %v2494
        %v2505 = vpack.c.b16 %v2497, %v2496
        %2514 = vmatprep.subr.bf16.mxu0 0
        %2515 = vmatpush1.bf16.msra.mxu0 %v2505
        %2516 = vmatprep.subr.bf16.mxu0 0
        %2517 = vmatpush1.bf16.msra.mxu0 %v2504
        %2518 = vmatprep.subr.bf16.mxu0 0
        %2519 = vmatpush1.bf16.msra.mxu0 %v2503
        %2520 = vmatprep.subr.bf16.mxu0 0
        %2521 = vmatpush1.bf16.msra.mxu0 %v2502
        %2522 = vmatprep.subr.bf16.mxu0 0
        %2523 = vmatpush1.bf16.msra.mxu0 %v2501
        %2524 = vmatprep.subr.bf16.mxu0 0
        %2525 = vmatpush1.bf16.msra.mxu0 %v2500
        %2526 = vmatprep.subr.bf16.mxu0 0
        %2527 = vmatpush1.bf16.msra.mxu0 %v2499
        %2528 = vmatprep.subr.bf16.mxu0 0
        %2529 = vmatpush1.bf16.msra.mxu0 %v2498
        %2530 = vmatprep.subr.bf16.mxu0 0
        %2531 = vmatpush2.bf16.msra.mxu0 0
        %2532 = vmatprep.subr.bf16.mxu0 0
        %2533 = vmatpush2.bf16.msra.mxu0 0
        %2534 = vmatprep.subr.bf16.mxu0 0
        %2535 = vmatpush2.bf16.msra.mxu0 0
        %2536 = vmatprep.subr.bf16.mxu0 0
        %2537 = vmatpush2.bf16.msra.mxu0 0
        %2538 = vmatprep.subr.bf16.mxu0 0
        %2539 = vmatpush2.bf16.msra.mxu0 0
        %2540 = vmatprep.subr.bf16.mxu0 0
        %2541 = vmatpush2.bf16.msra.mxu0 0
        %2542 = vmatprep.subr.bf16.mxu0 0
        %2543 = vmatpush2.bf16.msra.mxu0 0
        %2544 = vmatprep.subr.bf16.mxu0 0
        %2545 = vmatpush2.bf16.msra.mxu0 0
        %2546 = vmatprep.mubr.bf16.mxu0 0
        %2547 = vmatmul.mubr.bf16.gmra.mxu0 %v2440
        %v2548 = vpop.f32.mrf.mxu0
        %v2549 = vadd.f32 %v2464, %v2548
        %v2550 = vpop.f32.mrf.mxu0
        %v2551 = vpop.f32.mrf.mxu0
        %v2552 = vpop.f32.mrf.mxu0
        %2553 = vdwg.mxu0
        %v2554 = vadd.f32 %v2439, %v2549
        %v2555 = vpack.c.bf16 %v2554, %v2554
        %2556 = vst [vmem:[%s355] sm:$0xf] %v2555
        %s2557 = sand.u32 %s202, 1
        %s2558 = scalar_lea.sflag [#allocation9], %s2557
        %s2559 = sand.u32 %s202, 1
        %s2560 = smul.addr %s2559, 4
        %s2561 = scalar_lea.vmem [#allocation15], %s2560
        // Predicated region
        $region69: #{tpu_custom_call.1} parent=47 // pred_check
          %p2562 = pneg %p212
        $region70: #{tpu_custom_call.1} parent=47 // pred_check_branch
          %2564 = sbr.rel (%p2562) target = $region72
        $region71: #{tpu_custom_call.1} parent=47 // pred_region
          %s2566 = ssub.s32 64, 64
          %2567 = vsyncadd %s2558, %s2566
          %s2568 = smul.addr %s30, 2
          %s2569 = sadd.s32 %s31, %s2568
          %s2570 = smul.addr %s2569, 64
          %s2571 = scalar_lea.hbm %s7, %s2570
          %s2573 = sshll.u32 %s2561, 4
          %s2574 = int_to_ptr.vmem [resolvable:$true] %s2573
          %2576 = dma.vmem_to_hbm [thread:$0]  %s2574, 64, %s2571, %s2558
        $region72: #{tpu_custom_call.1} parent=47 // pred_fallthru
          _
      $region48: #{tpu_custom_call.1} parent=5 // pred_fallthru
        _
      %p2577 = scmp.le.s32.totalorder 2, %s21
      // Predicated region
      $region73: #{tpu_custom_call.1} parent=5 // pred_check
        %p2578 = pneg %p2577
      $region74: #{tpu_custom_call.1} parent=5 // pred_check_branch
        %2580 = sbr.rel (%p2578) target = $region76
      $region75: #{tpu_custom_call.1} parent=5 // pred_region
        %s2581 = ssub.s32 %s21, 2
        // Predicated region
        $region77: #{tpu_custom_call.1} parent=75 // pred_check
          %p2582 = pneg %p218
        $region78: #{tpu_custom_call.1} parent=75 // pred_check_branch
          %2584 = sbr.rel (%p2582) target = $region80
        $region79: #{tpu_custom_call.1} parent=75 // pred_region
          %s2585 = sand.u32 %s203, 1
          %s2586 = scalar_lea.sflag [#allocation9], %s2585
          %s2587 = sand.u32 %s203, 1
          %s2588 = smul.addr %s2587, 4
          %s2589 = scalar_lea.vmem [#allocation15], %s2588
          %2590 = dma.done %s2586, 64
        $region80: #{tpu_custom_call.1} parent=75 // pred_fallthru
          _
      $region76: #{tpu_custom_call.1} parent=5 // pred_fallthru
        _
    $region6: #{tpu_custom_call.1} parent=1 // loop_footer
      %s25 = sadd.s32 1, %s21
    $region7: #{tpu_custom_call.1} parent=1 // loop_footer_branch
      %20 = sbr.rel target = $region3
    $region8: #{tpu_custom_call.1} parent=1 // loop_exit
      _
    %2591 = vsyncpa [#allocation8], 1
    %s2592 = scalar_lea.sflag [#allocation8], 1
    %2593 = vsyncpa %s2592, 1
    %2594 = vsyncpa [#allocation11], 1
    %2595 = vsyncpa [#allocation14], 1
    %2596 = vsyncpa [#allocation9], 1
    %s2597 = scalar_lea.sflag [#allocation9], 1
    %2598 = vsyncpa %s2597, 1

</llo_original>
